<compile_context>
chip_gen: v5e
topology: v5e:2x2
jax: 0.10.0
libtpu: 0.0.40
codegen_flags: <defaults>
</compile_context>

<pallas_src>
import functools
import math

import jax
import jax.numpy as jnp
from jax.experimental import pallas as pl
from jax.experimental.pallas import tpu as pltpu


_VMEM = pl.BlockSpec(memory_space=pltpu.MemorySpace.VMEM)


def _layernorm(x, g, b, eps):
    mu = jnp.mean(x, axis=-1, keepdims=True)
    xc = x - mu
    var = jnp.mean(xc * xc, axis=-1, keepdims=True)
    return xc * jax.lax.rsqrt(var + eps) * g + b


# ----------------------- fused input-projection kernel ----------------------

def _proj_kernel(xv_ref, wv_ref, bv_ref, xt_ref, wt_ref, bt_ref,
                 ov_ref, ot_ref):
    ov_ref[...] = (jnp.dot(xv_ref[...].astype(jnp.bfloat16), wv_ref[...],
                           preferred_element_type=jnp.float32) + bv_ref[...])
    ot_ref[...] = (jnp.dot(xt_ref[...].astype(jnp.bfloat16), wt_ref[...],
                           preferred_element_type=jnp.float32) + bt_ref[...])


def project_inputs(visu_x, text_x, p):
    """visu_x:(B*Nv,Cv)  text_x:(B*Nt,Ct) -> ((B*Nv,D),(B*Nt,D)) in one call."""
    D = p["visu_w"].shape[1]
    return pl.pallas_call(
        _proj_kernel,
        out_shape=(jax.ShapeDtypeStruct((visu_x.shape[0], D), jnp.float32),
                   jax.ShapeDtypeStruct((text_x.shape[0], D), jnp.float32)),
        in_specs=[_VMEM] * 6,
        out_specs=(_VMEM, _VMEM),
    )(visu_x, p["visu_w"], p["visu_b"], text_x, p["text_w"], p["text_b"])


# ------------------ fused multi-layer encoder + bbox head -------------------

def _vl_head_kernel(src_ref, bias_ref, pos_ref,
                    wqk_ref, bqk_ref, wv_ref, bv_ref, wo_ref, bo_ref,
                    ln1_g_ref, ln1_b_ref, w1_ref, b1_ref, w2_ref, b2_ref,
                    ln2_g_ref, ln2_b_ref,
                    mw1_ref, mb1_ref, mw2_ref, mb2_ref, mw3_ref, mb3_ref,
                    box_ref, hs_ref, *, num_heads, eps):
    layer = pl.program_id(0)
    num_layers = pl.num_programs(0)
    B, S, D = hs_ref.shape
    H = num_heads
    dh = D // H
    scale = 1.0 / math.sqrt(dh)

    @pl.when(layer == 0)
    def _init():
        hs_ref[...] = src_ref[...]               # activation becomes VMEM-resident
        box_ref[...] = jnp.zeros_like(box_ref)

    src = hs_ref[...]                            # (B, S, D) f32
    src2 = src.reshape(B * S, D)
    qk_in = (src + pos_ref[...][None, :, :]).reshape(B * S, D)   # q/k: src + pos

    # fused Q|K projection (one (D,2D) matmul) + separate V projection, bf16 MXU
    qk = (jnp.dot(qk_in.astype(jnp.bfloat16), wqk_ref[...],
                  preferred_element_type=jnp.float32) + bqk_ref[...])
    v = (jnp.dot(src2.astype(jnp.bfloat16), wv_ref[...],
                 preferred_element_type=jnp.float32) + bv_ref[...])

    bias_b = bias_ref[...][:, None, :]           # hoisted (B, 1, S) pad bias

    # static loop over heads; output projection accumulated per head (no concat)
    attn = jnp.zeros((B * S, D), jnp.float32)
    for h in range(H):
        lo, hi = h * dh, (h + 1) * dh
        qh = qk[:, lo:hi].astype(jnp.bfloat16).reshape(B, S, dh)
        kh = qk[:, D + lo:D + hi].astype(jnp.bfloat16).reshape(B, S, dh)
        vh = v[:, lo:hi].astype(jnp.bfloat16).reshape(B, S, dh)
        s = jnp.einsum("bqd,bkd->bqk", qh, kh,
                       preferred_element_type=jnp.float32) * scale + bias_b
        s = s - jnp.max(s, axis=-1, keepdims=True)
        prob = jnp.exp(s)
        prob = prob * pl.reciprocal(jnp.sum(prob, axis=-1, keepdims=True),
                                    approx=True)
        oh = jnp.einsum("bqk,bkd->bqd", prob.astype(jnp.bfloat16), vh,
                        preferred_element_type=jnp.float32)
        attn = attn + jnp.dot(oh.reshape(B * S, dh).astype(jnp.bfloat16),
                              wo_ref[lo:hi, :],
                              preferred_element_type=jnp.float32)
    attn = attn + bo_ref[...]

    # residual + LN1 (post-norm, dropout = identity in eval)
    x = _layernorm(src2 + attn, ln1_g_ref[...], ln1_b_ref[...], eps)

    # FFN + residual + LN2
    ffn = jnp.maximum(
        jnp.dot(x.astype(jnp.bfloat16), w1_ref[...],
                preferred_element_type=jnp.float32) + b1_ref[...], 0.0)
    ffn = jnp.dot(ffn.astype(jnp.bfloat16), w2_ref[...],
                  preferred_element_type=jnp.float32) + b2_ref[...]
    x = _layernorm(x + ffn, ln2_g_ref[...], ln2_b_ref[...], eps)

    hs_ref[...] = x.reshape(B, S, D)

    # bbox MLP head on the reg token, fused into the final layer iteration.
    @pl.when(layer == num_layers - 1)
    def _bbox_head():
        vg = x.reshape(B, S, D)[:, 0, :]         # (B, D) reg-token rows
        h1 = jnp.maximum(
            jnp.dot(vg.astype(jnp.bfloat16), mw1_ref[...],
                    preferred_element_type=jnp.float32) + mb1_ref[...], 0.0)
        h2 = jnp.maximum(
            jnp.dot(h1.astype(jnp.bfloat16), mw2_ref[...],
                    preferred_element_type=jnp.float32) + mb2_ref[...], 0.0)
        y = (jnp.dot(h2.astype(jnp.bfloat16), mw3_ref[...],
                     preferred_element_type=jnp.float32) + mb3_ref[...])
        box_ref[...] = 1.0 / (1.0 + jnp.exp(-y))


def _fixed_spec(a):
    zeros = (0,) * a.ndim
    return pl.BlockSpec(tuple(a.shape), lambda l, _z=zeros: _z)


def _stacked_spec(a):
    tail = (0,) * (a.ndim - 1)
    return pl.BlockSpec((None,) + tuple(a.shape[1:]),
                        lambda l, _t=tail: (l,) + _t)


def vl_transformer_head(vl_src, bias, pos, p, *, num_heads, eps=1e-5):
    """vl_src:(B,S,D)  bias:(B,S) additive float  pos:(S,D) -> (B, out_dim)."""
    B, S, D = vl_src.shape
    L = p["wqk"].shape[0]
    F = p["w1"].shape[2]
    out_dim = p["mlp_w3"].shape[1]

    layer_args = [p["wqk"], p["bqk"], p["wv"], p["bv"], p["wo"], p["bo"],
                  p["ln1_g"], p["ln1_b"], p["w1"], p["b1"], p["w2"], p["b2"],
                  p["ln2_g"], p["ln2_b"]]
    head_args = [p["mlp_w1"], p["mlp_b1"], p["mlp_w2"], p["mlp_b2"],
                 p["mlp_w3"], p["mlp_b3"]]
    args = [vl_src, bias, pos] + layer_args + head_args
    in_specs = ([_fixed_spec(vl_src), _fixed_spec(bias), _fixed_spec(pos)]
                + [_stacked_spec(a) for a in layer_args]
                + [_fixed_spec(a) for a in head_args])

    # advisory scheduling hint for XLA
    bs = B * S
    layer_flops = (2 * bs * D * (2 * D) + 2 * bs * D * D          # qk / v proj
                   + 4 * B * S * S * D                            # scores + pv
                   + 2 * bs * D * D                               # out proj
                   + 4 * bs * D * F)                              # ffn
    head_flops = 2 * B * (2 * D * D + D * out_dim)
    cost = pl.CostEstimate(
        flops=L * layer_flops + head_flops,
        transcendentals=L * (B * S * S + 2 * bs) + B * out_dim,
        bytes_accessed=sum(int(a.size) * a.dtype.itemsize for a in args)
                       + B * out_dim * 4)

    kernel = functools.partial(_vl_head_kernel, num_heads=num_heads, eps=eps)
    return pl.pallas_call(
        kernel,
        out_shape=jax.ShapeDtypeStruct((B, out_dim), jnp.float32),
        grid_spec=pltpu.PrefetchScalarGridSpec(
            num_scalar_prefetch=0,
            grid=(L,),
            in_specs=in_specs,
            out_specs=pl.BlockSpec((B, out_dim), lambda l: (0, 0)),
            scratch_shapes=[pltpu.VMEM((B, S, D), jnp.float32)]),
        compiler_params=pltpu.CompilerParams(
            dimension_semantics=("arbitrary",)),
        cost_estimate=cost,
    )(*args)


# ------------------------------ forward (glue) ------------------------------

def transvg_forward(params, visu_src, visu_mask, text_src, text_mask, *,
                    num_heads):
    """Mirrors TransVG.forward given backbone outputs.

    visu_src : (Nv, B, Cv)   visu_mask : (B, Nv) bool (True == pad)
    text_src : (B, Nt, Ct)   text_mask : (B, Nt) bool (True == pad)
    returns  : (B, out_dim) sigmoid box predictions
    """
    Nv, B, Cv = visu_src.shape
    _, Nt, Ct = text_src.shape
    D = params["visu_w"].shape[1]
    S_real = 1 + Nt + Nv
    S_pad = max(8, -(-S_real // 8) * 8)          # pad seq to sublane multiple

    # TODO(synk): at production sizes fold this layout transpose into the
    # projection kernel's out_spec index_map instead of a wrapper XLA copy.
    visu_x = jnp.transpose(visu_src, (1, 0, 2)).reshape(B * Nv, Cv)
    visu_p, text_p = project_inputs(visu_x, text_src.reshape(B * Nt, Ct), params)
    visu_p = visu_p.reshape(B, Nv, D)
    text_p = text_p.reshape(B, Nt, D)

    tgt = jnp.broadcast_to(params["reg_token"][None, :, :], (B, 1, D))
    vl = jnp.concatenate([tgt, text_p, visu_p], axis=1)          # (B, S_real, D)
    vl = jnp.pad(vl, ((0, 0), (0, S_pad - S_real), (0, 0)))

    tgt_mask = jnp.zeros((B, 1), dtype=jnp.bool_)
    mask = jnp.concatenate([tgt_mask, text_mask, visu_mask], axis=1)
    mask = jnp.pad(mask, ((0, 0), (0, S_pad - S_real)), constant_values=True)
    bias = jnp.where(mask, -1e9, 0.0).astype(jnp.float32)        # once, shared

    pos = jnp.pad(params["vl_pos"], ((0, S_pad - S_real), (0, 0)))

    return vl_transformer_head(vl, bias, pos, params, num_heads=num_heads)


def init_params(key, hidden_dim, visu_c, text_c, out_dim,
                num_layers, ffn_dim, num_total):
    keys = iter(jax.random.split(key, 256))

    def w_init(shape):       # matmul weights stored bf16 (MXU-native)
        return (jax.random.normal(next(keys), shape, jnp.float32)
                * 0.05).astype(jnp.bfloat16)

    def b_init(shape):       # biases / LN / embeddings stay f32
        return jax.random.normal(next(keys), shape, jnp.float32) * 0.05

    D, F, L = hidden_dim, ffn_dim, num_layers
    p = {}
    p["visu_w"] = w_init((visu_c, D)); p["visu_b"] = b_init((1, D))
    p["text_w"] = w_init((text_c, D)); p["text_b"] = b_init((1, D))
    p["reg_token"] = b_init((1, D))
    p["vl_pos"] = b_init((num_total, D))

    p["wqk"] = w_init((L, D, 2 * D)); p["bqk"] = b_init((L, 1, 2 * D))
    p["wv"] = w_init((L, D, D));      p["bv"] = b_init((L, 1, D))
    p["wo"] = w_init((L, D, D));      p["bo"] = b_init((L, 1, D))
    p["w1"] = w_init((L, D, F));      p["b1"] = b_init((L, 1, F))
    p["w2"] = w_init((L, F, D));      p["b2"] = b_init((L, 1, D))
    p["ln1_g"] = jnp.ones((L, 1, D), jnp.float32)
    p["ln1_b"] = jnp.zeros((L, 1, D), jnp.float32)
    p["ln2_g"] = jnp.ones((L, 1, D), jnp.float32)
    p["ln2_b"] = jnp.zeros((L, 1, D), jnp.float32)

    p["mlp_w1"] = w_init((D, D));       p["mlp_b1"] = b_init((1, D))
    p["mlp_w2"] = w_init((D, D));       p["mlp_b2"] = b_init((1, D))
    p["mlp_w3"] = w_init((D, out_dim)); p["mlp_b3"] = b_init((1, out_dim))
    return p


if __name__ == "__main__":
    key = jax.random.PRNGKey(0)
    k_vis, k_txt, k_par = jax.random.split(key, 3)

    B = 2
    num_visu_token = 16          # (imsize=128 / divisor=32) ** 2
    num_text_token = 8           # max_query_len
    hidden = 32                  # vl_hidden_dim
    visu_c, text_c = 64, 48      # visumodel / textmodel num_channels
    out_dim = 4
    num_heads = 4
    num_total = num_visu_token + num_text_token + 1

    visu_src = jax.random.normal(k_vis, (num_visu_token, B, visu_c), jnp.float32)
    text_src = jax.random.normal(k_txt, (B, num_text_token, text_c), jnp.float32)
    visu_mask = jnp.zeros((B, num_visu_token), dtype=jnp.bool_)
    # batch 0: no padding; batch 1: last 3 text tokens padded
    text_mask = (jnp.arange(num_text_token)[None, :]
                 >= jnp.array([[num_text_token], [5]])).astype(jnp.bool_)

    params = init_params(k_par, hidden_dim=hidden, visu_c=visu_c, text_c=text_c,
                         out_dim=out_dim, num_layers=2, ffn_dim=64,
                         num_total=num_total)

    fwd = jax.jit(functools.partial(transvg_forward, num_heads=num_heads))
    pred_box = fwd(params, visu_src, visu_mask, text_src, text_mask)
    jax.block_until_ready(pred_box)
    assert pred_box.shape == (B, out_dim)
    assert bool(jnp.all((pred_box >= 0.0) & (pred_box <= 1.0)))
    print("KERNEL_OK")
</pallas_src>

<mosaic_0001>
module attributes {stable_mosaic.version = 11 : i64} {
  func.func @_proj_kernel(%arg0: memref<32x64xf32, #tpu.memory_space<vmem>>, %arg1: memref<64x32xbf16, #tpu.memory_space<vmem>>, %arg2: memref<1x32xf32, #tpu.memory_space<vmem>>, %arg3: memref<16x48xf32, #tpu.memory_space<vmem>>, %arg4: memref<48x32xbf16, #tpu.memory_space<vmem>>, %arg5: memref<1x32xf32, #tpu.memory_space<vmem>>, %arg6: memref<32x32xf32, #tpu.memory_space<vmem>>, %arg7: memref<16x32xf32, #tpu.memory_space<vmem>>) attributes {dimension_semantics = [], scalar_prefetch = 0 : i64, scratch_operands = 0 : i64, tpu.core_type = #tpu.core_type<tc>} {
    %c0 = arith.constant 0 : index
    %c0_0 = arith.constant 0 : index
    %0 = vector.load %arg0[%c0, %c0_0] : memref<32x64xf32, #tpu.memory_space<vmem>>, vector<32x64xf32>
    %1 = arith.truncf %0 : vector<32x64xf32> to vector<32x64xbf16>
    %c0_1 = arith.constant 0 : index
    %c0_2 = arith.constant 0 : index
    %2 = vector.load %arg1[%c0_1, %c0_2] : memref<64x32xbf16, #tpu.memory_space<vmem>>, vector<64x32xbf16>
    %cst = arith.constant dense<0.000000e+00> : vector<32x32xf32>
    %3 = tpu.matmul %1, %2, %cst {dimension_numbers = #tpu.dot_dimension_numbers<[1], [0], [0], [1], [0, 0, 1, 1], [], []>} : vector<32x64xbf16>, vector<64x32xbf16>, vector<32x32xf32> -> vector<32x32xf32>
    %c0_3 = arith.constant 0 : index
    %c0_4 = arith.constant 0 : index
    %4 = vector.load %arg2[%c0_3, %c0_4] : memref<1x32xf32, #tpu.memory_space<vmem>>, vector<1x32xf32>
    %5 = vector.broadcast %4 : vector<1x32xf32> to vector<32x32xf32>
    %6 = arith.addf %3, %5 : vector<32x32xf32>
    %c0_5 = arith.constant 0 : index
    %c0_6 = arith.constant 0 : index
    %7 = vector.load %arg6[%c0_5, %c0_6] : memref<32x32xf32, #tpu.memory_space<vmem>>, vector<32x32xf32>
    tpu.vector_store %arg6[%c0_5, %c0_6], %6 {strides = array<i32>} : memref<32x32xf32, #tpu.memory_space<vmem>>, vector<32x32xf32>,
    %c0_7 = arith.constant 0 : index
    %c0_8 = arith.constant 0 : index
    %8 = vector.load %arg3[%c0_7, %c0_8] : memref<16x48xf32, #tpu.memory_space<vmem>>, vector<16x48xf32>
    %9 = arith.truncf %8 : vector<16x48xf32> to vector<16x48xbf16>
    %c0_9 = arith.constant 0 : index
    %c0_10 = arith.constant 0 : index
    %10 = vector.load %arg4[%c0_9, %c0_10] : memref<48x32xbf16, #tpu.memory_space<vmem>>, vector<48x32xbf16>
    %cst_11 = arith.constant dense<0.000000e+00> : vector<16x32xf32>
    %11 = tpu.matmul %9, %10, %cst_11 {dimension_numbers = #tpu.dot_dimension_numbers<[1], [0], [0], [1], [0, 0, 1, 1], [], []>} : vector<16x48xbf16>, vector<48x32xbf16>, vector<16x32xf32> -> vector<16x32xf32>
    %c0_12 = arith.constant 0 : index
    %c0_13 = arith.constant 0 : index
    %12 = vector.load %arg5[%c0_12, %c0_13] : memref<1x32xf32, #tpu.memory_space<vmem>>, vector<1x32xf32>
    %13 = vector.broadcast %12 : vector<1x32xf32> to vector<16x32xf32>
    %14 = arith.addf %11, %13 : vector<16x32xf32>
    %c0_14 = arith.constant 0 : index
    %c0_15 = arith.constant 0 : index
    %15 = vector.load %arg7[%c0_14, %c0_15] : memref<16x32xf32, #tpu.memory_space<vmem>>, vector<16x32xf32>
    tpu.vector_store %arg7[%c0_14, %c0_15], %14 {strides = array<i32>} : memref<16x32xf32, #tpu.memory_space<vmem>>, vector<16x32xf32>,
    return
  }
}

module attributes {stable_mosaic.version = 11 : i64} {
  func.func @_vl_head_kernel(%arg0: i32, %arg1: memref<2x32x32xf32, #tpu.memory_space<vmem>>, %arg2: memref<2x32xf32, #tpu.memory_space<vmem>>, %arg3: memref<32x32xf32, #tpu.memory_space<vmem>>, %arg4: memref<1x32x64xbf16, #tpu.memory_space<vmem>>, %arg5: memref<1x1x64xf32, #tpu.memory_space<vmem>>, %arg6: memref<1x32x32xbf16, #tpu.memory_space<vmem>>, %arg7: memref<1x1x32xf32, #tpu.memory_space<vmem>>, %arg8: memref<1x32x32xbf16, #tpu.memory_space<vmem>>, %arg9: memref<1x1x32xf32, #tpu.memory_space<vmem>>, %arg10: memref<1x1x32xf32, #tpu.memory_space<vmem>>, %arg11: memref<1x1x32xf32, #tpu.memory_space<vmem>>, %arg12: memref<1x32x64xbf16, #tpu.memory_space<vmem>>, %arg13: memref<1x1x64xf32, #tpu.memory_space<vmem>>, %arg14: memref<1x64x32xbf16, #tpu.memory_space<vmem>>, %arg15: memref<1x1x32xf32, #tpu.memory_space<vmem>>, %arg16: memref<1x1x32xf32, #tpu.memory_space<vmem>>, %arg17: memref<1x1x32xf32, #tpu.memory_space<vmem>>, %arg18: memref<32x32xbf16, #tpu.memory_space<vmem>>, %arg19: memref<1x32xf32, #tpu.memory_space<vmem>>, %arg20: memref<32x32xbf16, #tpu.memory_space<vmem>>, %arg21: memref<1x32xf32, #tpu.memory_space<vmem>>, %arg22: memref<32x4xbf16, #tpu.memory_space<vmem>>, %arg23: memref<1x4xf32, #tpu.memory_space<vmem>>, %arg24: memref<2x4xf32, #tpu.memory_space<vmem>>, %arg25: memref<2x32x32xf32, #tpu.memory_space<vmem>>) attributes {dimension_semantics = [#tpu.dimension_semantics<arbitrary>], iteration_bounds = array<i64: 2>, scalar_prefetch = 0 : i64, scratch_operands = 1 : i64, tpu.core_type = #tpu.core_type<tc>, window_params = [{pipeline_mode = #tpu.pipeline_mode<synchronous>, transform_indices = @transform_0, window_bounds = array<i64: 2, 32, 32>}, {pipeline_mode = #tpu.pipeline_mode<synchronous>, transform_indices = @transform_1, window_bounds = array<i64: 2, 32>}, {pipeline_mode = #tpu.pipeline_mode<synchronous>, transform_indices = @transform_2, window_bounds = array<i64: 32, 32>}, {transform_indices = @transform_3, window_bounds = array<i64: 1, 32, 64>}, {transform_indices = @transform_4, window_bounds = array<i64: 1, 1, 64>}, {transform_indices = @transform_5, window_bounds = array<i64: 1, 32, 32>}, {transform_indices = @transform_6, window_bounds = array<i64: 1, 1, 32>}, {transform_indices = @transform_7, window_bounds = array<i64: 1, 32, 32>}, {transform_indices = @transform_8, window_bounds = array<i64: 1, 1, 32>}, {transform_indices = @transform_9, window_bounds = array<i64: 1, 1, 32>}, {transform_indices = @transform_10, window_bounds = array<i64: 1, 1, 32>}, {transform_indices = @transform_11, window_bounds = array<i64: 1, 32, 64>}, {transform_indices = @transform_12, window_bounds = array<i64: 1, 1, 64>}, {transform_indices = @transform_13, window_bounds = array<i64: 1, 64, 32>}, {transform_indices = @transform_14, window_bounds = array<i64: 1, 1, 32>}, {transform_indices = @transform_15, window_bounds = array<i64: 1, 1, 32>}, {transform_indices = @transform_16, window_bounds = array<i64: 1, 1, 32>}, {pipeline_mode = #tpu.pipeline_mode<synchronous>, transform_indices = @transform_17, window_bounds = array<i64: 32, 32>}, {pipeline_mode = #tpu.pipeline_mode<synchronous>, transform_indices = @transform_18, window_bounds = array<i64: 1, 32>}, {pipeline_mode = #tpu.pipeline_mode<synchronous>, transform_indices = @transform_19, window_bounds = array<i64: 32, 32>}, {pipeline_mode = #tpu.pipeline_mode<synchronous>, transform_indices = @transform_20, window_bounds = array<i64: 1, 32>}, {pipeline_mode = #tpu.pipeline_mode<synchronous>, transform_indices = @transform_21, window_bounds = array<i64: 32, 4>}, {pipeline_mode = #tpu.pipeline_mode<synchronous>, transform_indices = @transform_22, window_bounds = array<i64: 1, 4>}, {pipeline_mode = #tpu.pipeline_mode<synchronous>, transform_indices = @transform_23, window_bounds = array<i64: 2, 4>}]} {
    %c0_i32 = arith.constant 0 : i32
    %0 = arith.cmpi eq, %arg0, %c0_i32 : i32
    %1 = arith.extui %0 : i1 to i32
    %c0_i32_0 = arith.constant 0 : i32
    %2 = arith.cmpi ne, %1, %c0_i32_0 : i32
    scf.if %2 {
      %c0_98 = arith.constant 0 : index
      %c0_99 = arith.constant 0 : index
      %c0_100 = arith.constant 0 : index
      %234 = vector.load %arg1[%c0_98, %c0_99, %c0_100] : memref<2x32x32xf32, #tpu.memory_space<vmem>>, vector<2x32x32xf32>
      %c0_101 = arith.constant 0 : index
      %c0_102 = arith.constant 0 : index
      %c0_103 = arith.constant 0 : index
      %235 = vector.load %arg25[%c0_101, %c0_102, %c0_103] : memref<2x32x32xf32, #tpu.memory_space<vmem>>, vector<2x32x32xf32>
      tpu.vector_store %arg25[%c0_101, %c0_102, %c0_103], %234 {strides = array<i32>} : memref<2x32x32xf32, #tpu.memory_space<vmem>>, vector<2x32x32xf32>,
      %cst_104 = arith.constant 0.000000e+00 : f32
      %236 = vector.broadcast %cst_104 : f32 to vector<2x4xf32>
      %c0_105 = arith.constant 0 : index
      %c0_106 = arith.constant 0 : index
      %237 = vector.load %arg24[%c0_105, %c0_106] : memref<2x4xf32, #tpu.memory_space<vmem>>, vector<2x4xf32>
      tpu.vector_store %arg24[%c0_105, %c0_106], %236 {strides = array<i32>} : memref<2x4xf32, #tpu.memory_space<vmem>>, vector<2x4xf32>,
    } else {
    }
    %c0 = arith.constant 0 : index
    %c0_1 = arith.constant 0 : index
    %c0_2 = arith.constant 0 : index
    %3 = vector.load %arg25[%c0, %c0_1, %c0_2] : memref<2x32x32xf32, #tpu.memory_space<vmem>>, vector<2x32x32xf32>
    %4 = vector.shape_cast %3 : vector<2x32x32xf32> to vector<64x32xf32>
    %c0_3 = arith.constant 0 : index
    %c0_4 = arith.constant 0 : index
    %5 = vector.load %arg3[%c0_3, %c0_4] : memref<32x32xf32, #tpu.memory_space<vmem>>, vector<32x32xf32>
    %6 = vector.shape_cast %5 : vector<32x32xf32> to vector<1x32x32xf32>
    %7 = vector.broadcast %6 : vector<1x32x32xf32> to vector<2x32x32xf32>
    %8 = arith.addf %3, %7 : vector<2x32x32xf32>
    %9 = vector.shape_cast %8 : vector<2x32x32xf32> to vector<64x32xf32>
    %10 = arith.truncf %9 : vector<64x32xf32> to vector<64x32xbf16>
    %c0_5 = arith.constant 0 : index
    %c0_6 = arith.constant 0 : index
    %c0_7 = arith.constant 0 : index
    %11 = vector.load %arg4[%c0_5, %c0_6, %c0_7] : memref<1x32x64xbf16, #tpu.memory_space<vmem>>, vector<1x32x64xbf16>
    %12 = vector.shape_cast %11 : vector<1x32x64xbf16> to vector<32x64xbf16>
    %cst = arith.constant dense<0.000000e+00> : vector<64x64xf32>
    %13 = tpu.matmul %10, %12, %cst {dimension_numbers = #tpu.dot_dimension_numbers<[1], [0], [0], [1], [0, 0, 1, 1], [], []>} : vector<64x32xbf16>, vector<32x64xbf16>, vector<64x64xf32> -> vector<64x64xf32>
    %c0_8 = arith.constant 0 : index
    %c0_9 = arith.constant 0 : index
    %c0_10 = arith.constant 0 : index
    %14 = vector.load %arg5[%c0_8, %c0_9, %c0_10] : memref<1x1x64xf32, #tpu.memory_space<vmem>>, vector<1x1x64xf32>
    %15 = vector.shape_cast %14 : vector<1x1x64xf32> to vector<1x64xf32>
    %16 = vector.broadcast %15 : vector<1x64xf32> to vector<64x64xf32>
    %17 = arith.addf %13, %16 : vector<64x64xf32>
    %18 = arith.truncf %4 : vector<64x32xf32> to vector<64x32xbf16>
    %c0_11 = arith.constant 0 : index
    %c0_12 = arith.constant 0 : index
    %c0_13 = arith.constant 0 : index
    %19 = vector.load %arg6[%c0_11, %c0_12, %c0_13] : memref<1x32x32xbf16, #tpu.memory_space<vmem>>, vector<1x32x32xbf16>
    %20 = vector.shape_cast %19 : vector<1x32x32xbf16> to vector<32x32xbf16>
    %cst_14 = arith.constant dense<0.000000e+00> : vector<64x32xf32>
    %21 = tpu.matmul %18, %20, %cst_14 {dimension_numbers = #tpu.dot_dimension_numbers<[1], [0], [0], [1], [0, 0, 1, 1], [], []>} : vector<64x32xbf16>, vector<32x32xbf16>, vector<64x32xf32> -> vector<64x32xf32>
    %c0_15 = arith.constant 0 : index
    %c0_16 = arith.constant 0 : index
    %c0_17 = arith.constant 0 : index
    %22 = vector.load %arg7[%c0_15, %c0_16, %c0_17] : memref<1x1x32xf32, #tpu.memory_space<vmem>>, vector<1x1x32xf32>
    %23 = vector.shape_cast %22 : vector<1x1x32xf32> to vector<1x32xf32>
    %24 = vector.broadcast %23 : vector<1x32xf32> to vector<64x32xf32>
    %25 = arith.addf %21, %24 : vector<64x32xf32>
    %c0_18 = arith.constant 0 : index
    %c0_19 = arith.constant 0 : index
    %26 = vector.load %arg2[%c0_18, %c0_19] : memref<2x32xf32, #tpu.memory_space<vmem>>, vector<2x32xf32>
    %27 = vector.shape_cast %26 : vector<2x32xf32> to vector<2x1x32xf32>
    %cst_20 = arith.constant 0.000000e+00 : f32
    %28 = vector.broadcast %cst_20 : f32 to vector<64x32xf32>
    %29 = vector.extract_strided_slice %17 {offsets = [0, 0], sizes = [64, 8], strides = [1, 1]} : vector<64x64xf32> to vector<64x8xf32>
    %30 = arith.truncf %29 : vector<64x8xf32> to vector<64x8xbf16>
    %31 = vector.shape_cast %30 : vector<64x8xbf16> to vector<2x32x8xbf16>
    %32 = vector.extract_strided_slice %17 {offsets = [0, 32], sizes = [64, 8], strides = [1, 1]} : vector<64x64xf32> to vector<64x8xf32>
    %33 = arith.truncf %32 : vector<64x8xf32> to vector<64x8xbf16>
    %34 = vector.shape_cast %33 : vector<64x8xbf16> to vector<2x32x8xbf16>
    %35 = vector.extract_strided_slice %25 {offsets = [0, 0], sizes = [64, 8], strides = [1, 1]} : vector<64x32xf32> to vector<64x8xf32>
    %36 = arith.truncf %35 : vector<64x8xf32> to vector<64x8xbf16>
    %37 = vector.shape_cast %36 : vector<64x8xbf16> to vector<2x32x8xbf16>
    "tpu.trace_start"() <{level = 10 : i32, message = "bqd,bkd->bqk"}> : () -> ()
    %cst_21 = arith.constant dense<0.000000e+00> : vector<2x32x32xf32>
    %38 = tpu.matmul %31, %34, %cst_21 {dimension_numbers = #tpu.dot_dimension_numbers<[2], [2], [1], [1], [0, 0, 0, 1, 1, 1], [0], [0]>} : vector<2x32x8xbf16>, vector<2x32x8xbf16>, vector<2x32x32xf32> -> vector<2x32x32xf32>
    "tpu.trace_stop"() : () -> ()
    %cst_22 = arith.constant 0.353553385 : f32
    %39 = vector.broadcast %cst_22 : f32 to vector<2x32x32xf32>
    %40 = arith.mulf %38, %39 : vector<2x32x32xf32>
    %41 = vector.broadcast %27 : vector<2x1x32xf32> to vector<2x32x32xf32>
    %42 = arith.addf %40, %41 : vector<2x32x32xf32>
    %cst_23 = arith.constant dense<0xFF800000> : vector<2x32xf32>
    %43 = vector.multi_reduction <maximumf>, %42, %cst_23 [2] : vector<2x32x32xf32> to vector<2x32xf32>
    %44 = vector.shape_cast %43 : vector<2x32xf32> to vector<2x32x1xf32>
    %45 = vector.broadcast %44 : vector<2x32x1xf32> to vector<2x32x32xf32>
    %46 = arith.subf %42, %45 : vector<2x32x32xf32>
    %47 = math.exp %46 : vector<2x32x32xf32>
    %cst_24 = arith.constant dense<0.000000e+00> : vector<2x32xf32>
    %48 = vector.multi_reduction <add>, %47, %cst_24 [2] : vector<2x32x32xf32> to vector<2x32xf32>
    %49 = vector.shape_cast %48 : vector<2x32xf32> to vector<2x32x1xf32>
    %50 = tpu.reciprocal %49 {approx = true} : vector<2x32x1xf32> -> vector<2x32x1xf32>
    %51 = vector.broadcast %50 : vector<2x32x1xf32> to vector<2x32x32xf32>
    %52 = arith.mulf %47, %51 : vector<2x32x32xf32>
    %53 = arith.truncf %52 : vector<2x32x32xf32> to vector<2x32x32xbf16>
    "tpu.trace_start"() <{level = 10 : i32, message = "bqk,bkd->bqd"}> : () -> ()
    %cst_25 = arith.constant dense<0.000000e+00> : vector<2x32x8xf32>
    %54 = tpu.matmul %53, %37, %cst_25 {dimension_numbers = #tpu.dot_dimension_numbers<[2], [1], [1], [2], [0, 0, 0, 1, 1, 2], [0], [0]>} : vector<2x32x32xbf16>, vector<2x32x8xbf16>, vector<2x32x8xf32> -> vector<2x32x8xf32>
    "tpu.trace_stop"() : () -> ()
    %55 = vector.shape_cast %54 : vector<2x32x8xf32> to vector<64x8xf32>
    %56 = arith.truncf %55 : vector<64x8xf32> to vector<64x8xbf16>
    %c0_26 = arith.constant 0 : index
    %c0_27 = arith.constant 0 : index
    %c0_28 = arith.constant 0 : index
    %57 = vector.load %arg8[%c0_26, %c0_27, %c0_28] : memref<1x32x32xbf16, #tpu.memory_space<vmem>>, vector<1x8x32xbf16>
    %58 = vector.shape_cast %57 : vector<1x8x32xbf16> to vector<8x32xbf16>
    %cst_29 = arith.constant dense<0.000000e+00> : vector<64x32xf32>
    %59 = tpu.matmul %56, %58, %cst_29 {dimension_numbers = #tpu.dot_dimension_numbers<[1], [0], [0], [1], [0, 0, 1, 1], [], []>} : vector<64x8xbf16>, vector<8x32xbf16>, vector<64x32xf32> -> vector<64x32xf32>
    %60 = arith.addf %28, %59 : vector<64x32xf32>
    %61 = vector.extract_strided_slice %17 {offsets = [0, 8], sizes = [64, 8], strides = [1, 1]} : vector<64x64xf32> to vector<64x8xf32>
    %62 = arith.truncf %61 : vector<64x8xf32> to vector<64x8xbf16>
    %63 = vector.shape_cast %62 : vector<64x8xbf16> to vector<2x32x8xbf16>
    %64 = vector.extract_strided_slice %17 {offsets = [0, 40], sizes = [64, 8], strides = [1, 1]} : vector<64x64xf32> to vector<64x8xf32>
    %65 = arith.truncf %64 : vector<64x8xf32> to vector<64x8xbf16>
    %66 = vector.shape_cast %65 : vector<64x8xbf16> to vector<2x32x8xbf16>
    %67 = vector.extract_strided_slice %25 {offsets = [0, 8], sizes = [64, 8], strides = [1, 1]} : vector<64x32xf32> to vector<64x8xf32>
    %68 = arith.truncf %67 : vector<64x8xf32> to vector<64x8xbf16>
    %69 = vector.shape_cast %68 : vector<64x8xbf16> to vector<2x32x8xbf16>
    "tpu.trace_start"() <{level = 10 : i32, message = "bqd,bkd->bqk"}> : () -> ()
    %cst_30 = arith.constant dense<0.000000e+00> : vector<2x32x32xf32>
    %70 = tpu.matmul %63, %66, %cst_30 {dimension_numbers = #tpu.dot_dimension_numbers<[2], [2], [1], [1], [0, 0, 0, 1, 1, 1], [0], [0]>} : vector<2x32x8xbf16>, vector<2x32x8xbf16>, vector<2x32x32xf32> -> vector<2x32x32xf32>
    "tpu.trace_stop"() : () -> ()
    %cst_31 = arith.constant 0.353553385 : f32
    %71 = vector.broadcast %cst_31 : f32 to vector<2x32x32xf32>
    %72 = arith.mulf %70, %71 : vector<2x32x32xf32>
    %73 = vector.broadcast %27 : vector<2x1x32xf32> to vector<2x32x32xf32>
    %74 = arith.addf %72, %73 : vector<2x32x32xf32>
    %cst_32 = arith.constant dense<0xFF800000> : vector<2x32xf32>
    %75 = vector.multi_reduction <maximumf>, %74, %cst_32 [2] : vector<2x32x32xf32> to vector<2x32xf32>
    %76 = vector.shape_cast %75 : vector<2x32xf32> to vector<2x32x1xf32>
    %77 = vector.broadcast %76 : vector<2x32x1xf32> to vector<2x32x32xf32>
    %78 = arith.subf %74, %77 : vector<2x32x32xf32>
    %79 = math.exp %78 : vector<2x32x32xf32>
    %cst_33 = arith.constant dense<0.000000e+00> : vector<2x32xf32>
    %80 = vector.multi_reduction <add>, %79, %cst_33 [2] : vector<2x32x32xf32> to vector<2x32xf32>
    %81 = vector.shape_cast %80 : vector<2x32xf32> to vector<2x32x1xf32>
    %82 = tpu.reciprocal %81 {approx = true} : vector<2x32x1xf32> -> vector<2x32x1xf32>
    %83 = vector.broadcast %82 : vector<2x32x1xf32> to vector<2x32x32xf32>
    %84 = arith.mulf %79, %83 : vector<2x32x32xf32>
    %85 = arith.truncf %84 : vector<2x32x32xf32> to vector<2x32x32xbf16>
    "tpu.trace_start"() <{level = 10 : i32, message = "bqk,bkd->bqd"}> : () -> ()
    %cst_34 = arith.constant dense<0.000000e+00> : vector<2x32x8xf32>
    %86 = tpu.matmul %85, %69, %cst_34 {dimension_numbers = #tpu.dot_dimension_numbers<[2], [1], [1], [2], [0, 0, 0, 1, 1, 2], [0], [0]>} : vector<2x32x32xbf16>, vector<2x32x8xbf16>, vector<2x32x8xf32> -> vector<2x32x8xf32>
    "tpu.trace_stop"() : () -> ()
    %87 = vector.shape_cast %86 : vector<2x32x8xf32> to vector<64x8xf32>
    %88 = arith.truncf %87 : vector<64x8xf32> to vector<64x8xbf16>
    %c0_35 = arith.constant 0 : index
    %c8 = arith.constant 8 : index
    %c0_36 = arith.constant 0 : index
    %89 = vector.load %arg8[%c0_35, %c8, %c0_36] : memref<1x32x32xbf16, #tpu.memory_space<vmem>>, vector<1x8x32xbf16>
    %90 = vector.shape_cast %89 : vector<1x8x32xbf16> to vector<8x32xbf16>
    %cst_37 = arith.constant dense<0.000000e+00> : vector<64x32xf32>
    %91 = tpu.matmul %88, %90, %cst_37 {dimension_numbers = #tpu.dot_dimension_numbers<[1], [0], [0], [1], [0, 0, 1, 1], [], []>} : vector<64x8xbf16>, vector<8x32xbf16>, vector<64x32xf32> -> vector<64x32xf32>
    %92 = arith.addf %60, %91 : vector<64x32xf32>
    %93 = vector.extract_strided_slice %17 {offsets = [0, 16], sizes = [64, 8], strides = [1, 1]} : vector<64x64xf32> to vector<64x8xf32>
    %94 = arith.truncf %93 : vector<64x8xf32> to vector<64x8xbf16>
    %95 = vector.shape_cast %94 : vector<64x8xbf16> to vector<2x32x8xbf16>
    %96 = vector.extract_strided_slice %17 {offsets = [0, 48], sizes = [64, 8], strides = [1, 1]} : vector<64x64xf32> to vector<64x8xf32>
    %97 = arith.truncf %96 : vector<64x8xf32> to vector<64x8xbf16>
    %98 = vector.shape_cast %97 : vector<64x8xbf16> to vector<2x32x8xbf16>
    %99 = vector.extract_strided_slice %25 {offsets = [0, 16], sizes = [64, 8], strides = [1, 1]} : vector<64x32xf32> to vector<64x8xf32>
    %100 = arith.truncf %99 : vector<64x8xf32> to vector<64x8xbf16>
    %101 = vector.shape_cast %100 : vector<64x8xbf16> to vector<2x32x8xbf16>
    "tpu.trace_start"() <{level = 10 : i32, message = "bqd,bkd->bqk"}> : () -> ()
    %cst_38 = arith.constant dense<0.000000e+00> : vector<2x32x32xf32>
    %102 = tpu.matmul %95, %98, %cst_38 {dimension_numbers = #tpu.dot_dimension_numbers<[2], [2], [1], [1], [0, 0, 0, 1, 1, 1], [0], [0]>} : vector<2x32x8xbf16>, vector<2x32x8xbf16>, vector<2x32x32xf32> -> vector<2x32x32xf32>
    "tpu.trace_stop"() : () -> ()
    %cst_39 = arith.constant 0.353553385 : f32
    %103 = vector.broadcast %cst_39 : f32 to vector<2x32x32xf32>
    %104 = arith.mulf %102, %103 : vector<2x32x32xf32>
    %105 = vector.broadcast %27 : vector<2x1x32xf32> to vector<2x32x32xf32>
    %106 = arith.addf %104, %105 : vector<2x32x32xf32>
    %cst_40 = arith.constant dense<0xFF800000> : vector<2x32xf32>
    %107 = vector.multi_reduction <maximumf>, %106, %cst_40 [2] : vector<2x32x32xf32> to vector<2x32xf32>
    %108 = vector.shape_cast %107 : vector<2x32xf32> to vector<2x32x1xf32>
    %109 = vector.broadcast %108 : vector<2x32x1xf32> to vector<2x32x32xf32>
    %110 = arith.subf %106, %109 : vector<2x32x32xf32>
    %111 = math.exp %110 : vector<2x32x32xf32>
    %cst_41 = arith.constant dense<0.000000e+00> : vector<2x32xf32>
    %112 = vector.multi_reduction <add>, %111, %cst_41 [2] : vector<2x32x32xf32> to vector<2x32xf32>
    %113 = vector.shape_cast %112 : vector<2x32xf32> to vector<2x32x1xf32>
    %114 = tpu.reciprocal %113 {approx = true} : vector<2x32x1xf32> -> vector<2x32x1xf32>
    %115 = vector.broadcast %114 : vector<2x32x1xf32> to vector<2x32x32xf32>
    %116 = arith.mulf %111, %115 : vector<2x32x32xf32>
    %117 = arith.truncf %116 : vector<2x32x32xf32> to vector<2x32x32xbf16>
    "tpu.trace_start"() <{level = 10 : i32, message = "bqk,bkd->bqd"}> : () -> ()
    %cst_42 = arith.constant dense<0.000000e+00> : vector<2x32x8xf32>
    %118 = tpu.matmul %117, %101, %cst_42 {dimension_numbers = #tpu.dot_dimension_numbers<[2], [1], [1], [2], [0, 0, 0, 1, 1, 2], [0], [0]>} : vector<2x32x32xbf16>, vector<2x32x8xbf16>, vector<2x32x8xf32> -> vector<2x32x8xf32>
    "tpu.trace_stop"() : () -> ()
    %119 = vector.shape_cast %118 : vector<2x32x8xf32> to vector<64x8xf32>
    %120 = arith.truncf %119 : vector<64x8xf32> to vector<64x8xbf16>
    %c0_43 = arith.constant 0 : index
    %c16 = arith.constant 16 : index
    %c0_44 = arith.constant 0 : index
    %121 = vector.load %arg8[%c0_43, %c16, %c0_44] : memref<1x32x32xbf16, #tpu.memory_space<vmem>>, vector<1x8x32xbf16>
    %122 = vector.shape_cast %121 : vector<1x8x32xbf16> to vector<8x32xbf16>
    %cst_45 = arith.constant dense<0.000000e+00> : vector<64x32xf32>
    %123 = tpu.matmul %120, %122, %cst_45 {dimension_numbers = #tpu.dot_dimension_numbers<[1], [0], [0], [1], [0, 0, 1, 1], [], []>} : vector<64x8xbf16>, vector<8x32xbf16>, vector<64x32xf32> -> vector<64x32xf32>
    %124 = arith.addf %92, %123 : vector<64x32xf32>
    %125 = vector.extract_strided_slice %17 {offsets = [0, 24], sizes = [64, 8], strides = [1, 1]} : vector<64x64xf32> to vector<64x8xf32>
    %126 = arith.truncf %125 : vector<64x8xf32> to vector<64x8xbf16>
    %127 = vector.shape_cast %126 : vector<64x8xbf16> to vector<2x32x8xbf16>
    %128 = vector.extract_strided_slice %17 {offsets = [0, 56], sizes = [64, 8], strides = [1, 1]} : vector<64x64xf32> to vector<64x8xf32>
    %129 = arith.truncf %128 : vector<64x8xf32> to vector<64x8xbf16>
    %130 = vector.shape_cast %129 : vector<64x8xbf16> to vector<2x32x8xbf16>
    %131 = vector.extract_strided_slice %25 {offsets = [0, 24], sizes = [64, 8], strides = [1, 1]} : vector<64x32xf32> to vector<64x8xf32>
    %132 = arith.truncf %131 : vector<64x8xf32> to vector<64x8xbf16>
    %133 = vector.shape_cast %132 : vector<64x8xbf16> to vector<2x32x8xbf16>
    "tpu.trace_start"() <{level = 10 : i32, message = "bqd,bkd->bqk"}> : () -> ()
    %cst_46 = arith.constant dense<0.000000e+00> : vector<2x32x32xf32>
    %134 = tpu.matmul %127, %130, %cst_46 {dimension_numbers = #tpu.dot_dimension_numbers<[2], [2], [1], [1], [0, 0, 0, 1, 1, 1], [0], [0]>} : vector<2x32x8xbf16>, vector<2x32x8xbf16>, vector<2x32x32xf32> -> vector<2x32x32xf32>
    "tpu.trace_stop"() : () -> ()
    %cst_47 = arith.constant 0.353553385 : f32
    %135 = vector.broadcast %cst_47 : f32 to vector<2x32x32xf32>
    %136 = arith.mulf %134, %135 : vector<2x32x32xf32>
    %137 = vector.broadcast %27 : vector<2x1x32xf32> to vector<2x32x32xf32>
    %138 = arith.addf %136, %137 : vector<2x32x32xf32>
    %cst_48 = arith.constant dense<0xFF800000> : vector<2x32xf32>
    %139 = vector.multi_reduction <maximumf>, %138, %cst_48 [2] : vector<2x32x32xf32> to vector<2x32xf32>
    %140 = vector.shape_cast %139 : vector<2x32xf32> to vector<2x32x1xf32>
    %141 = vector.broadcast %140 : vector<2x32x1xf32> to vector<2x32x32xf32>
    %142 = arith.subf %138, %141 : vector<2x32x32xf32>
    %143 = math.exp %142 : vector<2x32x32xf32>
    %cst_49 = arith.constant dense<0.000000e+00> : vector<2x32xf32>
    %144 = vector.multi_reduction <add>, %143, %cst_49 [2] : vector<2x32x32xf32> to vector<2x32xf32>
    %145 = vector.shape_cast %144 : vector<2x32xf32> to vector<2x32x1xf32>
    %146 = tpu.reciprocal %145 {approx = true} : vector<2x32x1xf32> -> vector<2x32x1xf32>
    %147 = vector.broadcast %146 : vector<2x32x1xf32> to vector<2x32x32xf32>
    %148 = arith.mulf %143, %147 : vector<2x32x32xf32>
    %149 = arith.truncf %148 : vector<2x32x32xf32> to vector<2x32x32xbf16>
    "tpu.trace_start"() <{level = 10 : i32, message = "bqk,bkd->bqd"}> : () -> ()
    %cst_50 = arith.constant dense<0.000000e+00> : vector<2x32x8xf32>
    %150 = tpu.matmul %149, %133, %cst_50 {dimension_numbers = #tpu.dot_dimension_numbers<[2], [1], [1], [2], [0, 0, 0, 1, 1, 2], [0], [0]>} : vector<2x32x32xbf16>, vector<2x32x8xbf16>, vector<2x32x8xf32> -> vector<2x32x8xf32>
    "tpu.trace_stop"() : () -> ()
    %151 = vector.shape_cast %150 : vector<2x32x8xf32> to vector<64x8xf32>
    %152 = arith.truncf %151 : vector<64x8xf32> to vector<64x8xbf16>
    %c0_51 = arith.constant 0 : index
    %c24 = arith.constant 24 : index
    %c0_52 = arith.constant 0 : index
    %153 = vector.load %arg8[%c0_51, %c24, %c0_52] : memref<1x32x32xbf16, #tpu.memory_space<vmem>>, vector<1x8x32xbf16>
    %154 = vector.shape_cast %153 : vector<1x8x32xbf16> to vector<8x32xbf16>
    %cst_53 = arith.constant dense<0.000000e+00> : vector<64x32xf32>
    %155 = tpu.matmul %152, %154, %cst_53 {dimension_numbers = #tpu.dot_dimension_numbers<[1], [0], [0], [1], [0, 0, 1, 1], [], []>} : vector<64x8xbf16>, vector<8x32xbf16>, vector<64x32xf32> -> vector<64x32xf32>
    %156 = arith.addf %124, %155 : vector<64x32xf32>
    %c0_54 = arith.constant 0 : index
    %c0_55 = arith.constant 0 : index
    %c0_56 = arith.constant 0 : index
    %157 = vector.load %arg9[%c0_54, %c0_55, %c0_56] : memref<1x1x32xf32, #tpu.memory_space<vmem>>, vector<1x1x32xf32>
    %158 = vector.shape_cast %157 : vector<1x1x32xf32> to vector<1x32xf32>
    %159 = vector.broadcast %158 : vector<1x32xf32> to vector<64x32xf32>
    %160 = arith.addf %156, %159 : vector<64x32xf32>
    %161 = arith.addf %4, %160 : vector<64x32xf32>
    %c0_57 = arith.constant 0 : index
    %c0_58 = arith.constant 0 : index
    %c0_59 = arith.constant 0 : index
    %162 = vector.load %arg10[%c0_57, %c0_58, %c0_59] : memref<1x1x32xf32, #tpu.memory_space<vmem>>, vector<1x1x32xf32>
    %163 = vector.shape_cast %162 : vector<1x1x32xf32> to vector<1x32xf32>
    %c0_60 = arith.constant 0 : index
    %c0_61 = arith.constant 0 : index
    %c0_62 = arith.constant 0 : index
    %164 = vector.load %arg11[%c0_60, %c0_61, %c0_62] : memref<1x1x32xf32, #tpu.memory_space<vmem>>, vector<1x1x32xf32>
    %165 = vector.shape_cast %164 : vector<1x1x32xf32> to vector<1x32xf32>
    %cst_63 = arith.constant dense<0.000000e+00> : vector<64xf32>
    %166 = vector.multi_reduction <add>, %161, %cst_63 [1] : vector<64x32xf32> to vector<64xf32>
    %167 = vector.shape_cast %166 : vector<64xf32> to vector<64x1xf32>
    %cst_64 = arith.constant 3.200000e+01 : f32
    %168 = vector.broadcast %cst_64 : f32 to vector<64x1xf32>
    %169 = arith.divf %167, %168 : vector<64x1xf32>
    %170 = vector.broadcast %169 : vector<64x1xf32> to vector<64x32xf32>
    %171 = arith.subf %161, %170 : vector<64x32xf32>
    %172 = arith.mulf %171, %171 : vector<64x32xf32>
    %cst_65 = arith.constant dense<0.000000e+00> : vector<64xf32>
    %173 = vector.multi_reduction <add>, %172, %cst_65 [1] : vector<64x32xf32> to vector<64xf32>
    %174 = vector.shape_cast %173 : vector<64xf32> to vector<64x1xf32>
    %cst_66 = arith.constant 3.200000e+01 : f32
    %175 = vector.broadcast %cst_66 : f32 to vector<64x1xf32>
    %176 = arith.divf %174, %175 : vector<64x1xf32>
    %cst_67 = arith.constant 9.99999974E-6 : f32
    %177 = vector.broadcast %cst_67 : f32 to vector<64x1xf32>
    %178 = arith.addf %176, %177 : vector<64x1xf32>
    %179 = math.rsqrt %178 : vector<64x1xf32>
    %180 = vector.broadcast %179 : vector<64x1xf32> to vector<64x32xf32>
    %181 = arith.mulf %171, %180 : vector<64x32xf32>
    %182 = vector.broadcast %163 : vector<1x32xf32> to vector<64x32xf32>
    %183 = arith.mulf %181, %182 : vector<64x32xf32>
    %184 = vector.broadcast %165 : vector<1x32xf32> to vector<64x32xf32>
    %185 = arith.addf %183, %184 : vector<64x32xf32>
    %186 = arith.truncf %185 : vector<64x32xf32> to vector<64x32xbf16>
    %c0_68 = arith.constant 0 : index
    %c0_69 = arith.constant 0 : index
    %c0_70 = arith.constant 0 : index
    %187 = vector.load %arg12[%c0_68, %c0_69, %c0_70] : memref<1x32x64xbf16, #tpu.memory_space<vmem>>, vector<1x32x64xbf16>
    %188 = vector.shape_cast %187 : vector<1x32x64xbf16> to vector<32x64xbf16>
    %cst_71 = arith.constant dense<0.000000e+00> : vector<64x64xf32>
    %189 = tpu.matmul %186, %188, %cst_71 {dimension_numbers = #tpu.dot_dimension_numbers<[1], [0], [0], [1], [0, 0, 1, 1], [], []>} : vector<64x32xbf16>, vector<32x64xbf16>, vector<64x64xf32> -> vector<64x64xf32>
    %c0_72 = arith.constant 0 : index
    %c0_73 = arith.constant 0 : index
    %c0_74 = arith.constant 0 : index
    %190 = vector.load %arg13[%c0_72, %c0_73, %c0_74] : memref<1x1x64xf32, #tpu.memory_space<vmem>>, vector<1x1x64xf32>
    %191 = vector.shape_cast %190 : vector<1x1x64xf32> to vector<1x64xf32>
    %192 = vector.broadcast %191 : vector<1x64xf32> to vector<64x64xf32>
    %193 = arith.addf %189, %192 : vector<64x64xf32>
    %cst_75 = arith.constant 0.000000e+00 : f32
    %194 = vector.broadcast %cst_75 : f32 to vector<64x64xf32>
    %195 = arith.maximumf %193, %194 : vector<64x64xf32>
    %196 = arith.truncf %195 : vector<64x64xf32> to vector<64x64xbf16>
    %c0_76 = arith.constant 0 : index
    %c0_77 = arith.constant 0 : index
    %c0_78 = arith.constant 0 : index
    %197 = vector.load %arg14[%c0_76, %c0_77, %c0_78] : memref<1x64x32xbf16, #tpu.memory_space<vmem>>, vector<1x64x32xbf16>
    %198 = vector.shape_cast %197 : vector<1x64x32xbf16> to vector<64x32xbf16>
    %cst_79 = arith.constant dense<0.000000e+00> : vector<64x32xf32>
    %199 = tpu.matmul %196, %198, %cst_79 {dimension_numbers = #tpu.dot_dimension_numbers<[1], [0], [0], [1], [0, 0, 1, 1], [], []>} : vector<64x64xbf16>, vector<64x32xbf16>, vector<64x32xf32> -> vector<64x32xf32>
    %c0_80 = arith.constant 0 : index
    %c0_81 = arith.constant 0 : index
    %c0_82 = arith.constant 0 : index
    %200 = vector.load %arg15[%c0_80, %c0_81, %c0_82] : memref<1x1x32xf32, #tpu.memory_space<vmem>>, vector<1x1x32xf32>
    %201 = vector.shape_cast %200 : vector<1x1x32xf32> to vector<1x32xf32>
    %202 = vector.broadcast %201 : vector<1x32xf32> to vector<64x32xf32>
    %203 = arith.addf %199, %202 : vector<64x32xf32>
    %204 = arith.addf %185, %203 : vector<64x32xf32>
    %c0_83 = arith.constant 0 : index
    %c0_84 = arith.constant 0 : index
    %c0_85 = arith.constant 0 : index
    %205 = vector.load %arg16[%c0_83, %c0_84, %c0_85] : memref<1x1x32xf32, #tpu.memory_space<vmem>>, vector<1x1x32xf32>
    %206 = vector.shape_cast %205 : vector<1x1x32xf32> to vector<1x32xf32>
    %c0_86 = arith.constant 0 : index
    %c0_87 = arith.constant 0 : index
    %c0_88 = arith.constant 0 : index
    %207 = vector.load %arg17[%c0_86, %c0_87, %c0_88] : memref<1x1x32xf32, #tpu.memory_space<vmem>>, vector<1x1x32xf32>
    %208 = vector.shape_cast %207 : vector<1x1x32xf32> to vector<1x32xf32>
    %cst_89 = arith.constant dense<0.000000e+00> : vector<64xf32>
    %209 = vector.multi_reduction <add>, %204, %cst_89 [1] : vector<64x32xf32> to vector<64xf32>
    %210 = vector.shape_cast %209 : vector<64xf32> to vector<64x1xf32>
    %cst_90 = arith.constant 3.200000e+01 : f32
    %211 = vector.broadcast %cst_90 : f32 to vector<64x1xf32>
    %212 = arith.divf %210, %211 : vector<64x1xf32>
    %213 = vector.broadcast %212 : vector<64x1xf32> to vector<64x32xf32>
    %214 = arith.subf %204, %213 : vector<64x32xf32>
    %215 = arith.mulf %214, %214 : vector<64x32xf32>
    %cst_91 = arith.constant dense<0.000000e+00> : vector<64xf32>
    %216 = vector.multi_reduction <add>, %215, %cst_91 [1] : vector<64x32xf32> to vector<64xf32>
    %217 = vector.shape_cast %216 : vector<64xf32> to vector<64x1xf32>
    %cst_92 = arith.constant 3.200000e+01 : f32
    %218 = vector.broadcast %cst_92 : f32 to vector<64x1xf32>
    %219 = arith.divf %217, %218 : vector<64x1xf32>
    %cst_93 = arith.constant 9.99999974E-6 : f32
    %220 = vector.broadcast %cst_93 : f32 to vector<64x1xf32>
    %221 = arith.addf %219, %220 : vector<64x1xf32>
    %222 = math.rsqrt %221 : vector<64x1xf32>
    %223 = vector.broadcast %222 : vector<64x1xf32> to vector<64x32xf32>
    %224 = arith.mulf %214, %223 : vector<64x32xf32>
    %225 = vector.broadcast %206 : vector<1x32xf32> to vector<64x32xf32>
    %226 = arith.mulf %224, %225 : vector<64x32xf32>
    %227 = vector.broadcast %208 : vector<1x32xf32> to vector<64x32xf32>
    %228 = arith.addf %226, %227 : vector<64x32xf32>
    %229 = vector.shape_cast %228 : vector<64x32xf32> to vector<2x32x32xf32>
    %c0_94 = arith.constant 0 : index
    %c0_95 = arith.constant 0 : index
    %c0_96 = arith.constant 0 : index
    %230 = vector.load %arg25[%c0_94, %c0_95, %c0_96] : memref<2x32x32xf32, #tpu.memory_space<vmem>>, vector<2x32x32xf32>
    tpu.vector_store %arg25[%c0_94, %c0_95, %c0_96], %229 {strides = array<i32>} : memref<2x32x32xf32, #tpu.memory_space<vmem>>, vector<2x32x32xf32>,
    %c1_i32 = arith.constant 1 : i32
    %231 = arith.cmpi eq, %arg0, %c1_i32 : i32
    %232 = arith.extui %231 : i1 to i32
    %c0_i32_97 = arith.constant 0 : i32
    %233 = arith.cmpi ne, %232, %c0_i32_97 : i32
    scf.if %233 {
      %234 = vector.shape_cast %228 : vector<64x32xf32> to vector<2x32x32xf32>
      %235 = vector.extract_strided_slice %234 {offsets = [0, 0, 0], sizes = [2, 1, 32], strides = [1, 1, 1]} : vector<2x32x32xf32> to vector<2x1x32xf32>
      %236 = vector.shape_cast %235 : vector<2x1x32xf32> to vector<2x32xf32>
      %237 = arith.truncf %236 : vector<2x32xf32> to vector<2x32xbf16>
      %c0_98 = arith.constant 0 : index
      %c0_99 = arith.constant 0 : index
      %238 = vector.load %arg18[%c0_98, %c0_99] : memref<32x32xbf16, #tpu.memory_space<vmem>>, vector<32x32xbf16>
      %cst_100 = arith.constant dense<0.000000e+00> : vector<2x32xf32>
      %239 = tpu.matmul %237, %238, %cst_100 {dimension_numbers = #tpu.dot_dimension_numbers<[1], [0], [0], [1], [0, 0, 1, 1], [], []>} : vector<2x32xbf16>, vector<32x32xbf16>, vector<2x32xf32> -> vector<2x32xf32>
      %c0_101 = arith.constant 0 : index
      %c0_102 = arith.constant 0 : index
      %240 = vector.load %arg19[%c0_101, %c0_102] : memref<1x32xf32, #tpu.memory_space<vmem>>, vector<1x32xf32>
      %241 = vector.broadcast %240 : vector<1x32xf32> to vector<2x32xf32>
      %242 = arith.addf %239, %241 : vector<2x32xf32>
      %cst_103 = arith.constant 0.000000e+00 : f32
      %243 = vector.broadcast %cst_103 : f32 to vector<2x32xf32>
      %244 = arith.maximumf %242, %243 : vector<2x32xf32>
      %245 = arith.truncf %244 : vector<2x32xf32> to vector<2x32xbf16>
      %c0_104 = arith.constant 0 : index
      %c0_105 = arith.constant 0 : index
      %246 = vector.load %arg20[%c0_104, %c0_105] : memref<32x32xbf16, #tpu.memory_space<vmem>>, vector<32x32xbf16>
      %cst_106 = arith.constant dense<0.000000e+00> : vector<2x32xf32>
      %247 = tpu.matmul %245, %246, %cst_106 {dimension_numbers = #tpu.dot_dimension_numbers<[1], [0], [0], [1], [0, 0, 1, 1], [], []>} : vector<2x32xbf16>, vector<32x32xbf16>, vector<2x32xf32> -> vector<2x32xf32>
      %c0_107 = arith.constant 0 : index
      %c0_108 = arith.constant 0 : index
      %248 = vector.load %arg21[%c0_107, %c0_108] : memref<1x32xf32, #tpu.memory_space<vmem>>, vector<1x32xf32>
      %249 = vector.broadcast %248 : vector<1x32xf32> to vector<2x32xf32>
      %250 = arith.addf %247, %249 : vector<2x32xf32>
      %cst_109 = arith.constant 0.000000e+00 : f32
      %251 = vector.broadcast %cst_109 : f32 to vector<2x32xf32>
      %252 = arith.maximumf %250, %251 : vector<2x32xf32>
      %253 = arith.truncf %252 : vector<2x32xf32> to vector<2x32xbf16>
      %c0_110 = arith.constant 0 : index
      %c0_111 = arith.constant 0 : index
      %254 = vector.load %arg22[%c0_110, %c0_111] : memref<32x4xbf16, #tpu.memory_space<vmem>>, vector<32x4xbf16>
      %cst_112 = arith.constant dense<0.000000e+00> : vector<2x4xf32>
      %255 = tpu.matmul %253, %254, %cst_112 {dimension_numbers = #tpu.dot_dimension_numbers<[1], [0], [0], [1], [0, 0, 1, 1], [], []>} : vector<2x32xbf16>, vector<32x4xbf16>, vector<2x4xf32> -> vector<2x4xf32>
      %c0_113 = arith.constant 0 : index
      %c0_114 = arith.constant 0 : index
      %256 = vector.load %arg23[%c0_113, %c0_114] : memref<1x4xf32, #tpu.memory_space<vmem>>, vector<1x4xf32>
      %257 = vector.broadcast %256 : vector<1x4xf32> to vector<2x4xf32>
      %258 = arith.addf %255, %257 : vector<2x4xf32>
      %cst_115 = arith.constant 0.000000e+00 : f32
      %259 = vector.broadcast %cst_115 : f32 to vector<2x4xf32>
      %260 = arith.subf %259, %258 : vector<2x4xf32>
      %261 = math.exp %260 : vector<2x4xf32>
      %cst_116 = arith.constant 1.000000e+00 : f32
      %262 = vector.broadcast %cst_116 : f32 to vector<2x4xf32>
      %263 = arith.addf %262, %261 : vector<2x4xf32>
      %cst_117 = arith.constant 1.000000e+00 : f32
      %264 = vector.broadcast %cst_117 : f32 to vector<2x4xf32>
      %265 = arith.divf %264, %263 : vector<2x4xf32>
      %c0_118 = arith.constant 0 : index
      %c0_119 = arith.constant 0 : index
      %266 = vector.load %arg24[%c0_118, %c0_119] : memref<2x4xf32, #tpu.memory_space<vmem>>, vector<2x4xf32>
      tpu.vector_store %arg24[%c0_118, %c0_119], %265 {strides = array<i32>} : memref<2x4xf32, #tpu.memory_space<vmem>>, vector<2x4xf32>,
    } else {
    }
    return
  }
  func.func @transform_0(%arg0: i32) -> (i32, i32, i32) {
    %c0_i32 = arith.constant 0 : i32
    %c0_i32_0 = arith.constant 0 : i32
    %c0_i32_1 = arith.constant 0 : i32
    %c0_i32_2 = arith.constant 0 : i32
    return %c0_i32, %c0_i32_0, %c0_i32_1 : i32, i32, i32
  }
  func.func @transform_1(%arg0: i32) -> (i32, i32) {
    %c0_i32 = arith.constant 0 : i32
    %c0_i32_0 = arith.constant 0 : i32
    %c0_i32_1 = arith.constant 0 : i32
    return %c0_i32, %c0_i32_0 : i32, i32
  }
  func.func @transform_2(%arg0: i32) -> (i32, i32) {
    %c0_i32 = arith.constant 0 : i32
    %c0_i32_0 = arith.constant 0 : i32
    %c0_i32_1 = arith.constant 0 : i32
    return %c0_i32, %c0_i32_0 : i32, i32
  }
  func.func @transform_3(%arg0: i32) -> (i32, i32, i32) {
    %c0_i32 = arith.constant 0 : i32
    %c0_i32_0 = arith.constant 0 : i32
    %c0_i32_1 = arith.constant 0 : i32
    return %arg0, %c0_i32, %c0_i32_0 : i32, i32, i32
  }
  func.func @transform_4(%arg0: i32) -> (i32, i32, i32) {
    %c0_i32 = arith.constant 0 : i32
    %c0_i32_0 = arith.constant 0 : i32
    %c0_i32_1 = arith.constant 0 : i32
    return %arg0, %c0_i32, %c0_i32_0 : i32, i32, i32
  }
  func.func @transform_5(%arg0: i32) -> (i32, i32, i32) {
    %c0_i32 = arith.constant 0 : i32
    %c0_i32_0 = arith.constant 0 : i32
    %c0_i32_1 = arith.constant 0 : i32
    return %arg0, %c0_i32, %c0_i32_0 : i32, i32, i32
  }
  func.func @transform_6(%arg0: i32) -> (i32, i32, i32) {
    %c0_i32 = arith.constant 0 : i32
    %c0_i32_0 = arith.constant 0 : i32
    %c0_i32_1 = arith.constant 0 : i32
    return %arg0, %c0_i32, %c0_i32_0 : i32, i32, i32
  }
  func.func @transform_7(%arg0: i32) -> (i32, i32, i32) {
    %c0_i32 = arith.constant 0 : i32
    %c0_i32_0 = arith.constant 0 : i32
    %c0_i32_1 = arith.constant 0 : i32
    return %arg0, %c0_i32, %c0_i32_0 : i32, i32, i32
  }
  func.func @transform_8(%arg0: i32) -> (i32, i32, i32) {
    %c0_i32 = arith.constant 0 : i32
    %c0_i32_0 = arith.constant 0 : i32
    %c0_i32_1 = arith.constant 0 : i32
    return %arg0, %c0_i32, %c0_i32_0 : i32, i32, i32
  }
  func.func @transform_9(%arg0: i32) -> (i32, i32, i32) {
    %c0_i32 = arith.constant 0 : i32
    %c0_i32_0 = arith.constant 0 : i32
    %c0_i32_1 = arith.constant 0 : i32
    return %arg0, %c0_i32, %c0_i32_0 : i32, i32, i32
  }
  func.func @transform_10(%arg0: i32) -> (i32, i32, i32) {
    %c0_i32 = arith.constant 0 : i32
    %c0_i32_0 = arith.constant 0 : i32
    %c0_i32_1 = arith.constant 0 : i32
    return %arg0, %c0_i32, %c0_i32_0 : i32, i32, i32
  }
  func.func @transform_11(%arg0: i32) -> (i32, i32, i32) {
    %c0_i32 = arith.constant 0 : i32
    %c0_i32_0 = arith.constant 0 : i32
    %c0_i32_1 = arith.constant 0 : i32
    return %arg0, %c0_i32, %c0_i32_0 : i32, i32, i32
  }
  func.func @transform_12(%arg0: i32) -> (i32, i32, i32) {
    %c0_i32 = arith.constant 0 : i32
    %c0_i32_0 = arith.constant 0 : i32
    %c0_i32_1 = arith.constant 0 : i32
    return %arg0, %c0_i32, %c0_i32_0 : i32, i32, i32
  }
  func.func @transform_13(%arg0: i32) -> (i32, i32, i32) {
    %c0_i32 = arith.constant 0 : i32
    %c0_i32_0 = arith.constant 0 : i32
    %c0_i32_1 = arith.constant 0 : i32
    return %arg0, %c0_i32, %c0_i32_0 : i32, i32, i32
  }
  func.func @transform_14(%arg0: i32) -> (i32, i32, i32) {
    %c0_i32 = arith.constant 0 : i32
    %c0_i32_0 = arith.constant 0 : i32
    %c0_i32_1 = arith.constant 0 : i32
    return %arg0, %c0_i32, %c0_i32_0 : i32, i32, i32
  }
  func.func @transform_15(%arg0: i32) -> (i32, i32, i32) {
    %c0_i32 = arith.constant 0 : i32
    %c0_i32_0 = arith.constant 0 : i32
    %c0_i32_1 = arith.constant 0 : i32
    return %arg0, %c0_i32, %c0_i32_0 : i32, i32, i32
  }
  func.func @transform_16(%arg0: i32) -> (i32, i32, i32) {
    %c0_i32 = arith.constant 0 : i32
    %c0_i32_0 = arith.constant 0 : i32
    %c0_i32_1 = arith.constant 0 : i32
    return %arg0, %c0_i32, %c0_i32_0 : i32, i32, i32
  }
  func.func @transform_17(%arg0: i32) -> (i32, i32) {
    %c0_i32 = arith.constant 0 : i32
    %c0_i32_0 = arith.constant 0 : i32
    %c0_i32_1 = arith.constant 0 : i32
    return %c0_i32, %c0_i32_0 : i32, i32
  }
  func.func @transform_18(%arg0: i32) -> (i32, i32) {
    %c0_i32 = arith.constant 0 : i32
    %c0_i32_0 = arith.constant 0 : i32
    %c0_i32_1 = arith.constant 0 : i32
    return %c0_i32, %c0_i32_0 : i32, i32
  }
  func.func @transform_19(%arg0: i32) -> (i32, i32) {
    %c0_i32 = arith.constant 0 : i32
    %c0_i32_0 = arith.constant 0 : i32
    %c0_i32_1 = arith.constant 0 : i32
    return %c0_i32, %c0_i32_0 : i32, i32
  }
  func.func @transform_20(%arg0: i32) -> (i32, i32) {
    %c0_i32 = arith.constant 0 : i32
    %c0_i32_0 = arith.constant 0 : i32
    %c0_i32_1 = arith.constant 0 : i32
    return %c0_i32, %c0_i32_0 : i32, i32
  }
  func.func @transform_21(%arg0: i32) -> (i32, i32) {
    %c0_i32 = arith.constant 0 : i32
    %c0_i32_0 = arith.constant 0 : i32
    %c0_i32_1 = arith.constant 0 : i32
    return %c0_i32, %c0_i32_0 : i32, i32
  }
  func.func @transform_22(%arg0: i32) -> (i32, i32) {
    %c0_i32 = arith.constant 0 : i32
    %c0_i32_0 = arith.constant 0 : i32
    %c0_i32_1 = arith.constant 0 : i32
    return %c0_i32, %c0_i32_0 : i32, i32
  }
  func.func @transform_23(%arg0: i32) -> (i32, i32) {
    %c0_i32 = arith.constant 0 : i32
    %c0_i32_0 = arith.constant 0 : i32
    %c0_i32_1 = arith.constant 0 : i32
    return %c0_i32, %c0_i32_0 : i32, i32
  }
}

</mosaic_0001>

<llo_original>
// kernel: transvg_forward.2
$region0: #{transvg_forward.2}
  #allocation0 [shape = 'u32[]', space=smem, size = 0x4, offset = 0x4, fixed_abs, tag = 'smem constant byte address 0x4 - core index']
  #allocation1 [shape = 'u32[72,128]{1,0:T(1,128)}', space=vmem, size = 0x9000, scoped, tag = 'internal scratch']
  %s0 = inlined_call_operand.vmem [shape: f32[32,64], index: 0, kind: input, shape index: {}]
  %s1 = inlined_call_operand.vmem [shape: bf16[64,32], index: 1, kind: input, shape index: {}]
  %s2 = inlined_call_operand.vmem [shape: f32[1,32], index: 2, kind: input, shape index: {}]
  %s3 = inlined_call_operand.vmem [shape: f32[16,48], index: 3, kind: input, shape index: {}]
  %s4 = inlined_call_operand.vmem [shape: bf16[48,32], index: 4, kind: input, shape index: {}]
  %s5 = inlined_call_operand.vmem [shape: f32[1,32], index: 5, kind: input, shape index: {}]
  %s6 = inlined_call_operand.vmem [shape: f32[32,32], index: 6, kind: output, shape index: {0}]
  %s7 = inlined_call_operand.vmem [shape: f32[16,32], index: 7, kind: output, shape index: {1}]
  %8 = xla_tuple %s6, %s7
  %s9 = sld [smem:[#allocation0]]
  $region42: #{transvg_forward.2} parent=0
    _
  %s11 = ssub.s32 1, %s9
  %s12 = scalar_select 0, %s11, %s9
  // Predicated region
  $region2: #{transvg_forward.2} parent=0 // pred_check
    _
  $region3: #{transvg_forward.2} parent=0 // pred_check_branch
    %14 = sbr.rel (0) target = $region5
  $region4: #{transvg_forward.2} parent=0 // pred_region
    _
  $region5: #{transvg_forward.2} parent=0 // pred_fallthru
    _
  // Predicated region
  $region6: #{transvg_forward.2} parent=0 // pred_check
    _
  $region7: #{transvg_forward.2} parent=0 // pred_check_branch
    %16 = sbr.rel (0) target = $region9
  $region8: #{transvg_forward.2} parent=0 // pred_region
    _
  $region9: #{transvg_forward.2} parent=0 // pred_fallthru
    _
  // Predicated region
  $region10: #{transvg_forward.2} parent=0 // pred_check
    _
  $region11: #{transvg_forward.2} parent=0 // pred_check_branch
    %18 = sbr.rel (0) target = $region13
  $region12: #{transvg_forward.2} parent=0 // pred_region
    _
  $region13: #{transvg_forward.2} parent=0 // pred_fallthru
    _
  // Predicated region
  $region14: #{transvg_forward.2} parent=0 // pred_check
    _
  $region15: #{transvg_forward.2} parent=0 // pred_check_branch
    %20 = sbr.rel (0) target = $region17
  $region16: #{transvg_forward.2} parent=0 // pred_region
    _
  $region17: #{transvg_forward.2} parent=0 // pred_fallthru
    _
  // Predicated region
  $region18: #{transvg_forward.2} parent=0 // pred_check
    _
  $region19: #{transvg_forward.2} parent=0 // pred_check_branch
    %22 = sbr.rel (0) target = $region21
  $region20: #{transvg_forward.2} parent=0 // pred_region
    _
  $region21: #{transvg_forward.2} parent=0 // pred_fallthru
    _
  // Predicated region
  $region22: #{transvg_forward.2} parent=0 // pred_check
    _
  $region23: #{transvg_forward.2} parent=0 // pred_check_branch
    %24 = sbr.rel (0) target = $region25
  $region24: #{transvg_forward.2} parent=0 // pred_region
    _
  $region25: #{transvg_forward.2} parent=0 // pred_fallthru
    _
  %v26 = vld [vmem:[%s0] sm:$0xff]
  %v27 = vld [vmem:[%s0 + $0x8] sm:$0xff]
  %v28 = vld [vmem:[%s0 + $0x10] sm:$0xff]
  %v29 = vld [vmem:[%s0 + $0x18] sm:$0xff]
  %v30 = vpack.c.bf16 %v27, %v26
  %v31 = vpack.c.bf16 %v29, %v28
  %v32 = vld [vmem:[%s1] sm:$0xf]
  %v33 = vld [vmem:[%s1 + $0x4] sm:$0xf]
  %v34 = vld [vmem:[%s1 + $0x8] sm:$0xf]
  %v35 = vld [vmem:[%s1 + $0xc] sm:$0xf]
  %v36 = vld [vmem:[%s1 + $0x10] sm:$0xf]
  %v37 = vld [vmem:[%s1 + $0x14] sm:$0xf]
  %v38 = vld [vmem:[%s1 + $0x18] sm:$0xf]
  %v39 = vld [vmem:[%s1 + $0x1c] sm:$0xf]
  %v40 = vld [vmem:[%s2] sm:$0x1]
  %v42 = vperm.slane %v40, 0
  %v52 = vunpack.c.l.b16 %v32
  %v53 = vunpack.c.l.b16 %v33
  %v54 = vunpack.c.l.b16 %v34
  %v55 = vunpack.c.l.b16 %v35
  %v56 = vunpack.c.l.b16 %v36
  %v57 = vunpack.c.l.b16 %v37
  %v58 = vunpack.c.l.b16 %v38
  %v59 = vunpack.c.l.b16 %v39
  %v60 = vpack.c.b16 %v53, %v52
  %v61 = vpack.c.b16 %v55, %v54
  %v62 = vpack.c.b16 %v57, %v56
  %v63 = vpack.c.b16 %v59, %v58
  %vm68 = vcmask 523264
  %v70 = vsel %vm68, %v30, 0
  %v73 = vsel %vm68, %v31, 0
  %75 = vmatpush.bf16.msra.mxu0 0
  %76 = vmatpush.bf16.msra.mxu0 0
  %77 = vmatpush.bf16.msra.mxu0 0
  %78 = vmatpush.bf16.msra.mxu0 0
  %79 = vmatpush.bf16.msra.mxu0 %v63
  %80 = vmatpush.bf16.msra.mxu0 %v62
  %81 = vmatpush.bf16.msra.mxu0 %v61
  %82 = vmatpush.bf16.msra.mxu0 %v60
  %83 = vmatmul.bf16.gmra.mxu0 %v70
  %v84 = vpop.f32.mrf.mxu0
  %v85 = vadd.f32 %v42, %v84
  %v86 = vpop.f32.mrf.mxu0
  %v87 = vadd.f32 %v42, %v86
  %88 = vmatmul.bf16.gmra.mxu0 %v73
  %v89 = vpop.f32.mrf.mxu0
  %v90 = vadd.f32 %v42, %v89
  %v91 = vpop.f32.mrf.mxu0
  %v92 = vadd.f32 %v42, %v91
  %93 = vdwg.mxu0
  %vm94 = vcmask 261120
  %95 = vst.msk [vmem:[%s6] sm:$0xff] %vm94, %v85
  %96 = vst.msk [vmem:[%s6 + $0x8] sm:$0xff] %vm94, %v87
  %97 = vst.msk [vmem:[%s6 + $0x10] sm:$0xff] %vm94, %v90
  %98 = vst.msk [vmem:[%s6 + $0x18] sm:$0xff] %vm94, %v92
  %v99 = vld [vmem:[%s3] sm:$0xff]
  %v100 = vld [vmem:[%s3 + $0x8] sm:$0xff]
  %v101 = vpack.c.bf16 %v100, %v99
  %v102 = vld [vmem:[%s4] sm:$0xf]
  %v103 = vld [vmem:[%s4 + $0x4] sm:$0xf]
  %v104 = vld [vmem:[%s4 + $0x8] sm:$0xf]
  %v105 = vld [vmem:[%s4 + $0xc] sm:$0xf]
  %v106 = vld [vmem:[%s4 + $0x10] sm:$0xf]
  %v107 = vld [vmem:[%s4 + $0x14] sm:$0xf]
  %v108 = vld [vmem:[%s5] sm:$0x1]
  %v110 = vperm.slane %v108, 0
  %v118 = vunpack.c.l.b16 %v102
  %v119 = vunpack.c.l.b16 %v103
  %v120 = vunpack.c.l.b16 %v104
  %v121 = vunpack.c.l.b16 %v105
  %v122 = vunpack.c.l.b16 %v106
  %v123 = vunpack.c.l.b16 %v107
  %v124 = vpack.c.b16 %v119, %v118
  %v125 = vpack.c.b16 %v121, %v120
  %v126 = vpack.c.b16 %v123, %v122
  %vm130 = vcmask 392192
  %v132 = vsel %vm130, %v101, 0
  %134 = vmatpush.bf16.msra.mxu0 0
  %135 = vmatpush.bf16.msra.mxu0 0
  %136 = vmatpush.bf16.msra.mxu0 0
  %137 = vmatpush.bf16.msra.mxu0 0
  %138 = vmatpush.bf16.msra.mxu0 0
  %139 = vmatpush.bf16.msra.mxu0 %v126
  %140 = vmatpush.bf16.msra.mxu0 %v125
  %141 = vmatpush.bf16.msra.mxu0 %v124
  %142 = vmatmul.bf16.gmra.mxu0 %v132
  %v143 = vpop.f32.mrf.mxu0
  %v144 = vadd.f32 %v110, %v143
  %v145 = vpop.f32.mrf.mxu0
  %v146 = vadd.f32 %v110, %v145
  %147 = vdwg.mxu0
  %148 = vst.msk [vmem:[%s7] sm:$0xff] %vm94, %v144
  %149 = vst.msk [vmem:[%s7 + $0x8] sm:$0xff] %vm94, %v146
  // Predicated region
  $region26: #{transvg_forward.2} parent=0 // pred_check
    _
  $region27: #{transvg_forward.2} parent=0 // pred_check_branch
    %151 = sbr.rel (0) target = $region29
  $region28: #{transvg_forward.2} parent=0 // pred_region
    _
  $region29: #{transvg_forward.2} parent=0 // pred_fallthru
    _
  // Predicated region
  $region30: #{transvg_forward.2} parent=0 // pred_check
    _
  $region31: #{transvg_forward.2} parent=0 // pred_check_branch
    %153 = sbr.rel (0) target = $region33
  $region32: #{transvg_forward.2} parent=0 // pred_region
    _
  $region33: #{transvg_forward.2} parent=0 // pred_fallthru
    _
  // Predicated region
  $region34: #{transvg_forward.2} parent=0 // pred_check
    _
  $region35: #{transvg_forward.2} parent=0 // pred_check_branch
    %155 = sbr.rel (0) target = $region37
  $region36: #{transvg_forward.2} parent=0 // pred_region
    _
  $region37: #{transvg_forward.2} parent=0 // pred_fallthru
    _
  // Predicated region
  $region38: #{transvg_forward.2} parent=0 // pred_check
    _
  $region39: #{transvg_forward.2} parent=0 // pred_check_branch
    %157 = sbr.rel (0) target = $region41
  $region40: #{transvg_forward.2} parent=0 // pred_region
    _
  $region41: #{transvg_forward.2} parent=0 // pred_fallthru
    _

// kernel: transvg_forward.3
$region0: #{transvg_forward.3}
  #allocation0 [shape = 'u32[]', space=smem, size = 0x4, offset = 0x4, fixed_abs, tag = 'smem constant byte address 0x4 - core index']
  #allocation1 [shape = 'u32[72,128]{1,0:T(1,128)}', space=vmem, size = 0x9000, scoped, tag = 'internal scratch']
  #allocation2 [shape = 'f32[2,32,32]{2,1,0:T(8,128)}', space=vmem, size = 0x8000, scoped, tag = 'scratch operand']
  %s0 = inlined_call_operand.vmem [shape: f32[2,32,32], index: 0, kind: input, shape index: {}]
  %s1 = inlined_call_operand.vmem [shape: f32[2,32], index: 1, kind: input, shape index: {}]
  %s2 = inlined_call_operand.vmem [shape: f32[32,32], index: 2, kind: input, shape index: {}]
  %s3 = inlined_call_operand.vmem [shape: bf16[2,32,64], index: 3, kind: input, shape index: {}]
  %s4 = inlined_call_operand.vmem [shape: f32[2,1,64], index: 4, kind: input, shape index: {}]
  %s5 = inlined_call_operand.vmem [shape: bf16[2,32,32], index: 5, kind: input, shape index: {}]
  %s6 = inlined_call_operand.vmem [shape: f32[2,1,32], index: 6, kind: input, shape index: {}]
  %s7 = inlined_call_operand.vmem [shape: bf16[2,32,32], index: 7, kind: input, shape index: {}]
  %s8 = inlined_call_operand.vmem [shape: f32[2,1,32], index: 8, kind: input, shape index: {}]
  %s9 = inlined_call_operand.vmem [shape: f32[2,1,32], index: 9, kind: input, shape index: {}]
  %s10 = inlined_call_operand.vmem [shape: f32[2,1,32], index: 10, kind: input, shape index: {}]
  %s11 = inlined_call_operand.vmem [shape: bf16[2,32,64], index: 11, kind: input, shape index: {}]
  %s12 = inlined_call_operand.vmem [shape: f32[2,1,64], index: 12, kind: input, shape index: {}]
  %s13 = inlined_call_operand.vmem [shape: bf16[2,64,32], index: 13, kind: input, shape index: {}]
  %s14 = inlined_call_operand.vmem [shape: f32[2,1,32], index: 14, kind: input, shape index: {}]
  %s15 = inlined_call_operand.vmem [shape: f32[2,1,32], index: 15, kind: input, shape index: {}]
  %s16 = inlined_call_operand.vmem [shape: f32[2,1,32], index: 16, kind: input, shape index: {}]
  %s17 = inlined_call_operand.vmem [shape: bf16[32,32], index: 17, kind: input, shape index: {}]
  %s18 = inlined_call_operand.vmem [shape: f32[1,32], index: 18, kind: input, shape index: {}]
  %s19 = inlined_call_operand.vmem [shape: bf16[32,32], index: 19, kind: input, shape index: {}]
  %s20 = inlined_call_operand.vmem [shape: f32[1,32], index: 20, kind: input, shape index: {}]
  %s21 = inlined_call_operand.vmem [shape: bf16[32,4], index: 21, kind: input, shape index: {}]
  %s22 = inlined_call_operand.vmem [shape: f32[1,4], index: 22, kind: input, shape index: {}]
  %s23 = inlined_call_operand.hbm [shape: f32[2,4], index: 23, kind: output, shape index: {}]
  %s24 = sld [smem:[#allocation0]]
  $region133: #{transvg_forward.3} parent=0
    _
  %s26 = ssub.s32 1, %s24
  %s27 = scalar_select 0, %s26, %s24
  $region1: #{transvg_forward.3} parent=0
    #allocation3 [shape = 'u8[1024]{0}', space=vmem, size = 0x400, scoped, tag = 'output window, operand 0, single buffered']
    #allocation4 [shape = 's32[2]{0}', space=sflag, size = 0x8, scoped, tag = 'scoped memory for transvg_forward.3']
    %28 = vsyncpa [#allocation4], 0
    loop: start=0, step=1, limit=4
    $region2: #{transvg_forward.3} parent=1 // loop_pre_header
      _
    $region3: #{transvg_forward.3} parent=1 // loop_header
      %s30 = sphi 0, %s34
      %p31 = scmp.ge.s32.totalorder %s30, 4
      %s38 = sphi 0, %s38
      %s40 = sphi 0, %s38
      %s41 = sphi 0, %s40
      %s55 = sphi 0, %s41
      %s59 = sphi 0, %s59
      %s61 = sphi 0, %s59
      %s62 = sphi 0, %s61
      %s76 = sphi 0, %s62
      %s80 = sphi 0, %s80
      %s82 = sphi 0, %s80
      %s83 = sphi 0, %s82
      %s97 = sphi 0, %s83
      %s103 = sphi 0, %s105
      %s106 = sphi 0, %s103
      %s107 = sphi 0, %s106
      %s123 = sphi 0, %s107
      %s129 = sphi 0, %s131
      %s132 = sphi 0, %s129
      %s133 = sphi 0, %s132
      %s149 = sphi 0, %s133
      %s155 = sphi 0, %s157
      %s158 = sphi 0, %s155
      %s159 = sphi 0, %s158
      %s175 = sphi 0, %s159
      %s181 = sphi 0, %s183
      %s184 = sphi 0, %s181
      %s185 = sphi 0, %s184
      %s201 = sphi 0, %s185
      %s207 = sphi 0, %s209
      %s210 = sphi 0, %s207
      %s211 = sphi 0, %s210
      %s227 = sphi 0, %s211
      %s233 = sphi 0, %s235
      %s236 = sphi 0, %s233
      %s237 = sphi 0, %s236
      %s253 = sphi 0, %s237
      %s259 = sphi 0, %s261
      %s262 = sphi 0, %s259
      %s263 = sphi 0, %s262
      %s279 = sphi 0, %s263
      %s285 = sphi 0, %s287
      %s288 = sphi 0, %s285
      %s289 = sphi 0, %s288
      %s305 = sphi 0, %s289
      %s311 = sphi 0, %s313
      %s314 = sphi 0, %s311
      %s315 = sphi 0, %s314
      %s331 = sphi 0, %s315
      %s337 = sphi 0, %s339
      %s340 = sphi 0, %s337
      %s341 = sphi 0, %s340
      %s357 = sphi 0, %s341
      %s363 = sphi 0, %s365
      %s366 = sphi 0, %s363
      %s367 = sphi 0, %s366
      %s383 = sphi 0, %s367
      %s389 = sphi 0, %s391
      %s392 = sphi 0, %s389
      %s393 = sphi 0, %s392
      %s409 = sphi 0, %s393
      %s415 = sphi 0, %s417
      %s418 = sphi 0, %s415
      %s419 = sphi 0, %s418
      %s435 = sphi 0, %s419
      %s441 = sphi 0, %s443
      %s444 = sphi 0, %s441
      %s445 = sphi 0, %s444
      %s461 = sphi 0, %s445
      %s465 = sphi 0, %s465
      %s467 = sphi 0, %s465
      %s468 = sphi 0, %s467
      %s482 = sphi 0, %s468
      %s486 = sphi 0, %s486
      %s488 = sphi 0, %s486
      %s489 = sphi 0, %s488
      %s503 = sphi 0, %s489
      %s507 = sphi 0, %s507
      %s509 = sphi 0, %s507
      %s510 = sphi 0, %s509
      %s524 = sphi 0, %s510
      %s528 = sphi 0, %s528
      %s530 = sphi 0, %s528
      %s531 = sphi 0, %s530
      %s545 = sphi 0, %s531
      %s549 = sphi 0, %s549
      %s551 = sphi 0, %s549
      %s552 = sphi 0, %s551
      %s566 = sphi 0, %s552
      %s570 = sphi 0, %s570
      %s572 = sphi 0, %s570
      %s573 = sphi 0, %s572
      %s587 = sphi 0, %s573
      %s591 = sphi 0, %s591
      %s593 = sphi 0, %s591
      %s594 = sphi 0, %s593
      %s608 = sphi 0, %s594
    $region4: #{transvg_forward.3} parent=1 // loop_header_branch
      %33 = sbr.rel (%p31) target = $region8
    $region5: #{transvg_forward.3} parent=1 // loop_body
      %s35 = ssub.s32 %s30, 1
      %s36 = ssub.s32 %s30, 2
      %s37 = sadd.s32 %s30, 1
      %s39 = sadd.s32 %s38, 1
      %p42 = scmp.eq.s32.totalorder %s30, 1
      %p43 = scmp.ne.s32.totalorder %s38, %s40
      %p44 = scmp.eq.s32.totalorder %s30, 0
      %p45 = por %p43, %p44
      %p46 = scmp.ne.s32.totalorder %s38, %s40
      %p47 = scmp.eq.s32.totalorder %s35, 1
      %p48 = por %p46, %p47
      %p49 = scmp.ne.s32.totalorder %s40, %s41
      %p50 = scmp.eq.s32.totalorder %s35, 0
      %p51 = por %p49, %p50
      %p52 = scmp.ne.s32.totalorder %s40, %s41
      %p53 = scmp.eq.s32.totalorder %s36, 1
      %p54 = por %p52, %p53
      %p56 = scmp.ne.s32.totalorder %s41, %s55
      %p57 = scmp.eq.s32.totalorder %s36, 0
      %p58 = por %p56, %p57
      %s60 = sadd.s32 %s59, 1
      %p63 = scmp.eq.s32.totalorder %s30, 1
      %p64 = scmp.ne.s32.totalorder %s59, %s61
      %p65 = scmp.eq.s32.totalorder %s30, 0
      %p66 = por %p64, %p65
      %p67 = scmp.ne.s32.totalorder %s59, %s61
      %p68 = scmp.eq.s32.totalorder %s35, 1
      %p69 = por %p67, %p68
      %p70 = scmp.ne.s32.totalorder %s61, %s62
      %p71 = scmp.eq.s32.totalorder %s35, 0
      %p72 = por %p70, %p71
      %p73 = scmp.ne.s32.totalorder %s61, %s62
      %p74 = scmp.eq.s32.totalorder %s36, 1
      %p75 = por %p73, %p74
      %p77 = scmp.ne.s32.totalorder %s62, %s76
      %p78 = scmp.eq.s32.totalorder %s36, 0
      %p79 = por %p77, %p78
      %s81 = sadd.s32 %s80, 1
      %p84 = scmp.eq.s32.totalorder %s30, 1
      %p85 = scmp.ne.s32.totalorder %s80, %s82
      %p86 = scmp.eq.s32.totalorder %s30, 0
      %p87 = por %p85, %p86
      %p88 = scmp.ne.s32.totalorder %s80, %s82
      %p89 = scmp.eq.s32.totalorder %s35, 1
      %p90 = por %p88, %p89
      %p91 = scmp.ne.s32.totalorder %s82, %s83
      %p92 = scmp.eq.s32.totalorder %s35, 0
      %p93 = por %p91, %p92
      %p94 = scmp.ne.s32.totalorder %s82, %s83
      %p95 = scmp.eq.s32.totalorder %s36, 1
      %p96 = por %p94, %p95
      %p98 = scmp.ne.s32.totalorder %s83, %s97
      %p99 = scmp.eq.s32.totalorder %s36, 0
      %p100 = por %p98, %p99
      %s101 = ssub.s32 %s30, %s37
      %p102 = scmp.eq.s32.totalorder %s101, 0
      %s104 = sadd.s32 %s103, 1
      %s105 = scalar_select %p102, %s103, %s104
      %p108 = pneg %p102
      %p109 = scmp.eq.s32.totalorder %s30, 1
      %p110 = por %p108, %p109
      %p111 = scmp.ne.s32.totalorder %s103, %s106
      %p112 = scmp.eq.s32.totalorder %s30, 0
      %p113 = por %p111, %p112
      %p114 = scmp.ne.s32.totalorder %s103, %s106
      %p115 = scmp.eq.s32.totalorder %s35, 1
      %p116 = por %p114, %p115
      %p117 = scmp.ne.s32.totalorder %s106, %s107
      %p118 = scmp.eq.s32.totalorder %s35, 0
      %p119 = por %p117, %p118
      %p120 = scmp.ne.s32.totalorder %s106, %s107
      %p121 = scmp.eq.s32.totalorder %s36, 1
      %p122 = por %p120, %p121
      %p124 = scmp.ne.s32.totalorder %s107, %s123
      %p125 = scmp.eq.s32.totalorder %s36, 0
      %p126 = por %p124, %p125
      %s127 = ssub.s32 %s30, %s37
      %p128 = scmp.eq.s32.totalorder %s127, 0
      %s130 = sadd.s32 %s129, 1
      %s131 = scalar_select %p128, %s129, %s130
      %p134 = pneg %p128
      %p135 = scmp.eq.s32.totalorder %s30, 1
      %p136 = por %p134, %p135
      %p137 = scmp.ne.s32.totalorder %s129, %s132
      %p138 = scmp.eq.s32.totalorder %s30, 0
      %p139 = por %p137, %p138
      %p140 = scmp.ne.s32.totalorder %s129, %s132
      %p141 = scmp.eq.s32.totalorder %s35, 1
      %p142 = por %p140, %p141
      %p143 = scmp.ne.s32.totalorder %s132, %s133
      %p144 = scmp.eq.s32.totalorder %s35, 0
      %p145 = por %p143, %p144
      %p146 = scmp.ne.s32.totalorder %s132, %s133
      %p147 = scmp.eq.s32.totalorder %s36, 1
      %p148 = por %p146, %p147
      %p150 = scmp.ne.s32.totalorder %s133, %s149
      %p151 = scmp.eq.s32.totalorder %s36, 0
      %p152 = por %p150, %p151
      %s153 = ssub.s32 %s30, %s37
      %p154 = scmp.eq.s32.totalorder %s153, 0
      %s156 = sadd.s32 %s155, 1
      %s157 = scalar_select %p154, %s155, %s156
      %p160 = pneg %p154
      %p161 = scmp.eq.s32.totalorder %s30, 1
      %p162 = por %p160, %p161
      %p163 = scmp.ne.s32.totalorder %s155, %s158
      %p164 = scmp.eq.s32.totalorder %s30, 0
      %p165 = por %p163, %p164
      %p166 = scmp.ne.s32.totalorder %s155, %s158
      %p167 = scmp.eq.s32.totalorder %s35, 1
      %p168 = por %p166, %p167
      %p169 = scmp.ne.s32.totalorder %s158, %s159
      %p170 = scmp.eq.s32.totalorder %s35, 0
      %p171 = por %p169, %p170
      %p172 = scmp.ne.s32.totalorder %s158, %s159
      %p173 = scmp.eq.s32.totalorder %s36, 1
      %p174 = por %p172, %p173
      %p176 = scmp.ne.s32.totalorder %s159, %s175
      %p177 = scmp.eq.s32.totalorder %s36, 0
      %p178 = por %p176, %p177
      %s179 = ssub.s32 %s30, %s37
      %p180 = scmp.eq.s32.totalorder %s179, 0
      %s182 = sadd.s32 %s181, 1
      %s183 = scalar_select %p180, %s181, %s182
      %p186 = pneg %p180
      %p187 = scmp.eq.s32.totalorder %s30, 1
      %p188 = por %p186, %p187
      %p189 = scmp.ne.s32.totalorder %s181, %s184
      %p190 = scmp.eq.s32.totalorder %s30, 0
      %p191 = por %p189, %p190
      %p192 = scmp.ne.s32.totalorder %s181, %s184
      %p193 = scmp.eq.s32.totalorder %s35, 1
      %p194 = por %p192, %p193
      %p195 = scmp.ne.s32.totalorder %s184, %s185
      %p196 = scmp.eq.s32.totalorder %s35, 0
      %p197 = por %p195, %p196
      %p198 = scmp.ne.s32.totalorder %s184, %s185
      %p199 = scmp.eq.s32.totalorder %s36, 1
      %p200 = por %p198, %p199
      %p202 = scmp.ne.s32.totalorder %s185, %s201
      %p203 = scmp.eq.s32.totalorder %s36, 0
      %p204 = por %p202, %p203
      %s205 = ssub.s32 %s30, %s37
      %p206 = scmp.eq.s32.totalorder %s205, 0
      %s208 = sadd.s32 %s207, 1
      %s209 = scalar_select %p206, %s207, %s208
      %p212 = pneg %p206
      %p213 = scmp.eq.s32.totalorder %s30, 1
      %p214 = por %p212, %p213
      %p215 = scmp.ne.s32.totalorder %s207, %s210
      %p216 = scmp.eq.s32.totalorder %s30, 0
      %p217 = por %p215, %p216
      %p218 = scmp.ne.s32.totalorder %s207, %s210
      %p219 = scmp.eq.s32.totalorder %s35, 1
      %p220 = por %p218, %p219
      %p221 = scmp.ne.s32.totalorder %s210, %s211
      %p222 = scmp.eq.s32.totalorder %s35, 0
      %p223 = por %p221, %p222
      %p224 = scmp.ne.s32.totalorder %s210, %s211
      %p225 = scmp.eq.s32.totalorder %s36, 1
      %p226 = por %p224, %p225
      %p228 = scmp.ne.s32.totalorder %s211, %s227
      %p229 = scmp.eq.s32.totalorder %s36, 0
      %p230 = por %p228, %p229
      %s231 = ssub.s32 %s30, %s37
      %p232 = scmp.eq.s32.totalorder %s231, 0
      %s234 = sadd.s32 %s233, 1
      %s235 = scalar_select %p232, %s233, %s234
      %p238 = pneg %p232
      %p239 = scmp.eq.s32.totalorder %s30, 1
      %p240 = por %p238, %p239
      %p241 = scmp.ne.s32.totalorder %s233, %s236
      %p242 = scmp.eq.s32.totalorder %s30, 0
      %p243 = por %p241, %p242
      %p244 = scmp.ne.s32.totalorder %s233, %s236
      %p245 = scmp.eq.s32.totalorder %s35, 1
      %p246 = por %p244, %p245
      %p247 = scmp.ne.s32.totalorder %s236, %s237
      %p248 = scmp.eq.s32.totalorder %s35, 0
      %p249 = por %p247, %p248
      %p250 = scmp.ne.s32.totalorder %s236, %s237
      %p251 = scmp.eq.s32.totalorder %s36, 1
      %p252 = por %p250, %p251
      %p254 = scmp.ne.s32.totalorder %s237, %s253
      %p255 = scmp.eq.s32.totalorder %s36, 0
      %p256 = por %p254, %p255
      %s257 = ssub.s32 %s30, %s37
      %p258 = scmp.eq.s32.totalorder %s257, 0
      %s260 = sadd.s32 %s259, 1
      %s261 = scalar_select %p258, %s259, %s260
      %p264 = pneg %p258
      %p265 = scmp.eq.s32.totalorder %s30, 1
      %p266 = por %p264, %p265
      %p267 = scmp.ne.s32.totalorder %s259, %s262
      %p268 = scmp.eq.s32.totalorder %s30, 0
      %p269 = por %p267, %p268
      %p270 = scmp.ne.s32.totalorder %s259, %s262
      %p271 = scmp.eq.s32.totalorder %s35, 1
      %p272 = por %p270, %p271
      %p273 = scmp.ne.s32.totalorder %s262, %s263
      %p274 = scmp.eq.s32.totalorder %s35, 0
      %p275 = por %p273, %p274
      %p276 = scmp.ne.s32.totalorder %s262, %s263
      %p277 = scmp.eq.s32.totalorder %s36, 1
      %p278 = por %p276, %p277
      %p280 = scmp.ne.s32.totalorder %s263, %s279
      %p281 = scmp.eq.s32.totalorder %s36, 0
      %p282 = por %p280, %p281
      %s283 = ssub.s32 %s30, %s37
      %p284 = scmp.eq.s32.totalorder %s283, 0
      %s286 = sadd.s32 %s285, 1
      %s287 = scalar_select %p284, %s285, %s286
      %p290 = pneg %p284
      %p291 = scmp.eq.s32.totalorder %s30, 1
      %p292 = por %p290, %p291
      %p293 = scmp.ne.s32.totalorder %s285, %s288
      %p294 = scmp.eq.s32.totalorder %s30, 0
      %p295 = por %p293, %p294
      %p296 = scmp.ne.s32.totalorder %s285, %s288
      %p297 = scmp.eq.s32.totalorder %s35, 1
      %p298 = por %p296, %p297
      %p299 = scmp.ne.s32.totalorder %s288, %s289
      %p300 = scmp.eq.s32.totalorder %s35, 0
      %p301 = por %p299, %p300
      %p302 = scmp.ne.s32.totalorder %s288, %s289
      %p303 = scmp.eq.s32.totalorder %s36, 1
      %p304 = por %p302, %p303
      %p306 = scmp.ne.s32.totalorder %s289, %s305
      %p307 = scmp.eq.s32.totalorder %s36, 0
      %p308 = por %p306, %p307
      %s309 = ssub.s32 %s30, %s37
      %p310 = scmp.eq.s32.totalorder %s309, 0
      %s312 = sadd.s32 %s311, 1
      %s313 = scalar_select %p310, %s311, %s312
      %p316 = pneg %p310
      %p317 = scmp.eq.s32.totalorder %s30, 1
      %p318 = por %p316, %p317
      %p319 = scmp.ne.s32.totalorder %s311, %s314
      %p320 = scmp.eq.s32.totalorder %s30, 0
      %p321 = por %p319, %p320
      %p322 = scmp.ne.s32.totalorder %s311, %s314
      %p323 = scmp.eq.s32.totalorder %s35, 1
      %p324 = por %p322, %p323
      %p325 = scmp.ne.s32.totalorder %s314, %s315
      %p326 = scmp.eq.s32.totalorder %s35, 0
      %p327 = por %p325, %p326
      %p328 = scmp.ne.s32.totalorder %s314, %s315
      %p329 = scmp.eq.s32.totalorder %s36, 1
      %p330 = por %p328, %p329
      %p332 = scmp.ne.s32.totalorder %s315, %s331
      %p333 = scmp.eq.s32.totalorder %s36, 0
      %p334 = por %p332, %p333
      %s335 = ssub.s32 %s30, %s37
      %p336 = scmp.eq.s32.totalorder %s335, 0
      %s338 = sadd.s32 %s337, 1
      %s339 = scalar_select %p336, %s337, %s338
      %p342 = pneg %p336
      %p343 = scmp.eq.s32.totalorder %s30, 1
      %p344 = por %p342, %p343
      %p345 = scmp.ne.s32.totalorder %s337, %s340
      %p346 = scmp.eq.s32.totalorder %s30, 0
      %p347 = por %p345, %p346
      %p348 = scmp.ne.s32.totalorder %s337, %s340
      %p349 = scmp.eq.s32.totalorder %s35, 1
      %p350 = por %p348, %p349
      %p351 = scmp.ne.s32.totalorder %s340, %s341
      %p352 = scmp.eq.s32.totalorder %s35, 0
      %p353 = por %p351, %p352
      %p354 = scmp.ne.s32.totalorder %s340, %s341
      %p355 = scmp.eq.s32.totalorder %s36, 1
      %p356 = por %p354, %p355
      %p358 = scmp.ne.s32.totalorder %s341, %s357
      %p359 = scmp.eq.s32.totalorder %s36, 0
      %p360 = por %p358, %p359
      %s361 = ssub.s32 %s30, %s37
      %p362 = scmp.eq.s32.totalorder %s361, 0
      %s364 = sadd.s32 %s363, 1
      %s365 = scalar_select %p362, %s363, %s364
      %p368 = pneg %p362
      %p369 = scmp.eq.s32.totalorder %s30, 1
      %p370 = por %p368, %p369
      %p371 = scmp.ne.s32.totalorder %s363, %s366
      %p372 = scmp.eq.s32.totalorder %s30, 0
      %p373 = por %p371, %p372
      %p374 = scmp.ne.s32.totalorder %s363, %s366
      %p375 = scmp.eq.s32.totalorder %s35, 1
      %p376 = por %p374, %p375
      %p377 = scmp.ne.s32.totalorder %s366, %s367
      %p378 = scmp.eq.s32.totalorder %s35, 0
      %p379 = por %p377, %p378
      %p380 = scmp.ne.s32.totalorder %s366, %s367
      %p381 = scmp.eq.s32.totalorder %s36, 1
      %p382 = por %p380, %p381
      %p384 = scmp.ne.s32.totalorder %s367, %s383
      %p385 = scmp.eq.s32.totalorder %s36, 0
      %p386 = por %p384, %p385
      %s387 = ssub.s32 %s30, %s37
      %p388 = scmp.eq.s32.totalorder %s387, 0
      %s390 = sadd.s32 %s389, 1
      %s391 = scalar_select %p388, %s389, %s390
      %p394 = pneg %p388
      %p395 = scmp.eq.s32.totalorder %s30, 1
      %p396 = por %p394, %p395
      %p397 = scmp.ne.s32.totalorder %s389, %s392
      %p398 = scmp.eq.s32.totalorder %s30, 0
      %p399 = por %p397, %p398
      %p400 = scmp.ne.s32.totalorder %s389, %s392
      %p401 = scmp.eq.s32.totalorder %s35, 1
      %p402 = por %p400, %p401
      %p403 = scmp.ne.s32.totalorder %s392, %s393
      %p404 = scmp.eq.s32.totalorder %s35, 0
      %p405 = por %p403, %p404
      %p406 = scmp.ne.s32.totalorder %s392, %s393
      %p407 = scmp.eq.s32.totalorder %s36, 1
      %p408 = por %p406, %p407
      %p410 = scmp.ne.s32.totalorder %s393, %s409
      %p411 = scmp.eq.s32.totalorder %s36, 0
      %p412 = por %p410, %p411
      %s413 = ssub.s32 %s30, %s37
      %p414 = scmp.eq.s32.totalorder %s413, 0
      %s416 = sadd.s32 %s415, 1
      %s417 = scalar_select %p414, %s415, %s416
      %p420 = pneg %p414
      %p421 = scmp.eq.s32.totalorder %s30, 1
      %p422 = por %p420, %p421
      %p423 = scmp.ne.s32.totalorder %s415, %s418
      %p424 = scmp.eq.s32.totalorder %s30, 0
      %p425 = por %p423, %p424
      %p426 = scmp.ne.s32.totalorder %s415, %s418
      %p427 = scmp.eq.s32.totalorder %s35, 1
      %p428 = por %p426, %p427
      %p429 = scmp.ne.s32.totalorder %s418, %s419
      %p430 = scmp.eq.s32.totalorder %s35, 0
      %p431 = por %p429, %p430
      %p432 = scmp.ne.s32.totalorder %s418, %s419
      %p433 = scmp.eq.s32.totalorder %s36, 1
      %p434 = por %p432, %p433
      %p436 = scmp.ne.s32.totalorder %s419, %s435
      %p437 = scmp.eq.s32.totalorder %s36, 0
      %p438 = por %p436, %p437
      %s439 = ssub.s32 %s30, %s37
      %p440 = scmp.eq.s32.totalorder %s439, 0
      %s442 = sadd.s32 %s441, 1
      %s443 = scalar_select %p440, %s441, %s442
      %p446 = pneg %p440
      %p447 = scmp.eq.s32.totalorder %s30, 1
      %p448 = por %p446, %p447
      %p449 = scmp.ne.s32.totalorder %s441, %s444
      %p450 = scmp.eq.s32.totalorder %s30, 0
      %p451 = por %p449, %p450
      %p452 = scmp.ne.s32.totalorder %s441, %s444
      %p453 = scmp.eq.s32.totalorder %s35, 1
      %p454 = por %p452, %p453
      %p455 = scmp.ne.s32.totalorder %s444, %s445
      %p456 = scmp.eq.s32.totalorder %s35, 0
      %p457 = por %p455, %p456
      %p458 = scmp.ne.s32.totalorder %s444, %s445
      %p459 = scmp.eq.s32.totalorder %s36, 1
      %p460 = por %p458, %p459
      %p462 = scmp.ne.s32.totalorder %s445, %s461
      %p463 = scmp.eq.s32.totalorder %s36, 0
      %p464 = por %p462, %p463
      %s466 = sadd.s32 %s465, 1
      %p469 = scmp.eq.s32.totalorder %s30, 1
      %p470 = scmp.ne.s32.totalorder %s465, %s467
      %p471 = scmp.eq.s32.totalorder %s30, 0
      %p472 = por %p470, %p471
      %p473 = scmp.ne.s32.totalorder %s465, %s467
      %p474 = scmp.eq.s32.totalorder %s35, 1
      %p475 = por %p473, %p474
      %p476 = scmp.ne.s32.totalorder %s467, %s468
      %p477 = scmp.eq.s32.totalorder %s35, 0
      %p478 = por %p476, %p477
      %p479 = scmp.ne.s32.totalorder %s467, %s468
      %p480 = scmp.eq.s32.totalorder %s36, 1
      %p481 = por %p479, %p480
      %p483 = scmp.ne.s32.totalorder %s468, %s482
      %p484 = scmp.eq.s32.totalorder %s36, 0
      %p485 = por %p483, %p484
      %s487 = sadd.s32 %s486, 1
      %p490 = scmp.eq.s32.totalorder %s30, 1
      %p491 = scmp.ne.s32.totalorder %s486, %s488
      %p492 = scmp.eq.s32.totalorder %s30, 0
      %p493 = por %p491, %p492
      %p494 = scmp.ne.s32.totalorder %s486, %s488
      %p495 = scmp.eq.s32.totalorder %s35, 1
      %p496 = por %p494, %p495
      %p497 = scmp.ne.s32.totalorder %s488, %s489
      %p498 = scmp.eq.s32.totalorder %s35, 0
      %p499 = por %p497, %p498
      %p500 = scmp.ne.s32.totalorder %s488, %s489
      %p501 = scmp.eq.s32.totalorder %s36, 1
      %p502 = por %p500, %p501
      %p504 = scmp.ne.s32.totalorder %s489, %s503
      %p505 = scmp.eq.s32.totalorder %s36, 0
      %p506 = por %p504, %p505
      %s508 = sadd.s32 %s507, 1
      %p511 = scmp.eq.s32.totalorder %s30, 1
      %p512 = scmp.ne.s32.totalorder %s507, %s509
      %p513 = scmp.eq.s32.totalorder %s30, 0
      %p514 = por %p512, %p513
      %p515 = scmp.ne.s32.totalorder %s507, %s509
      %p516 = scmp.eq.s32.totalorder %s35, 1
      %p517 = por %p515, %p516
      %p518 = scmp.ne.s32.totalorder %s509, %s510
      %p519 = scmp.eq.s32.totalorder %s35, 0
      %p520 = por %p518, %p519
      %p521 = scmp.ne.s32.totalorder %s509, %s510
      %p522 = scmp.eq.s32.totalorder %s36, 1
      %p523 = por %p521, %p522
      %p525 = scmp.ne.s32.totalorder %s510, %s524
      %p526 = scmp.eq.s32.totalorder %s36, 0
      %p527 = por %p525, %p526
      %s529 = sadd.s32 %s528, 1
      %p532 = scmp.eq.s32.totalorder %s30, 1
      %p533 = scmp.ne.s32.totalorder %s528, %s530
      %p534 = scmp.eq.s32.totalorder %s30, 0
      %p535 = por %p533, %p534
      %p536 = scmp.ne.s32.totalorder %s528, %s530
      %p537 = scmp.eq.s32.totalorder %s35, 1
      %p538 = por %p536, %p537
      %p539 = scmp.ne.s32.totalorder %s530, %s531
      %p540 = scmp.eq.s32.totalorder %s35, 0
      %p541 = por %p539, %p540
      %p542 = scmp.ne.s32.totalorder %s530, %s531
      %p543 = scmp.eq.s32.totalorder %s36, 1
      %p544 = por %p542, %p543
      %p546 = scmp.ne.s32.totalorder %s531, %s545
      %p547 = scmp.eq.s32.totalorder %s36, 0
      %p548 = por %p546, %p547
      %s550 = sadd.s32 %s549, 1
      %p553 = scmp.eq.s32.totalorder %s30, 1
      %p554 = scmp.ne.s32.totalorder %s549, %s551
      %p555 = scmp.eq.s32.totalorder %s30, 0
      %p556 = por %p554, %p555
      %p557 = scmp.ne.s32.totalorder %s549, %s551
      %p558 = scmp.eq.s32.totalorder %s35, 1
      %p559 = por %p557, %p558
      %p560 = scmp.ne.s32.totalorder %s551, %s552
      %p561 = scmp.eq.s32.totalorder %s35, 0
      %p562 = por %p560, %p561
      %p563 = scmp.ne.s32.totalorder %s551, %s552
      %p564 = scmp.eq.s32.totalorder %s36, 1
      %p565 = por %p563, %p564
      %p567 = scmp.ne.s32.totalorder %s552, %s566
      %p568 = scmp.eq.s32.totalorder %s36, 0
      %p569 = por %p567, %p568
      %s571 = sadd.s32 %s570, 1
      %p574 = scmp.eq.s32.totalorder %s30, 1
      %p575 = scmp.ne.s32.totalorder %s570, %s572
      %p576 = scmp.eq.s32.totalorder %s30, 0
      %p577 = por %p575, %p576
      %p578 = scmp.ne.s32.totalorder %s570, %s572
      %p579 = scmp.eq.s32.totalorder %s35, 1
      %p580 = por %p578, %p579
      %p581 = scmp.ne.s32.totalorder %s572, %s573
      %p582 = scmp.eq.s32.totalorder %s35, 0
      %p583 = por %p581, %p582
      %p584 = scmp.ne.s32.totalorder %s572, %s573
      %p585 = scmp.eq.s32.totalorder %s36, 1
      %p586 = por %p584, %p585
      %p588 = scmp.ne.s32.totalorder %s573, %s587
      %p589 = scmp.eq.s32.totalorder %s36, 0
      %p590 = por %p588, %p589
      %s592 = sadd.s32 %s591, 1
      %p595 = scmp.eq.s32.totalorder %s30, 1
      %p596 = scmp.ne.s32.totalorder %s591, %s593
      %p597 = scmp.eq.s32.totalorder %s30, 0
      %p598 = por %p596, %p597
      %p599 = scmp.ne.s32.totalorder %s591, %s593
      %p600 = scmp.eq.s32.totalorder %s35, 1
      %p601 = por %p599, %p600
      %p602 = scmp.ne.s32.totalorder %s593, %s594
      %p603 = scmp.eq.s32.totalorder %s35, 0
      %p604 = por %p602, %p603
      %p605 = scmp.ne.s32.totalorder %s593, %s594
      %p606 = scmp.eq.s32.totalorder %s36, 1
      %p607 = por %p605, %p606
      %p609 = scmp.ne.s32.totalorder %s594, %s608
      %p610 = scmp.eq.s32.totalorder %s36, 0
      %p611 = por %p609, %p610
      %p612 = scmp.le.s32.totalorder 1, %s30
      %p613 = scmp.lt.s32.totalorder %s30, 3
      %p614 = pnand %p612, %p613
      %p615 = pneg %p614
      // Predicated region
      $region9: #{transvg_forward.3} parent=5 // pred_check
        _
      $region10: #{transvg_forward.3} parent=5 // pred_check_branch
        %617 = sbr.rel (%p614) target = $region12
      $region11: #{transvg_forward.3} parent=5 // pred_region
        %s618 = ssub.s32 %s30, 1
        // Predicated region
        $region13: #{transvg_forward.3} parent=11 // pred_check
          %p619 = pneg %p51
        $region14: #{transvg_forward.3} parent=11 // pred_check_branch
          %621 = sbr.rel (%p619) target = $region16
        $region15: #{transvg_forward.3} parent=11 // pred_region
          _
        $region16: #{transvg_forward.3} parent=11 // pred_fallthru
          _
        // Predicated region
        $region17: #{transvg_forward.3} parent=11 // pred_check
          %p622 = pneg %p72
        $region18: #{transvg_forward.3} parent=11 // pred_check_branch
          %624 = sbr.rel (%p622) target = $region20
        $region19: #{transvg_forward.3} parent=11 // pred_region
          _
        $region20: #{transvg_forward.3} parent=11 // pred_fallthru
          _
        // Predicated region
        $region21: #{transvg_forward.3} parent=11 // pred_check
          %p625 = pneg %p93
        $region22: #{transvg_forward.3} parent=11 // pred_check_branch
          %627 = sbr.rel (%p625) target = $region24
        $region23: #{transvg_forward.3} parent=11 // pred_region
          _
        $region24: #{transvg_forward.3} parent=11 // pred_fallthru
          _
        // Predicated region
        $region25: #{transvg_forward.3} parent=11 // pred_check
          %p628 = pneg %p478
        $region26: #{transvg_forward.3} parent=11 // pred_check_branch
          %630 = sbr.rel (%p628) target = $region28
        $region27: #{transvg_forward.3} parent=11 // pred_region
          _
        $region28: #{transvg_forward.3} parent=11 // pred_fallthru
          _
        // Predicated region
        $region29: #{transvg_forward.3} parent=11 // pred_check
          %p631 = pneg %p499
        $region30: #{transvg_forward.3} parent=11 // pred_check_branch
          %633 = sbr.rel (%p631) target = $region32
        $region31: #{transvg_forward.3} parent=11 // pred_region
          _
        $region32: #{transvg_forward.3} parent=11 // pred_fallthru
          _
        // Predicated region
        $region33: #{transvg_forward.3} parent=11 // pred_check
          %p634 = pneg %p520
        $region34: #{transvg_forward.3} parent=11 // pred_check_branch
          %636 = sbr.rel (%p634) target = $region36
        $region35: #{transvg_forward.3} parent=11 // pred_region
          _
        $region36: #{transvg_forward.3} parent=11 // pred_fallthru
          _
        // Predicated region
        $region37: #{transvg_forward.3} parent=11 // pred_check
          %p637 = pneg %p541
        $region38: #{transvg_forward.3} parent=11 // pred_check_branch
          %639 = sbr.rel (%p637) target = $region40
        $region39: #{transvg_forward.3} parent=11 // pred_region
          _
        $region40: #{transvg_forward.3} parent=11 // pred_fallthru
          _
        // Predicated region
        $region41: #{transvg_forward.3} parent=11 // pred_check
          %p640 = pneg %p562
        $region42: #{transvg_forward.3} parent=11 // pred_check_branch
          %642 = sbr.rel (%p640) target = $region44
        $region43: #{transvg_forward.3} parent=11 // pred_region
          _
        $region44: #{transvg_forward.3} parent=11 // pred_fallthru
          _
        // Predicated region
        $region45: #{transvg_forward.3} parent=11 // pred_check
          %p643 = pneg %p583
        $region46: #{transvg_forward.3} parent=11 // pred_check_branch
          %645 = sbr.rel (%p643) target = $region48
        $region47: #{transvg_forward.3} parent=11 // pred_region
          _
        $region48: #{transvg_forward.3} parent=11 // pred_fallthru
          _
      $region12: #{transvg_forward.3} parent=5 // pred_fallthru
        _
      %p646 = scmp.lt.s32.totalorder %s30, 2
      // Predicated region
      $region49: #{transvg_forward.3} parent=5 // pred_check
        %p647 = pneg %p646
      $region50: #{transvg_forward.3} parent=5 // pred_check_branch
        %649 = sbr.rel (%p647) target = $region52
      $region51: #{transvg_forward.3} parent=5 // pred_region
        // Predicated region
        $region53: #{transvg_forward.3} parent=51 // pred_check
          %p650 = pneg %p113
        $region54: #{transvg_forward.3} parent=51 // pred_check_branch
          %652 = sbr.rel (%p650) target = $region56
        $region55: #{transvg_forward.3} parent=51 // pred_region
          %p653 = scmp.lt.s32.totalorder %s30, 1
          %s654 = scalar_select %p653, %s30, 1
          %s655 = smul.addr %s654, 4
          %s656 = smul.addr %s655, 4
          %s657 = scalar_lea.vmem %s3, %s656
        $region56: #{transvg_forward.3} parent=51 // pred_fallthru
          _
        // Predicated region
        $region57: #{transvg_forward.3} parent=51 // pred_check
          %p658 = pneg %p139
        $region58: #{transvg_forward.3} parent=51 // pred_check_branch
          %660 = sbr.rel (%p658) target = $region60
        $region59: #{transvg_forward.3} parent=51 // pred_region
          %p661 = scmp.lt.s32.totalorder %s30, 1
          %s662 = scalar_select %p661, %s30, 1
          %s663 = scalar_lea.vmem %s4, %s662
        $region60: #{transvg_forward.3} parent=51 // pred_fallthru
          _
        // Predicated region
        $region61: #{transvg_forward.3} parent=51 // pred_check
          %p664 = pneg %p165
        $region62: #{transvg_forward.3} parent=51 // pred_check_branch
          %666 = sbr.rel (%p664) target = $region64
        $region63: #{transvg_forward.3} parent=51 // pred_region
          %p667 = scmp.lt.s32.totalorder %s30, 1
          %s668 = scalar_select %p667, %s30, 1
          %s669 = smul.addr %s668, 4
          %s670 = smul.addr %s669, 4
          %s671 = scalar_lea.vmem %s5, %s670
        $region64: #{transvg_forward.3} parent=51 // pred_fallthru
          _
        // Predicated region
        $region65: #{transvg_forward.3} parent=51 // pred_check
          %p672 = pneg %p191
        $region66: #{transvg_forward.3} parent=51 // pred_check_branch
          %674 = sbr.rel (%p672) target = $region68
        $region67: #{transvg_forward.3} parent=51 // pred_region
          %p675 = scmp.lt.s32.totalorder %s30, 1
          %s676 = scalar_select %p675, %s30, 1
          %s677 = scalar_lea.vmem %s6, %s676
        $region68: #{transvg_forward.3} parent=51 // pred_fallthru
          _
        // Predicated region
        $region69: #{transvg_forward.3} parent=51 // pred_check
          %p678 = pneg %p217
        $region70: #{transvg_forward.3} parent=51 // pred_check_branch
          %680 = sbr.rel (%p678) target = $region72
        $region71: #{transvg_forward.3} parent=51 // pred_region
          %p681 = scmp.lt.s32.totalorder %s30, 1
          %s682 = scalar_select %p681, %s30, 1
          %s683 = smul.addr %s682, 4
          %s684 = smul.addr %s683, 4
          %s685 = scalar_lea.vmem %s7, %s684
        $region72: #{transvg_forward.3} parent=51 // pred_fallthru
          _
        // Predicated region
        $region73: #{transvg_forward.3} parent=51 // pred_check
          %p686 = pneg %p243
        $region74: #{transvg_forward.3} parent=51 // pred_check_branch
          %688 = sbr.rel (%p686) target = $region76
        $region75: #{transvg_forward.3} parent=51 // pred_region
          %p689 = scmp.lt.s32.totalorder %s30, 1
          %s690 = scalar_select %p689, %s30, 1
          %s691 = scalar_lea.vmem %s8, %s690
        $region76: #{transvg_forward.3} parent=51 // pred_fallthru
          _
        // Predicated region
        $region77: #{transvg_forward.3} parent=51 // pred_check
          %p692 = pneg %p269
        $region78: #{transvg_forward.3} parent=51 // pred_check_branch
          %694 = sbr.rel (%p692) target = $region80
        $region79: #{transvg_forward.3} parent=51 // pred_region
          %p695 = scmp.lt.s32.totalorder %s30, 1
          %s696 = scalar_select %p695, %s30, 1
          %s697 = scalar_lea.vmem %s9, %s696
        $region80: #{transvg_forward.3} parent=51 // pred_fallthru
          _
        // Predicated region
        $region81: #{transvg_forward.3} parent=51 // pred_check
          %p698 = pneg %p295
        $region82: #{transvg_forward.3} parent=51 // pred_check_branch
          %700 = sbr.rel (%p698) target = $region84
        $region83: #{transvg_forward.3} parent=51 // pred_region
          %p701 = scmp.lt.s32.totalorder %s30, 1
          %s702 = scalar_select %p701, %s30, 1
          %s703 = scalar_lea.vmem %s10, %s702
        $region84: #{transvg_forward.3} parent=51 // pred_fallthru
          _
        // Predicated region
        $region85: #{transvg_forward.3} parent=51 // pred_check
          %p704 = pneg %p321
        $region86: #{transvg_forward.3} parent=51 // pred_check_branch
          %706 = sbr.rel (%p704) target = $region88
        $region87: #{transvg_forward.3} parent=51 // pred_region
          %p707 = scmp.lt.s32.totalorder %s30, 1
          %s708 = scalar_select %p707, %s30, 1
          %s709 = smul.addr %s708, 4
          %s710 = smul.addr %s709, 4
          %s711 = scalar_lea.vmem %s11, %s710
        $region88: #{transvg_forward.3} parent=51 // pred_fallthru
          _
        // Predicated region
        $region89: #{transvg_forward.3} parent=51 // pred_check
          %p712 = pneg %p347
        $region90: #{transvg_forward.3} parent=51 // pred_check_branch
          %714 = sbr.rel (%p712) target = $region92
        $region91: #{transvg_forward.3} parent=51 // pred_region
          %p715 = scmp.lt.s32.totalorder %s30, 1
          %s716 = scalar_select %p715, %s30, 1
          %s717 = scalar_lea.vmem %s12, %s716
        $region92: #{transvg_forward.3} parent=51 // pred_fallthru
          _
        // Predicated region
        $region93: #{transvg_forward.3} parent=51 // pred_check
          %p718 = pneg %p373
        $region94: #{transvg_forward.3} parent=51 // pred_check_branch
          %720 = sbr.rel (%p718) target = $region96
        $region95: #{transvg_forward.3} parent=51 // pred_region
          %p721 = scmp.lt.s32.totalorder %s30, 1
          %s722 = scalar_select %p721, %s30, 1
          %s723 = smul.addr %s722, 8
          %s724 = smul.addr %s723, 4
          %s725 = scalar_lea.vmem %s13, %s724
        $region96: #{transvg_forward.3} parent=51 // pred_fallthru
          _
        // Predicated region
        $region97: #{transvg_forward.3} parent=51 // pred_check
          %p726 = pneg %p399
        $region98: #{transvg_forward.3} parent=51 // pred_check_branch
          %728 = sbr.rel (%p726) target = $region100
        $region99: #{transvg_forward.3} parent=51 // pred_region
          %p729 = scmp.lt.s32.totalorder %s30, 1
          %s730 = scalar_select %p729, %s30, 1
          %s731 = scalar_lea.vmem %s14, %s730
        $region100: #{transvg_forward.3} parent=51 // pred_fallthru
          _
        // Predicated region
        $region101: #{transvg_forward.3} parent=51 // pred_check
          %p732 = pneg %p425
        $region102: #{transvg_forward.3} parent=51 // pred_check_branch
          %734 = sbr.rel (%p732) target = $region104
        $region103: #{transvg_forward.3} parent=51 // pred_region
          %p735 = scmp.lt.s32.totalorder %s30, 1
          %s736 = scalar_select %p735, %s30, 1
          %s737 = scalar_lea.vmem %s15, %s736
        $region104: #{transvg_forward.3} parent=51 // pred_fallthru
          _
        // Predicated region
        $region105: #{transvg_forward.3} parent=51 // pred_check
          %p738 = pneg %p451
        $region106: #{transvg_forward.3} parent=51 // pred_check_branch
          %740 = sbr.rel (%p738) target = $region108
        $region107: #{transvg_forward.3} parent=51 // pred_region
          %p741 = scmp.lt.s32.totalorder %s30, 1
          %s742 = scalar_select %p741, %s30, 1
          %s743 = scalar_lea.vmem %s16, %s742
        $region108: #{transvg_forward.3} parent=51 // pred_fallthru
          _
      $region52: #{transvg_forward.3} parent=5 // pred_fallthru
        _
      %p744 = scmp.le.s32.totalorder 1, %s30
      %p745 = scmp.lt.s32.totalorder %s30, 3
      %p746 = pnand %p744, %p745
      %p747 = pneg %p746
      // Predicated region
      $region109: #{transvg_forward.3} parent=5 // pred_check
        _
      $region110: #{transvg_forward.3} parent=5 // pred_check_branch
        %749 = sbr.rel (%p746) target = $region112
      $region111: #{transvg_forward.3} parent=5 // pred_region
        %s750 = ssub.s32 %s30, 1
        %p751 = pneg %p51
        %p752 = pneg %p48
        %p753 = pneg %p72
        %p754 = pneg %p69
        %p755 = pneg %p93
        %p756 = pneg %p90
        %p757 = scmp.lt.s32.totalorder %s35, 1
        %s758 = scalar_select %p757, %s35, 1
        %s759 = smul.addr %s758, 4
        %s760 = smul.addr %s759, 4
        %s761 = scalar_lea.vmem %s3, %s760
        %p762 = pneg %p119
        %p763 = pneg %p116
        %p764 = scmp.lt.s32.totalorder %s35, 1
        %s765 = scalar_select %p764, %s35, 1
        %s766 = scalar_lea.vmem %s4, %s765
        %p767 = pneg %p145
        %p768 = pneg %p142
        %p769 = scmp.lt.s32.totalorder %s35, 1
        %s770 = scalar_select %p769, %s35, 1
        %s771 = smul.addr %s770, 4
        %s772 = smul.addr %s771, 4
        %s773 = scalar_lea.vmem %s5, %s772
        %p774 = pneg %p171
        %p775 = pneg %p168
        %p776 = scmp.lt.s32.totalorder %s35, 1
        %s777 = scalar_select %p776, %s35, 1
        %s778 = scalar_lea.vmem %s6, %s777
        %p779 = pneg %p197
        %p780 = pneg %p194
        %p781 = scmp.lt.s32.totalorder %s35, 1
        %s782 = scalar_select %p781, %s35, 1
        %s783 = smul.addr %s782, 4
        %s784 = smul.addr %s783, 4
        %s785 = scalar_lea.vmem %s7, %s784
        %p786 = pneg %p223
        %p787 = pneg %p220
        %p788 = scmp.lt.s32.totalorder %s35, 1
        %s789 = scalar_select %p788, %s35, 1
        %s790 = scalar_lea.vmem %s8, %s789
        %p791 = pneg %p249
        %p792 = pneg %p246
        %p793 = scmp.lt.s32.totalorder %s35, 1
        %s794 = scalar_select %p793, %s35, 1
        %s795 = scalar_lea.vmem %s9, %s794
        %p796 = pneg %p275
        %p797 = pneg %p272
        %p798 = scmp.lt.s32.totalorder %s35, 1
        %s799 = scalar_select %p798, %s35, 1
        %s800 = scalar_lea.vmem %s10, %s799
        %p801 = pneg %p301
        %p802 = pneg %p298
        %p803 = scmp.lt.s32.totalorder %s35, 1
        %s804 = scalar_select %p803, %s35, 1
        %s805 = smul.addr %s804, 4
        %s806 = smul.addr %s805, 4
        %s807 = scalar_lea.vmem %s11, %s806
        %p808 = pneg %p327
        %p809 = pneg %p324
        %p810 = scmp.lt.s32.totalorder %s35, 1
        %s811 = scalar_select %p810, %s35, 1
        %s812 = scalar_lea.vmem %s12, %s811
        %p813 = pneg %p353
        %p814 = pneg %p350
        %p815 = scmp.lt.s32.totalorder %s35, 1
        %s816 = scalar_select %p815, %s35, 1
        %s817 = smul.addr %s816, 8
        %s818 = smul.addr %s817, 4
        %s819 = scalar_lea.vmem %s13, %s818
        %p820 = pneg %p379
        %p821 = pneg %p376
        %p822 = scmp.lt.s32.totalorder %s35, 1
        %s823 = scalar_select %p822, %s35, 1
        %s824 = scalar_lea.vmem %s14, %s823
        %p825 = pneg %p405
        %p826 = pneg %p402
        %p827 = scmp.lt.s32.totalorder %s35, 1
        %s828 = scalar_select %p827, %s35, 1
        %s829 = scalar_lea.vmem %s15, %s828
        %p830 = pneg %p431
        %p831 = pneg %p428
        %p832 = scmp.lt.s32.totalorder %s35, 1
        %s833 = scalar_select %p832, %s35, 1
        %s834 = scalar_lea.vmem %s16, %s833
        %p835 = pneg %p457
        %p836 = pneg %p454
        %p837 = pneg %p478
        %p838 = pneg %p475
        %p839 = pneg %p499
        %p840 = pneg %p496
        %p841 = pneg %p520
        %p842 = pneg %p517
        %p843 = pneg %p541
        %p844 = pneg %p538
        %p845 = pneg %p562
        %p846 = pneg %p559
        %p847 = pneg %p583
        %p848 = pneg %p580
        %p849 = pneg %p604
        %p850 = pneg %p601
        %p851 = scmp.lt.s32.totalorder %s35, 1
        %s852 = scalar_select %p851, %s35, 1
        %s853 = smul.addr %s852, 4
        %s854 = smul.addr %s853, 4
        %s855 = scalar_lea.vmem %s3, %s854
        %p856 = scmp.lt.s32.totalorder %s35, 1
        %s857 = scalar_select %p856, %s35, 1
        %s858 = scalar_lea.vmem %s4, %s857
        %p859 = scmp.lt.s32.totalorder %s35, 1
        %s860 = scalar_select %p859, %s35, 1
        %s861 = smul.addr %s860, 4
        %s862 = smul.addr %s861, 4
        %s863 = scalar_lea.vmem %s5, %s862
        %p864 = scmp.lt.s32.totalorder %s35, 1
        %s865 = scalar_select %p864, %s35, 1
        %s866 = scalar_lea.vmem %s6, %s865
        %p867 = scmp.lt.s32.totalorder %s35, 1
        %s868 = scalar_select %p867, %s35, 1
        %s869 = smul.addr %s868, 4
        %s870 = smul.addr %s869, 4
        %s871 = scalar_lea.vmem %s7, %s870
        %p872 = scmp.lt.s32.totalorder %s35, 1
        %s873 = scalar_select %p872, %s35, 1
        %s874 = scalar_lea.vmem %s8, %s873
        %p875 = scmp.lt.s32.totalorder %s35, 1
        %s876 = scalar_select %p875, %s35, 1
        %s877 = scalar_lea.vmem %s9, %s876
        %p878 = scmp.lt.s32.totalorder %s35, 1
        %s879 = scalar_select %p878, %s35, 1
        %s880 = scalar_lea.vmem %s10, %s879
        %p881 = scmp.lt.s32.totalorder %s35, 1
        %s882 = scalar_select %p881, %s35, 1
        %s883 = smul.addr %s882, 4
        %s884 = smul.addr %s883, 4
        %s885 = scalar_lea.vmem %s11, %s884
        %p886 = scmp.lt.s32.totalorder %s35, 1
        %s887 = scalar_select %p886, %s35, 1
        %s888 = scalar_lea.vmem %s12, %s887
        %p889 = scmp.lt.s32.totalorder %s35, 1
        %s890 = scalar_select %p889, %s35, 1
        %s891 = smul.addr %s890, 8
        %s892 = smul.addr %s891, 4
        %s893 = scalar_lea.vmem %s13, %s892
        %p894 = scmp.lt.s32.totalorder %s35, 1
        %s895 = scalar_select %p894, %s35, 1
        %s896 = scalar_lea.vmem %s14, %s895
        %p897 = scmp.lt.s32.totalorder %s35, 1
        %s898 = scalar_select %p897, %s35, 1
        %s899 = scalar_lea.vmem %s15, %s898
        %p900 = scmp.lt.s32.totalorder %s35, 1
        %s901 = scalar_select %p900, %s35, 1
        %s902 = scalar_lea.vmem %s16, %s901
        %p904 = scmp.eq.s32.totalorder %s35, 0
        // Predicated region
        $region113: #{transvg_forward.3} parent=111 // pred_check
          %p905 = pneg %p904
        $region114: #{transvg_forward.3} parent=111 // pred_check_branch
          %907 = sbr.rel (%p905) target = $region116
        $region115: #{transvg_forward.3} parent=111 // pred_region
          %v908 = vld [vmem:[%s0] sm:$0xff]
          %v909 = vld [vmem:[%s0 + $0x8] sm:$0xff]
          %v910 = vld [vmem:[%s0 + $0x10] sm:$0xff]
          %v911 = vld [vmem:[%s0 + $0x18] sm:$0xff]
          %v912 = vld [vmem:[%s0 + $0x20] sm:$0xff]
          %v913 = vld [vmem:[%s0 + $0x28] sm:$0xff]
          %v914 = vld [vmem:[%s0 + $0x30] sm:$0xff]
          %v915 = vld [vmem:[%s0 + $0x38] sm:$0xff]
          %vm916 = vcmask 261120
          %917 = vst.msk [vmem:[#allocation2] sm:$0xff] %vm916, %v908
          %918 = vst.msk [vmem:[#allocation2 + $0x8] sm:$0xff] %vm916, %v909
          %919 = vst.msk [vmem:[#allocation2 + $0x10] sm:$0xff] %vm916, %v910
          %920 = vst.msk [vmem:[#allocation2 + $0x18] sm:$0xff] %vm916, %v911
          %921 = vst.msk [vmem:[#allocation2 + $0x20] sm:$0xff] %vm916, %v912
          %922 = vst.msk [vmem:[#allocation2 + $0x28] sm:$0xff] %vm916, %v913
          %923 = vst.msk [vmem:[#allocation2 + $0x30] sm:$0xff] %vm916, %v914
          %924 = vst.msk [vmem:[#allocation2 + $0x38] sm:$0xff] %vm916, %v915
          %vm925 = vcmask 25600
          %926 = vst.msk [vmem:[#allocation3] sm:$0x3] %vm925, 0.0
        $region116: #{transvg_forward.3} parent=111 // pred_fallthru
          _
        %v927 = vld [vmem:[#allocation2] sm:$0xff]
        %v928 = vld [vmem:[#allocation2 + $0x8] sm:$0xff]
        %v929 = vld [vmem:[#allocation2 + $0x10] sm:$0xff]
        %v930 = vld [vmem:[#allocation2 + $0x18] sm:$0xff]
        %v931 = vld [vmem:[#allocation2 + $0x20] sm:$0xff]
        %v932 = vld [vmem:[#allocation2 + $0x28] sm:$0xff]
        %v933 = vld [vmem:[#allocation2 + $0x30] sm:$0xff]
        %v934 = vld [vmem:[#allocation2 + $0x38] sm:$0xff]
        %v935 = vld [vmem:[%s2] sm:$0xff]
        %v936 = vld [vmem:[%s2 + $0x8] sm:$0xff]
        %v937 = vld [vmem:[%s2 + $0x10] sm:$0xff]
        %v938 = vld [vmem:[%s2 + $0x18] sm:$0xff]
        %v939 = vadd.f32 %v927, %v935
        %v940 = vadd.f32 %v928, %v936
        %v941 = vadd.f32 %v929, %v937
        %v942 = vadd.f32 %v930, %v938
        %v943 = vadd.f32 %v931, %v935
        %v944 = vadd.f32 %v932, %v936
        %v945 = vadd.f32 %v933, %v937
        %v946 = vadd.f32 %v934, %v938
        %v947 = vpack.c.bf16 %v940, %v939
        %v948 = vpack.c.bf16 %v942, %v941
        %v949 = vpack.c.bf16 %v944, %v943
        %v950 = vpack.c.bf16 %v946, %v945
        %v951 = vld [vmem:[%s855] sm:$0xf]
        %v952 = vld [vmem:[%s855 + $0x4] sm:$0xf]
        %v953 = vld [vmem:[%s855 + $0x8] sm:$0xf]
        %v954 = vld [vmem:[%s855 + $0xc] sm:$0xf]
        %v955 = vld [vmem:[%s858] sm:$0x1]
        %v957 = vperm.slane %v955, 0
        %v963 = vunpack.c.l.b16 %v951
        %v964 = vunpack.c.l.b16 %v952
        %v965 = vunpack.c.l.b16 %v953
        %v966 = vunpack.c.l.b16 %v954
        %v967 = vpack.c.b16 %v964, %v963
        %v968 = vpack.c.b16 %v966, %v965
        %vm971 = vcmask 261120
        %v973 = vsel %vm971, %v947, 0
        %v976 = vsel %vm971, %v948, 0
        %v979 = vsel %vm971, %v949, 0
        %v982 = vsel %vm971, %v950, 0
        %984 = vmatpush.bf16.msra.mxu0 0
        %985 = vmatpush.bf16.msra.mxu0 0
        %986 = vmatpush.bf16.msra.mxu0 0
        %987 = vmatpush.bf16.msra.mxu0 0
        %988 = vmatpush.bf16.msra.mxu0 0
        %989 = vmatpush.bf16.msra.mxu0 0
        %990 = vmatpush.bf16.msra.mxu0 %v968
        %991 = vmatpush.bf16.msra.mxu0 %v967
        %992 = vmatmul.bf16.gmra.mxu0 %v973
        %v993 = vpop.f32.mrf.mxu0
        %v994 = vadd.f32 %v957, %v993
        %v995 = vpop.f32.mrf.mxu0
        %v996 = vadd.f32 %v957, %v995
        %997 = vmatmul.bf16.gmra.mxu0 %v976
        %v998 = vpop.f32.mrf.mxu0
        %v999 = vadd.f32 %v957, %v998
        %v1000 = vpop.f32.mrf.mxu0
        %v1001 = vadd.f32 %v957, %v1000
        %1002 = vmatmul.bf16.gmra.mxu0 %v979
        %v1003 = vpop.f32.mrf.mxu0
        %v1004 = vadd.f32 %v957, %v1003
        %v1005 = vpop.f32.mrf.mxu0
        %v1006 = vadd.f32 %v957, %v1005
        %1007 = vmatmul.bf16.gmra.mxu0 %v982
        %v1008 = vpop.f32.mrf.mxu0
        %v1009 = vadd.f32 %v957, %v1008
        %v1010 = vpop.f32.mrf.mxu0
        %v1011 = vadd.f32 %v957, %v1010
        %1012 = vdwg.mxu0
        %v1013 = vpack.c.bf16 %v928, %v927
        %v1014 = vpack.c.bf16 %v930, %v929
        %v1015 = vpack.c.bf16 %v932, %v931
        %v1016 = vpack.c.bf16 %v934, %v933
        %v1017 = vld [vmem:[%s863] sm:$0xf]
        %v1018 = vld [vmem:[%s863 + $0x4] sm:$0xf]
        %v1019 = vld [vmem:[%s863 + $0x8] sm:$0xf]
        %v1020 = vld [vmem:[%s863 + $0xc] sm:$0xf]
        %v1021 = vld [vmem:[%s866] sm:$0x1]
        %v1023 = vperm.slane %v1021, 0
        %v1029 = vunpack.c.l.b16 %v1017
        %v1030 = vunpack.c.l.b16 %v1018
        %v1031 = vunpack.c.l.b16 %v1019
        %v1032 = vunpack.c.l.b16 %v1020
        %v1033 = vpack.c.b16 %v1030, %v1029
        %v1034 = vpack.c.b16 %v1032, %v1031
        %v1038 = vsel %vm971, %v1013, 0
        %v1041 = vsel %vm971, %v1014, 0
        %v1044 = vsel %vm971, %v1015, 0
        %v1047 = vsel %vm971, %v1016, 0
        %1049 = vmatpush.bf16.msra.mxu0 0
        %1050 = vmatpush.bf16.msra.mxu0 0
        %1051 = vmatpush.bf16.msra.mxu0 0
        %1052 = vmatpush.bf16.msra.mxu0 0
        %1053 = vmatpush.bf16.msra.mxu0 0
        %1054 = vmatpush.bf16.msra.mxu0 0
        %1055 = vmatpush.bf16.msra.mxu0 %v1034
        %1056 = vmatpush.bf16.msra.mxu0 %v1033
        %1057 = vmatmul.bf16.gmra.mxu0 %v1038
        %v1058 = vpop.f32.mrf.mxu0
        %v1059 = vadd.f32 %v1023, %v1058
        %v1060 = vpop.f32.mrf.mxu0
        %v1061 = vadd.f32 %v1023, %v1060
        %1062 = vmatmul.bf16.gmra.mxu0 %v1041
        %v1063 = vpop.f32.mrf.mxu0
        %v1064 = vadd.f32 %v1023, %v1063
        %v1065 = vpop.f32.mrf.mxu0
        %v1066 = vadd.f32 %v1023, %v1065
        %1067 = vmatmul.bf16.gmra.mxu0 %v1044
        %v1068 = vpop.f32.mrf.mxu0
        %v1069 = vadd.f32 %v1023, %v1068
        %v1070 = vpop.f32.mrf.mxu0
        %v1071 = vadd.f32 %v1023, %v1070
        %1072 = vmatmul.bf16.gmra.mxu0 %v1047
        %v1073 = vpop.f32.mrf.mxu0
        %v1074 = vadd.f32 %v1023, %v1073
        %v1075 = vpop.f32.mrf.mxu0
        %v1076 = vadd.f32 %v1023, %v1075
        %1077 = vdwg.mxu0
        %v1078 = vld [vmem:[%s1] sm:$0x3]
        %v1080 = vrot.slane %v1078, 1
        %v1081 = vpack.c.bf16 %v994, %v994
        %v1082 = vpack.c.bf16 %v996, %v996
        %v1083 = vpack.c.bf16 %v999, %v999
        %v1084 = vpack.c.bf16 %v1001, %v1001
        %v1085 = vpack.c.bf16 %v1004, %v1004
        %v1086 = vpack.c.bf16 %v1006, %v1006
        %v1087 = vpack.c.bf16 %v1009, %v1009
        %v1088 = vpack.c.bf16 %v1011, %v1011
        %v1089 = vpack.c.bf16 %v1059, %v1059
        %v1090 = vpack.c.bf16 %v1061, %v1061
        %v1091 = vpack.c.bf16 %v1064, %v1064
        %v1092 = vpack.c.bf16 %v1066, %v1066
        %v1093 = vpack.c.bf16 %v1069, %v1069
        %v1094 = vpack.c.bf16 %v1071, %v1071
        %v1095 = vpack.c.bf16 %v1074, %v1074
        %v1096 = vpack.c.bf16 %v1076, %v1076
        %v1101 = vunpack.c.l.b16 %v1081
        %v1102 = vunpack.c.l.b16 %v1082
        %v1103 = vunpack.c.l.b16 %v1083
        %v1104 = vunpack.c.l.b16 %v1084
        %v1105 = vpack.c.b16 %v1102, %v1101
        %v1106 = vpack.c.b16 %v1104, %v1103
        %1107 = vrot.lane.b32.xlu0 %v1105, 96
        %v1108 = vpop.permute.xlu0 %1107
        %1109 = vrot.lane.b32.xlu0 %v1106, 96
        %v1110 = vpop.permute.xlu0 %1109
        %vm1111 = vcmask 64512
        %v1113 = vsel %vm1111, %v1105, 0
        %v1116 = vsel %vm1111, %v1106, 0
        %v1119 = vsel %vm1111, %v1108, 0
        %v1122 = vsel %vm1111, %v1110, 0
        %1124 = vmatpush.bf16.xpose.msra.mxu0 0
        %1125 = vmatpush.bf16.xpose.msra.mxu0 0
        %1126 = vmatpush.bf16.xpose.msra.mxu0 0
        %1127 = vmatpush.bf16.xpose.msra.mxu0 0
        %1128 = vmatpush.bf16.xpose.msra.mxu0 0
        %1129 = vmatpush.bf16.xpose.msra.mxu0 0
        %1130 = vmatpush.bf16.xpose.msra.mxu0 %v1122
        %1131 = vmatpush.bf16.xpose.msra.mxu0 %v1119
        %1132 = vmatmul.bf16.gmra.mxu0 %v1113
        %v1133 = vpop.f32.mrf.mxu0
        %v1134 = vadd.f32 0.0, %v1133
        %v1135 = vpop.f32.mrf.mxu0
        %v1136 = vadd.f32 0.0, %v1135
        %1137 = vmatmul.bf16.gmra.mxu0 %v1116
        %v1138 = vpop.f32.mrf.mxu0
        %v1139 = vadd.f32 0.0, %v1138
        %v1140 = vpop.f32.mrf.mxu0
        %v1141 = vadd.f32 0.0, %v1140
        %1142 = vdwg.mxu0
        %v1147 = vunpack.c.l.b16 %v1085
        %v1148 = vunpack.c.l.b16 %v1086
        %v1149 = vunpack.c.l.b16 %v1087
        %v1150 = vunpack.c.l.b16 %v1088
        %v1151 = vpack.c.b16 %v1148, %v1147
        %v1152 = vpack.c.b16 %v1150, %v1149
        %1153 = vrot.lane.b32.xlu0 %v1151, 96
        %v1154 = vpop.permute.xlu0 %1153
        %1155 = vrot.lane.b32.xlu0 %v1152, 96
        %v1156 = vpop.permute.xlu0 %1155
        %v1158 = vsel %vm1111, %v1151, 0
        %v1161 = vsel %vm1111, %v1152, 0
        %v1164 = vsel %vm1111, %v1154, 0
        %v1167 = vsel %vm1111, %v1156, 0
        %1169 = vmatpush.bf16.xpose.msra.mxu0 0
        %1170 = vmatpush.bf16.xpose.msra.mxu0 0
        %1171 = vmatpush.bf16.xpose.msra.mxu0 0
        %1172 = vmatpush.bf16.xpose.msra.mxu0 0
        %1173 = vmatpush.bf16.xpose.msra.mxu0 0
        %1174 = vmatpush.bf16.xpose.msra.mxu0 0
        %1175 = vmatpush.bf16.xpose.msra.mxu0 %v1167
        %1176 = vmatpush.bf16.xpose.msra.mxu0 %v1164
        %1177 = vmatmul.bf16.gmra.mxu0 %v1158
        %v1178 = vpop.f32.mrf.mxu0
        %v1179 = vadd.f32 0.0, %v1178
        %v1180 = vpop.f32.mrf.mxu0
        %v1181 = vadd.f32 0.0, %v1180
        %1182 = vmatmul.bf16.gmra.mxu0 %v1161
        %v1183 = vpop.f32.mrf.mxu0
        %v1184 = vadd.f32 0.0, %v1183
        %v1185 = vpop.f32.mrf.mxu0
        %v1186 = vadd.f32 0.0, %v1185
        %1187 = vdwg.mxu0
        %v1188 = vmul.f32 %v1134, 0.35355338
        %v1189 = vmul.f32 %v1136, 0.35355338
        %v1190 = vmul.f32 %v1139, 0.35355338
        %v1191 = vmul.f32 %v1141, 0.35355338
        %v1192 = vmul.f32 %v1179, 0.35355338
        %v1193 = vmul.f32 %v1181, 0.35355338
        %v1194 = vmul.f32 %v1184, 0.35355338
        %v1195 = vmul.f32 %v1186, 0.35355338
        %v1196 = vperm.slane %v1078, 0
        %v1197 = vperm.slane %v1080, 0
        %v1200 = vadd.f32 %v1188, %v1196
        %v1201 = vadd.f32 %v1189, %v1196
        %v1202 = vadd.f32 %v1190, %v1196
        %v1203 = vadd.f32 %v1191, %v1196
        %v1204 = vadd.f32 %v1192, %v1197
        %v1205 = vadd.f32 %v1193, %v1197
        %v1206 = vadd.f32 %v1194, %v1197
        %v1207 = vadd.f32 %v1195, %v1197
        %v1208 = vsel %vm971, %v1200, -inf
        %1209 = vmax.xlane.f32.xlu0 %v1208
        %v1210 = vpop.xlane.xlu0 %1209
        %v1211 = vsel %vm971, %v1201, -inf
        %1212 = vmax.xlane.f32.xlu0 %v1211
        %v1213 = vpop.xlane.xlu0 %1212
        %v1214 = vsel %vm971, %v1202, -inf
        %1215 = vmax.xlane.f32.xlu0 %v1214
        %v1216 = vpop.xlane.xlu0 %1215
        %v1217 = vsel %vm971, %v1203, -inf
        %1218 = vmax.xlane.f32.xlu0 %v1217
        %v1219 = vpop.xlane.xlu0 %1218
        %v1220 = vsel %vm971, %v1204, -inf
        %1221 = vmax.xlane.f32.xlu0 %v1220
        %v1222 = vpop.xlane.xlu0 %1221
        %v1223 = vsel %vm971, %v1205, -inf
        %1224 = vmax.xlane.f32.xlu0 %v1223
        %v1225 = vpop.xlane.xlu0 %1224
        %v1226 = vsel %vm971, %v1206, -inf
        %1227 = vmax.xlane.f32.xlu0 %v1226
        %v1228 = vpop.xlane.xlu0 %1227
        %v1229 = vsel %vm971, %v1207, -inf
        %1230 = vmax.xlane.f32.xlu0 %v1229
        %v1231 = vpop.xlane.xlu0 %1230
        %v1232 = vsub.f32 %v1200, %v1210
        %v1233 = vsub.f32 %v1201, %v1213
        %v1234 = vsub.f32 %v1202, %v1216
        %v1235 = vsub.f32 %v1203, %v1219
        %v1236 = vsub.f32 %v1204, %v1222
        %v1237 = vsub.f32 %v1205, %v1225
        %v1238 = vsub.f32 %v1206, %v1228
        %v1239 = vsub.f32 %v1207, %v1231
        %v1240 = vmul.f32 %v1232, 1.442695
        %v1241 = vpow.pop %v1240
        %v1242 = vmul.f32 %v1233, 1.442695
        %v1243 = vpow.pop %v1242
        %v1244 = vmul.f32 %v1234, 1.442695
        %v1245 = vpow.pop %v1244
        %v1246 = vmul.f32 %v1235, 1.442695
        %v1247 = vpow.pop %v1246
        %v1248 = vmul.f32 %v1236, 1.442695
        %v1249 = vpow.pop %v1248
        %v1250 = vmul.f32 %v1237, 1.442695
        %v1251 = vpow.pop %v1250
        %v1252 = vmul.f32 %v1238, 1.442695
        %v1253 = vpow.pop %v1252
        %v1254 = vmul.f32 %v1239, 1.442695
        %v1255 = vpow.pop %v1254
        %v1256 = vsel %vm971, %v1241, 0.0
        %1257 = vadd.xlane.f32.xlu0 %v1256
        %v1258 = vpop.xlane.xlu0 %1257
        %v1259 = vsel %vm971, %v1243, 0.0
        %1260 = vadd.xlane.f32.xlu0 %v1259
        %v1261 = vpop.xlane.xlu0 %1260
        %v1262 = vsel %vm971, %v1245, 0.0
        %1263 = vadd.xlane.f32.xlu0 %v1262
        %v1264 = vpop.xlane.xlu0 %1263
        %v1265 = vsel %vm971, %v1247, 0.0
        %1266 = vadd.xlane.f32.xlu0 %v1265
        %v1267 = vpop.xlane.xlu0 %1266
        %v1268 = vsel %vm971, %v1249, 0.0
        %1269 = vadd.xlane.f32.xlu0 %v1268
        %v1270 = vpop.xlane.xlu0 %1269
        %v1271 = vsel %vm971, %v1251, 0.0
        %1272 = vadd.xlane.f32.xlu0 %v1271
        %v1273 = vpop.xlane.xlu0 %1272
        %v1274 = vsel %vm971, %v1253, 0.0
        %1275 = vadd.xlane.f32.xlu0 %v1274
        %v1276 = vpop.xlane.xlu0 %1275
        %v1277 = vsel %vm971, %v1255, 0.0
        %1278 = vadd.xlane.f32.xlu0 %v1277
        %v1279 = vpop.xlane.xlu0 %1278
        %v1280 = vrcp.pop %v1258
        %v1281 = vrcp.pop %v1261
        %v1282 = vrcp.pop %v1264
        %v1283 = vrcp.pop %v1267
        %v1284 = vrcp.pop %v1270
        %v1285 = vrcp.pop %v1273
        %v1286 = vrcp.pop %v1276
        %v1287 = vrcp.pop %v1279
        %v1288 = vmul.f32 %v1241, %v1280
        %v1289 = vmul.f32 %v1243, %v1281
        %v1290 = vmul.f32 %v1245, %v1282
        %v1291 = vmul.f32 %v1247, %v1283
        %v1292 = vmul.f32 %v1249, %v1284
        %v1293 = vmul.f32 %v1251, %v1285
        %v1294 = vmul.f32 %v1253, %v1286
        %v1295 = vmul.f32 %v1255, %v1287
        %v1296 = vpack.c.bf16 %v1288, %v1288
        %v1297 = vpack.c.bf16 %v1289, %v1289
        %v1298 = vpack.c.bf16 %v1290, %v1290
        %v1299 = vpack.c.bf16 %v1291, %v1291
        %v1300 = vpack.c.bf16 %v1292, %v1292
        %v1301 = vpack.c.bf16 %v1293, %v1293
        %v1302 = vpack.c.bf16 %v1294, %v1294
        %v1303 = vpack.c.bf16 %v1295, %v1295
        %v1308 = vunpack.c.l.b16 %v1296
        %v1309 = vunpack.c.l.b16 %v1297
        %v1310 = vunpack.c.l.b16 %v1298
        %v1311 = vunpack.c.l.b16 %v1299
        %v1312 = vpack.c.b16 %v1309, %v1308
        %v1313 = vpack.c.b16 %v1311, %v1310
        %v1318 = vunpack.c.l.b16 %v1089
        %v1319 = vunpack.c.l.b16 %v1090
        %v1320 = vunpack.c.l.b16 %v1091
        %v1321 = vunpack.c.l.b16 %v1092
        %v1322 = vpack.c.b16 %v1319, %v1318
        %v1323 = vpack.c.b16 %v1321, %v1320
        %v1327 = vsel %vm971, %v1312, 0
        %v1330 = vsel %vm971, %v1313, 0
        %1332 = vmatpush.bf16.msra.mxu0 0
        %1333 = vmatpush.bf16.msra.mxu0 0
        %1334 = vmatpush.bf16.msra.mxu0 0
        %1335 = vmatpush.bf16.msra.mxu0 0
        %1336 = vmatpush.bf16.msra.mxu0 0
        %1337 = vmatpush.bf16.msra.mxu0 0
        %1338 = vmatpush.bf16.msra.mxu0 %v1323
        %1339 = vmatpush.bf16.msra.mxu0 %v1322
        %1340 = vmatmul.bf16.gmra.mxu0 %v1327
        %v1341 = vpop.f32.mrf.mxu0
        %v1342 = vadd.f32 0.0, %v1341
        %v1343 = vpop.f32.mrf.mxu0
        %v1344 = vadd.f32 0.0, %v1343
        %1345 = vmatmul.bf16.gmra.mxu0 %v1330
        %v1346 = vpop.f32.mrf.mxu0
        %v1347 = vadd.f32 0.0, %v1346
        %v1348 = vpop.f32.mrf.mxu0
        %v1349 = vadd.f32 0.0, %v1348
        %1350 = vdwg.mxu0
        %v1355 = vunpack.c.l.b16 %v1300
        %v1356 = vunpack.c.l.b16 %v1301
        %v1357 = vunpack.c.l.b16 %v1302
        %v1358 = vunpack.c.l.b16 %v1303
        %v1359 = vpack.c.b16 %v1356, %v1355
        %v1360 = vpack.c.b16 %v1358, %v1357
        %v1365 = vunpack.c.l.b16 %v1093
        %v1366 = vunpack.c.l.b16 %v1094
        %v1367 = vunpack.c.l.b16 %v1095
        %v1368 = vunpack.c.l.b16 %v1096
        %v1369 = vpack.c.b16 %v1366, %v1365
        %v1370 = vpack.c.b16 %v1368, %v1367
        %v1374 = vsel %vm971, %v1359, 0
        %v1377 = vsel %vm971, %v1360, 0
        %1379 = vmatpush.bf16.msra.mxu0 0
        %1380 = vmatpush.bf16.msra.mxu0 0
        %1381 = vmatpush.bf16.msra.mxu0 0
        %1382 = vmatpush.bf16.msra.mxu0 0
        %1383 = vmatpush.bf16.msra.mxu0 0
        %1384 = vmatpush.bf16.msra.mxu0 0
        %1385 = vmatpush.bf16.msra.mxu0 %v1370
        %1386 = vmatpush.bf16.msra.mxu0 %v1369
        %1387 = vmatmul.bf16.gmra.mxu0 %v1374
        %v1388 = vpop.f32.mrf.mxu0
        %v1389 = vadd.f32 0.0, %v1388
        %v1390 = vpop.f32.mrf.mxu0
        %v1391 = vadd.f32 0.0, %v1390
        %1392 = vmatmul.bf16.gmra.mxu0 %v1377
        %v1393 = vpop.f32.mrf.mxu0
        %v1394 = vadd.f32 0.0, %v1393
        %v1395 = vpop.f32.mrf.mxu0
        %v1396 = vadd.f32 0.0, %v1395
        %1397 = vdwg.mxu0
        %v1398 = vpack.c.bf16 %v1344, %v1342
        %v1399 = vpack.c.bf16 %v1349, %v1347
        %v1400 = vpack.c.bf16 %v1391, %v1389
        %v1401 = vpack.c.bf16 %v1396, %v1394
        %v1402 = vld [vmem:[%s871] sm:$0xf]
        %1403 = vrot.lane.b32.xlu0 %v1105, 120
        %v1404 = vpop.permute.xlu0 %1403
        %1405 = vrot.lane.b32.xlu0 %v1106, 120
        %v1406 = vpop.permute.xlu0 %1405
        %1407 = vrot.lane.b32.xlu0 %v1105, 88
        %v1408 = vpop.permute.xlu0 %1407
        %1409 = vrot.lane.b32.xlu0 %v1106, 88
        %v1410 = vpop.permute.xlu0 %1409
        %v1412 = vsel %vm1111, %v1404, 0
        %v1415 = vsel %vm1111, %v1406, 0
        %v1418 = vsel %vm1111, %v1408, 0
        %v1421 = vsel %vm1111, %v1410, 0
        %1423 = vmatpush.bf16.xpose.msra.mxu0 0
        %1424 = vmatpush.bf16.xpose.msra.mxu0 0
        %1425 = vmatpush.bf16.xpose.msra.mxu0 0
        %1426 = vmatpush.bf16.xpose.msra.mxu0 0
        %1427 = vmatpush.bf16.xpose.msra.mxu0 0
        %1428 = vmatpush.bf16.xpose.msra.mxu0 0
        %1429 = vmatpush.bf16.xpose.msra.mxu0 %v1421
        %1430 = vmatpush.bf16.xpose.msra.mxu0 %v1418
        %1431 = vmatmul.bf16.gmra.mxu0 %v1412
        %v1432 = vpop.f32.mrf.mxu0
        %v1433 = vadd.f32 0.0, %v1432
        %v1434 = vpop.f32.mrf.mxu0
        %v1435 = vadd.f32 0.0, %v1434
        %1436 = vmatmul.bf16.gmra.mxu0 %v1415
        %v1437 = vpop.f32.mrf.mxu0
        %v1438 = vadd.f32 0.0, %v1437
        %v1439 = vpop.f32.mrf.mxu0
        %v1440 = vadd.f32 0.0, %v1439
        %1441 = vdwg.mxu0
        %1442 = vrot.lane.b32.xlu0 %v1151, 120
        %v1443 = vpop.permute.xlu0 %1442
        %1444 = vrot.lane.b32.xlu0 %v1152, 120
        %v1445 = vpop.permute.xlu0 %1444
        %1446 = vrot.lane.b32.xlu0 %v1151, 88
        %v1447 = vpop.permute.xlu0 %1446
        %1448 = vrot.lane.b32.xlu0 %v1152, 88
        %v1449 = vpop.permute.xlu0 %1448
        %v1451 = vsel %vm1111, %v1443, 0
        %v1454 = vsel %vm1111, %v1445, 0
        %v1457 = vsel %vm1111, %v1447, 0
        %v1460 = vsel %vm1111, %v1449, 0
        %1462 = vmatpush.bf16.xpose.msra.mxu0 0
        %1463 = vmatpush.bf16.xpose.msra.mxu0 0
        %1464 = vmatpush.bf16.xpose.msra.mxu0 0
        %1465 = vmatpush.bf16.xpose.msra.mxu0 0
        %1466 = vmatpush.bf16.xpose.msra.mxu0 0
        %1467 = vmatpush.bf16.xpose.msra.mxu0 0
        %1468 = vmatpush.bf16.xpose.msra.mxu0 %v1460
        %1469 = vmatpush.bf16.xpose.msra.mxu0 %v1457
        %1470 = vmatmul.bf16.gmra.mxu0 %v1451
        %v1471 = vpop.f32.mrf.mxu0
        %v1472 = vadd.f32 0.0, %v1471
        %v1473 = vpop.f32.mrf.mxu0
        %v1474 = vadd.f32 0.0, %v1473
        %1475 = vmatmul.bf16.gmra.mxu0 %v1454
        %v1476 = vpop.f32.mrf.mxu0
        %v1477 = vadd.f32 0.0, %v1476
        %v1478 = vpop.f32.mrf.mxu0
        %v1479 = vadd.f32 0.0, %v1478
        %1480 = vdwg.mxu0
        %v1481 = vmul.f32 %v1433, 0.35355338
        %v1482 = vmul.f32 %v1435, 0.35355338
        %v1483 = vmul.f32 %v1438, 0.35355338
        %v1484 = vmul.f32 %v1440, 0.35355338
        %v1485 = vmul.f32 %v1472, 0.35355338
        %v1486 = vmul.f32 %v1474, 0.35355338
        %v1487 = vmul.f32 %v1477, 0.35355338
        %v1488 = vmul.f32 %v1479, 0.35355338
        %v1489 = vadd.f32 %v1481, %v1196
        %v1490 = vadd.f32 %v1482, %v1196
        %v1491 = vadd.f32 %v1483, %v1196
        %v1492 = vadd.f32 %v1484, %v1196
        %v1493 = vadd.f32 %v1485, %v1197
        %v1494 = vadd.f32 %v1486, %v1197
        %v1495 = vadd.f32 %v1487, %v1197
        %v1496 = vadd.f32 %v1488, %v1197
        %v1497 = vsel %vm971, %v1489, -inf
        %1498 = vmax.xlane.f32.xlu0 %v1497
        %v1499 = vpop.xlane.xlu0 %1498
        %v1500 = vsel %vm971, %v1490, -inf
        %1501 = vmax.xlane.f32.xlu0 %v1500
        %v1502 = vpop.xlane.xlu0 %1501
        %v1503 = vsel %vm971, %v1491, -inf
        %1504 = vmax.xlane.f32.xlu0 %v1503
        %v1505 = vpop.xlane.xlu0 %1504
        %v1506 = vsel %vm971, %v1492, -inf
        %1507 = vmax.xlane.f32.xlu0 %v1506
        %v1508 = vpop.xlane.xlu0 %1507
        %v1509 = vsel %vm971, %v1493, -inf
        %1510 = vmax.xlane.f32.xlu0 %v1509
        %v1511 = vpop.xlane.xlu0 %1510
        %v1512 = vsel %vm971, %v1494, -inf
        %1513 = vmax.xlane.f32.xlu0 %v1512
        %v1514 = vpop.xlane.xlu0 %1513
        %v1515 = vsel %vm971, %v1495, -inf
        %1516 = vmax.xlane.f32.xlu0 %v1515
        %v1517 = vpop.xlane.xlu0 %1516
        %v1518 = vsel %vm971, %v1496, -inf
        %1519 = vmax.xlane.f32.xlu0 %v1518
        %v1520 = vpop.xlane.xlu0 %1519
        %v1521 = vsub.f32 %v1489, %v1499
        %v1522 = vsub.f32 %v1490, %v1502
        %v1523 = vsub.f32 %v1491, %v1505
        %v1524 = vsub.f32 %v1492, %v1508
        %v1525 = vsub.f32 %v1493, %v1511
        %v1526 = vsub.f32 %v1494, %v1514
        %v1527 = vsub.f32 %v1495, %v1517
        %v1528 = vsub.f32 %v1496, %v1520
        %v1529 = vmul.f32 %v1521, 1.442695
        %v1530 = vpow.pop %v1529
        %v1531 = vmul.f32 %v1522, 1.442695
        %v1532 = vpow.pop %v1531
        %v1533 = vmul.f32 %v1523, 1.442695
        %v1534 = vpow.pop %v1533
        %v1535 = vmul.f32 %v1524, 1.442695
        %v1536 = vpow.pop %v1535
        %v1537 = vmul.f32 %v1525, 1.442695
        %v1538 = vpow.pop %v1537
        %v1539 = vmul.f32 %v1526, 1.442695
        %v1540 = vpow.pop %v1539
        %v1541 = vmul.f32 %v1527, 1.442695
        %v1542 = vpow.pop %v1541
        %v1543 = vmul.f32 %v1528, 1.442695
        %v1544 = vpow.pop %v1543
        %v1545 = vsel %vm971, %v1530, 0.0
        %1546 = vadd.xlane.f32.xlu0 %v1545
        %v1547 = vpop.xlane.xlu0 %1546
        %v1548 = vsel %vm971, %v1532, 0.0
        %1549 = vadd.xlane.f32.xlu0 %v1548
        %v1550 = vpop.xlane.xlu0 %1549
        %v1551 = vsel %vm971, %v1534, 0.0
        %1552 = vadd.xlane.f32.xlu0 %v1551
        %v1553 = vpop.xlane.xlu0 %1552
        %v1554 = vsel %vm971, %v1536, 0.0
        %1555 = vadd.xlane.f32.xlu0 %v1554
        %v1556 = vpop.xlane.xlu0 %1555
        %v1557 = vsel %vm971, %v1538, 0.0
        %1558 = vadd.xlane.f32.xlu0 %v1557
        %v1559 = vpop.xlane.xlu0 %1558
        %v1560 = vsel %vm971, %v1540, 0.0
        %1561 = vadd.xlane.f32.xlu0 %v1560
        %v1562 = vpop.xlane.xlu0 %1561
        %v1563 = vsel %vm971, %v1542, 0.0
        %1564 = vadd.xlane.f32.xlu0 %v1563
        %v1565 = vpop.xlane.xlu0 %1564
        %v1566 = vsel %vm971, %v1544, 0.0
        %1567 = vadd.xlane.f32.xlu0 %v1566
        %v1568 = vpop.xlane.xlu0 %1567
        %v1569 = vrcp.pop %v1547
        %v1570 = vrcp.pop %v1550
        %v1571 = vrcp.pop %v1553
        %v1572 = vrcp.pop %v1556
        %v1573 = vrcp.pop %v1559
        %v1574 = vrcp.pop %v1562
        %v1575 = vrcp.pop %v1565
        %v1576 = vrcp.pop %v1568
        %v1577 = vmul.f32 %v1530, %v1569
        %v1578 = vmul.f32 %v1532, %v1570
        %v1579 = vmul.f32 %v1534, %v1571
        %v1580 = vmul.f32 %v1536, %v1572
        %v1581 = vmul.f32 %v1538, %v1573
        %v1582 = vmul.f32 %v1540, %v1574
        %v1583 = vmul.f32 %v1542, %v1575
        %v1584 = vmul.f32 %v1544, %v1576
        %v1585 = vpack.c.bf16 %v1577, %v1577
        %v1586 = vpack.c.bf16 %v1578, %v1578
        %v1587 = vpack.c.bf16 %v1579, %v1579
        %v1588 = vpack.c.bf16 %v1580, %v1580
        %v1589 = vpack.c.bf16 %v1581, %v1581
        %v1590 = vpack.c.bf16 %v1582, %v1582
        %v1591 = vpack.c.bf16 %v1583, %v1583
        %v1592 = vpack.c.bf16 %v1584, %v1584
        %v1597 = vunpack.c.l.b16 %v1585
        %v1598 = vunpack.c.l.b16 %v1586
        %v1599 = vunpack.c.l.b16 %v1587
        %v1600 = vunpack.c.l.b16 %v1588
        %v1601 = vpack.c.b16 %v1598, %v1597
        %v1602 = vpack.c.b16 %v1600, %v1599
        %1603 = vrot.lane.b32.xlu0 %v1322, 120
        %v1604 = vpop.permute.xlu0 %1603
        %1605 = vrot.lane.b32.xlu0 %v1323, 120
        %v1606 = vpop.permute.xlu0 %1605
        %v1610 = vsel %vm971, %v1601, 0
        %v1613 = vsel %vm971, %v1602, 0
        %1615 = vmatpush.bf16.msra.mxu0 0
        %1616 = vmatpush.bf16.msra.mxu0 0
        %1617 = vmatpush.bf16.msra.mxu0 0
        %1618 = vmatpush.bf16.msra.mxu0 0
        %1619 = vmatpush.bf16.msra.mxu0 0
        %1620 = vmatpush.bf16.msra.mxu0 0
        %1621 = vmatpush.bf16.msra.mxu0 %v1606
        %1622 = vmatpush.bf16.msra.mxu0 %v1604
        %1623 = vmatmul.bf16.gmra.mxu0 %v1610
        %v1624 = vpop.f32.mrf.mxu0
        %v1625 = vadd.f32 0.0, %v1624
        %v1626 = vpop.f32.mrf.mxu0
        %v1627 = vadd.f32 0.0, %v1626
        %1628 = vmatmul.bf16.gmra.mxu0 %v1613
        %v1629 = vpop.f32.mrf.mxu0
        %v1630 = vadd.f32 0.0, %v1629
        %v1631 = vpop.f32.mrf.mxu0
        %v1632 = vadd.f32 0.0, %v1631
        %1633 = vdwg.mxu0
        %v1638 = vunpack.c.l.b16 %v1589
        %v1639 = vunpack.c.l.b16 %v1590
        %v1640 = vunpack.c.l.b16 %v1591
        %v1641 = vunpack.c.l.b16 %v1592
        %v1642 = vpack.c.b16 %v1639, %v1638
        %v1643 = vpack.c.b16 %v1641, %v1640
        %1644 = vrot.lane.b32.xlu0 %v1369, 120
        %v1645 = vpop.permute.xlu0 %1644
        %1646 = vrot.lane.b32.xlu0 %v1370, 120
        %v1647 = vpop.permute.xlu0 %1646
        %v1651 = vsel %vm971, %v1642, 0
        %v1654 = vsel %vm971, %v1643, 0
        %1656 = vmatpush.bf16.msra.mxu0 0
        %1657 = vmatpush.bf16.msra.mxu0 0
        %1658 = vmatpush.bf16.msra.mxu0 0
        %1659 = vmatpush.bf16.msra.mxu0 0
        %1660 = vmatpush.bf16.msra.mxu0 0
        %1661 = vmatpush.bf16.msra.mxu0 0
        %1662 = vmatpush.bf16.msra.mxu0 %v1647
        %1663 = vmatpush.bf16.msra.mxu0 %v1645
        %1664 = vmatmul.bf16.gmra.mxu0 %v1651
        %v1665 = vpop.f32.mrf.mxu0
        %v1666 = vadd.f32 0.0, %v1665
        %v1667 = vpop.f32.mrf.mxu0
        %v1668 = vadd.f32 0.0, %v1667
        %1669 = vmatmul.bf16.gmra.mxu0 %v1654
        %v1670 = vpop.f32.mrf.mxu0
        %v1671 = vadd.f32 0.0, %v1670
        %v1672 = vpop.f32.mrf.mxu0
        %v1673 = vadd.f32 0.0, %v1672
        %1674 = vdwg.mxu0
        %v1675 = vpack.c.bf16 %v1627, %v1625
        %v1676 = vpack.c.bf16 %v1632, %v1630
        %v1677 = vpack.c.bf16 %v1668, %v1666
        %v1678 = vpack.c.bf16 %v1673, %v1671
        %v1679 = vld [vmem:[%s871 + $0x4] sm:$0xf]
        %v1681 = vsel %vm1111, %v1675, 0
        %v1684 = vsel %vm1111, %v1676, 0
        %v1687 = vsel %vm1111, %v1677, 0
        %v1690 = vsel %vm1111, %v1678, 0
        %vm1692 = vcmask 1043456
        %v1694 = vsel %vm1692, %v1679, 0
        %1696 = vmatpush.bf16.msra.mxu0 0
        %1697 = vmatpush.bf16.msra.mxu0 0
        %1698 = vmatpush.bf16.msra.mxu0 0
        %1699 = vmatpush.bf16.msra.mxu0 0
        %1700 = vmatpush.bf16.msra.mxu0 0
        %1701 = vmatpush.bf16.msra.mxu0 0
        %1702 = vmatpush.bf16.msra.mxu0 0
        %1703 = vmatpush.bf16.msra.mxu0 %v1694
        %1704 = vmatmul.bf16.gmra.mxu0 %v1681
        %v1705 = vpop.f32.mrf.mxu0
        %v1706 = vadd.f32 0.0, %v1705
        %v1707 = vpop.f32.mrf.mxu0
        %v1708 = vadd.f32 0.0, %v1707
        %1709 = vmatmul.bf16.gmra.mxu0 %v1684
        %v1710 = vpop.f32.mrf.mxu0
        %v1711 = vadd.f32 0.0, %v1710
        %v1712 = vpop.f32.mrf.mxu0
        %v1713 = vadd.f32 0.0, %v1712
        %1714 = vmatmul.bf16.gmra.mxu0 %v1687
        %v1715 = vpop.f32.mrf.mxu0
        %v1716 = vadd.f32 0.0, %v1715
        %v1717 = vpop.f32.mrf.mxu0
        %v1718 = vadd.f32 0.0, %v1717
        %1719 = vmatmul.bf16.gmra.mxu0 %v1690
        %v1720 = vpop.f32.mrf.mxu0
        %v1721 = vadd.f32 0.0, %v1720
        %v1722 = vpop.f32.mrf.mxu0
        %v1723 = vadd.f32 0.0, %v1722
        %1724 = vdwg.mxu0
        %v1726 = vsel %vm1111, %v1398, 0
        %v1729 = vsel %vm1111, %v1399, 0
        %v1732 = vsel %vm1111, %v1400, 0
        %v1735 = vsel %vm1111, %v1401, 0
        %v1738 = vsel %vm1692, %v1402, 0
        %1740 = vmatpush.bf16.msra.mxu0 0
        %1741 = vmatpush.bf16.msra.mxu0 0
        %1742 = vmatpush.bf16.msra.mxu0 0
        %1743 = vmatpush.bf16.msra.mxu0 0
        %1744 = vmatpush.bf16.msra.mxu0 0
        %1745 = vmatpush.bf16.msra.mxu0 0
        %1746 = vmatpush.bf16.msra.mxu0 0
        %1747 = vmatpush.bf16.msra.mxu0 %v1738
        %1748 = vmatmul.bf16.gmra.mxu0 %v1726
        %v1749 = vpop.f32.mrf.mxu0
        %v1750 = vadd.f32 %v1706, %v1749
        %v1751 = vpop.f32.mrf.mxu0
        %v1752 = vadd.f32 %v1708, %v1751
        %1753 = vmatmul.bf16.gmra.mxu0 %v1729
        %v1754 = vpop.f32.mrf.mxu0
        %v1755 = vadd.f32 %v1711, %v1754
        %v1756 = vpop.f32.mrf.mxu0
        %v1757 = vadd.f32 %v1713, %v1756
        %1758 = vmatmul.bf16.gmra.mxu0 %v1732
        %v1759 = vpop.f32.mrf.mxu0
        %v1760 = vadd.f32 %v1716, %v1759
        %v1761 = vpop.f32.mrf.mxu0
        %v1762 = vadd.f32 %v1718, %v1761
        %1763 = vmatmul.bf16.gmra.mxu0 %v1735
        %v1764 = vpop.f32.mrf.mxu0
        %v1765 = vadd.f32 %v1721, %v1764
        %v1766 = vpop.f32.mrf.mxu0
        %v1767 = vadd.f32 %v1723, %v1766
        %1768 = vdwg.mxu0
        %1769 = vrot.lane.b32.xlu0 %v1105, 112
        %v1770 = vpop.permute.xlu0 %1769
        %1771 = vrot.lane.b32.xlu0 %v1106, 112
        %v1772 = vpop.permute.xlu0 %1771
        %1773 = vrot.lane.b32.xlu0 %v1105, 80
        %v1774 = vpop.permute.xlu0 %1773
        %1775 = vrot.lane.b32.xlu0 %v1106, 80
        %v1776 = vpop.permute.xlu0 %1775
        %v1778 = vsel %vm1111, %v1770, 0
        %v1781 = vsel %vm1111, %v1772, 0
        %v1784 = vsel %vm1111, %v1774, 0
        %v1787 = vsel %vm1111, %v1776, 0
        %1789 = vmatpush.bf16.xpose.msra.mxu0 0
        %1790 = vmatpush.bf16.xpose.msra.mxu0 0
        %1791 = vmatpush.bf16.xpose.msra.mxu0 0
        %1792 = vmatpush.bf16.xpose.msra.mxu0 0
        %1793 = vmatpush.bf16.xpose.msra.mxu0 0
        %1794 = vmatpush.bf16.xpose.msra.mxu0 0
        %1795 = vmatpush.bf16.xpose.msra.mxu0 %v1787
        %1796 = vmatpush.bf16.xpose.msra.mxu0 %v1784
        %1797 = vmatmul.bf16.gmra.mxu0 %v1778
        %v1798 = vpop.f32.mrf.mxu0
        %v1799 = vadd.f32 0.0, %v1798
        %v1800 = vpop.f32.mrf.mxu0
        %v1801 = vadd.f32 0.0, %v1800
        %1802 = vmatmul.bf16.gmra.mxu0 %v1781
        %v1803 = vpop.f32.mrf.mxu0
        %v1804 = vadd.f32 0.0, %v1803
        %v1805 = vpop.f32.mrf.mxu0
        %v1806 = vadd.f32 0.0, %v1805
        %1807 = vdwg.mxu0
        %1808 = vrot.lane.b32.xlu0 %v1151, 112
        %v1809 = vpop.permute.xlu0 %1808
        %1810 = vrot.lane.b32.xlu0 %v1152, 112
        %v1811 = vpop.permute.xlu0 %1810
        %1812 = vrot.lane.b32.xlu0 %v1151, 80
        %v1813 = vpop.permute.xlu0 %1812
        %1814 = vrot.lane.b32.xlu0 %v1152, 80
        %v1815 = vpop.permute.xlu0 %1814
        %v1817 = vsel %vm1111, %v1809, 0
        %v1820 = vsel %vm1111, %v1811, 0
        %v1823 = vsel %vm1111, %v1813, 0
        %v1826 = vsel %vm1111, %v1815, 0
        %1828 = vmatpush.bf16.xpose.msra.mxu0 0
        %1829 = vmatpush.bf16.xpose.msra.mxu0 0
        %1830 = vmatpush.bf16.xpose.msra.mxu0 0
        %1831 = vmatpush.bf16.xpose.msra.mxu0 0
        %1832 = vmatpush.bf16.xpose.msra.mxu0 0
        %1833 = vmatpush.bf16.xpose.msra.mxu0 0
        %1834 = vmatpush.bf16.xpose.msra.mxu0 %v1826
        %1835 = vmatpush.bf16.xpose.msra.mxu0 %v1823
        %1836 = vmatmul.bf16.gmra.mxu0 %v1817
        %v1837 = vpop.f32.mrf.mxu0
        %v1838 = vadd.f32 0.0, %v1837
        %v1839 = vpop.f32.mrf.mxu0
        %v1840 = vadd.f32 0.0, %v1839
        %1841 = vmatmul.bf16.gmra.mxu0 %v1820
        %v1842 = vpop.f32.mrf.mxu0
        %v1843 = vadd.f32 0.0, %v1842
        %v1844 = vpop.f32.mrf.mxu0
        %v1845 = vadd.f32 0.0, %v1844
        %1846 = vdwg.mxu0
        %v1847 = vmul.f32 %v1799, 0.35355338
        %v1848 = vmul.f32 %v1801, 0.35355338
        %v1849 = vmul.f32 %v1804, 0.35355338
        %v1850 = vmul.f32 %v1806, 0.35355338
        %v1851 = vmul.f32 %v1838, 0.35355338
        %v1852 = vmul.f32 %v1840, 0.35355338
        %v1853 = vmul.f32 %v1843, 0.35355338
        %v1854 = vmul.f32 %v1845, 0.35355338
        %v1855 = vadd.f32 %v1847, %v1196
        %v1856 = vadd.f32 %v1848, %v1196
        %v1857 = vadd.f32 %v1849, %v1196
        %v1858 = vadd.f32 %v1850, %v1196
        %v1859 = vadd.f32 %v1851, %v1197
        %v1860 = vadd.f32 %v1852, %v1197
        %v1861 = vadd.f32 %v1853, %v1197
        %v1862 = vadd.f32 %v1854, %v1197
        %v1863 = vsel %vm971, %v1855, -inf
        %1864 = vmax.xlane.f32.xlu0 %v1863
        %v1865 = vpop.xlane.xlu0 %1864
        %v1866 = vsel %vm971, %v1856, -inf
        %1867 = vmax.xlane.f32.xlu0 %v1866
        %v1868 = vpop.xlane.xlu0 %1867
        %v1869 = vsel %vm971, %v1857, -inf
        %1870 = vmax.xlane.f32.xlu0 %v1869
        %v1871 = vpop.xlane.xlu0 %1870
        %v1872 = vsel %vm971, %v1858, -inf
        %1873 = vmax.xlane.f32.xlu0 %v1872
        %v1874 = vpop.xlane.xlu0 %1873
        %v1875 = vsel %vm971, %v1859, -inf
        %1876 = vmax.xlane.f32.xlu0 %v1875
        %v1877 = vpop.xlane.xlu0 %1876
        %v1878 = vsel %vm971, %v1860, -inf
        %1879 = vmax.xlane.f32.xlu0 %v1878
        %v1880 = vpop.xlane.xlu0 %1879
        %v1881 = vsel %vm971, %v1861, -inf
        %1882 = vmax.xlane.f32.xlu0 %v1881
        %v1883 = vpop.xlane.xlu0 %1882
        %v1884 = vsel %vm971, %v1862, -inf
        %1885 = vmax.xlane.f32.xlu0 %v1884
        %v1886 = vpop.xlane.xlu0 %1885
        %v1887 = vsub.f32 %v1855, %v1865
        %v1888 = vsub.f32 %v1856, %v1868
        %v1889 = vsub.f32 %v1857, %v1871
        %v1890 = vsub.f32 %v1858, %v1874
        %v1891 = vsub.f32 %v1859, %v1877
        %v1892 = vsub.f32 %v1860, %v1880
        %v1893 = vsub.f32 %v1861, %v1883
        %v1894 = vsub.f32 %v1862, %v1886
        %v1895 = vmul.f32 %v1887, 1.442695
        %v1896 = vpow.pop %v1895
        %v1897 = vmul.f32 %v1888, 1.442695
        %v1898 = vpow.pop %v1897
        %v1899 = vmul.f32 %v1889, 1.442695
        %v1900 = vpow.pop %v1899
        %v1901 = vmul.f32 %v1890, 1.442695
        %v1902 = vpow.pop %v1901
        %v1903 = vmul.f32 %v1891, 1.442695
        %v1904 = vpow.pop %v1903
        %v1905 = vmul.f32 %v1892, 1.442695
        %v1906 = vpow.pop %v1905
        %v1907 = vmul.f32 %v1893, 1.442695
        %v1908 = vpow.pop %v1907
        %v1909 = vmul.f32 %v1894, 1.442695
        %v1910 = vpow.pop %v1909
        %v1911 = vsel %vm971, %v1896, 0.0
        %1912 = vadd.xlane.f32.xlu0 %v1911
        %v1913 = vpop.xlane.xlu0 %1912
        %v1914 = vsel %vm971, %v1898, 0.0
        %1915 = vadd.xlane.f32.xlu0 %v1914
        %v1916 = vpop.xlane.xlu0 %1915
        %v1917 = vsel %vm971, %v1900, 0.0
        %1918 = vadd.xlane.f32.xlu0 %v1917
        %v1919 = vpop.xlane.xlu0 %1918
        %v1920 = vsel %vm971, %v1902, 0.0
        %1921 = vadd.xlane.f32.xlu0 %v1920
        %v1922 = vpop.xlane.xlu0 %1921
        %v1923 = vsel %vm971, %v1904, 0.0
        %1924 = vadd.xlane.f32.xlu0 %v1923
        %v1925 = vpop.xlane.xlu0 %1924
        %v1926 = vsel %vm971, %v1906, 0.0
        %1927 = vadd.xlane.f32.xlu0 %v1926
        %v1928 = vpop.xlane.xlu0 %1927
        %v1929 = vsel %vm971, %v1908, 0.0
        %1930 = vadd.xlane.f32.xlu0 %v1929
        %v1931 = vpop.xlane.xlu0 %1930
        %v1932 = vsel %vm971, %v1910, 0.0
        %1933 = vadd.xlane.f32.xlu0 %v1932
        %v1934 = vpop.xlane.xlu0 %1933
        %v1935 = vrcp.pop %v1913
        %v1936 = vrcp.pop %v1916
        %v1937 = vrcp.pop %v1919
        %v1938 = vrcp.pop %v1922
        %v1939 = vrcp.pop %v1925
        %v1940 = vrcp.pop %v1928
        %v1941 = vrcp.pop %v1931
        %v1942 = vrcp.pop %v1934
        %v1943 = vmul.f32 %v1896, %v1935
        %v1944 = vmul.f32 %v1898, %v1936
        %v1945 = vmul.f32 %v1900, %v1937
        %v1946 = vmul.f32 %v1902, %v1938
        %v1947 = vmul.f32 %v1904, %v1939
        %v1948 = vmul.f32 %v1906, %v1940
        %v1949 = vmul.f32 %v1908, %v1941
        %v1950 = vmul.f32 %v1910, %v1942
        %v1951 = vpack.c.bf16 %v1943, %v1943
        %v1952 = vpack.c.bf16 %v1944, %v1944
        %v1953 = vpack.c.bf16 %v1945, %v1945
        %v1954 = vpack.c.bf16 %v1946, %v1946
        %v1955 = vpack.c.bf16 %v1947, %v1947
        %v1956 = vpack.c.bf16 %v1948, %v1948
        %v1957 = vpack.c.bf16 %v1949, %v1949
        %v1958 = vpack.c.bf16 %v1950, %v1950
        %v1963 = vunpack.c.l.b16 %v1951
        %v1964 = vunpack.c.l.b16 %v1952
        %v1965 = vunpack.c.l.b16 %v1953
        %v1966 = vunpack.c.l.b16 %v1954
        %v1967 = vpack.c.b16 %v1964, %v1963
        %v1968 = vpack.c.b16 %v1966, %v1965
        %1969 = vrot.lane.b32.xlu0 %v1322, 112
        %v1970 = vpop.permute.xlu0 %1969
        %1971 = vrot.lane.b32.xlu0 %v1323, 112
        %v1972 = vpop.permute.xlu0 %1971
        %v1976 = vsel %vm971, %v1967, 0
        %v1979 = vsel %vm971, %v1968, 0
        %1981 = vmatpush.bf16.msra.mxu0 0
        %1982 = vmatpush.bf16.msra.mxu0 0
        %1983 = vmatpush.bf16.msra.mxu0 0
        %1984 = vmatpush.bf16.msra.mxu0 0
        %1985 = vmatpush.bf16.msra.mxu0 0
        %1986 = vmatpush.bf16.msra.mxu0 0
        %1987 = vmatpush.bf16.msra.mxu0 %v1972
        %1988 = vmatpush.bf16.msra.mxu0 %v1970
        %1989 = vmatmul.bf16.gmra.mxu0 %v1976
        %v1990 = vpop.f32.mrf.mxu0
        %v1991 = vadd.f32 0.0, %v1990
        %v1992 = vpop.f32.mrf.mxu0
        %v1993 = vadd.f32 0.0, %v1992
        %1994 = vmatmul.bf16.gmra.mxu0 %v1979
        %v1995 = vpop.f32.mrf.mxu0
        %v1996 = vadd.f32 0.0, %v1995
        %v1997 = vpop.f32.mrf.mxu0
        %v1998 = vadd.f32 0.0, %v1997
        %1999 = vdwg.mxu0
        %v2004 = vunpack.c.l.b16 %v1955
        %v2005 = vunpack.c.l.b16 %v1956
        %v2006 = vunpack.c.l.b16 %v1957
        %v2007 = vunpack.c.l.b16 %v1958
        %v2008 = vpack.c.b16 %v2005, %v2004
        %v2009 = vpack.c.b16 %v2007, %v2006
        %2010 = vrot.lane.b32.xlu0 %v1369, 112
        %v2011 = vpop.permute.xlu0 %2010
        %2012 = vrot.lane.b32.xlu0 %v1370, 112
        %v2013 = vpop.permute.xlu0 %2012
        %v2017 = vsel %vm971, %v2008, 0
        %v2020 = vsel %vm971, %v2009, 0
        %2022 = vmatpush.bf16.msra.mxu0 0
        %2023 = vmatpush.bf16.msra.mxu0 0
        %2024 = vmatpush.bf16.msra.mxu0 0
        %2025 = vmatpush.bf16.msra.mxu0 0
        %2026 = vmatpush.bf16.msra.mxu0 0
        %2027 = vmatpush.bf16.msra.mxu0 0
        %2028 = vmatpush.bf16.msra.mxu0 %v2013
        %2029 = vmatpush.bf16.msra.mxu0 %v2011
        %2030 = vmatmul.bf16.gmra.mxu0 %v2017
        %v2031 = vpop.f32.mrf.mxu0
        %v2032 = vadd.f32 0.0, %v2031
        %v2033 = vpop.f32.mrf.mxu0
        %v2034 = vadd.f32 0.0, %v2033
        %2035 = vmatmul.bf16.gmra.mxu0 %v2020
        %v2036 = vpop.f32.mrf.mxu0
        %v2037 = vadd.f32 0.0, %v2036
        %v2038 = vpop.f32.mrf.mxu0
        %v2039 = vadd.f32 0.0, %v2038
        %2040 = vdwg.mxu0
        %v2041 = vpack.c.bf16 %v1993, %v1991
        %v2042 = vpack.c.bf16 %v1998, %v1996
        %v2043 = vpack.c.bf16 %v2034, %v2032
        %v2044 = vpack.c.bf16 %v2039, %v2037
        %v2045 = vld [vmem:[%s871 + $0x8] sm:$0xf]
        %v2047 = vsel %vm1111, %v2041, 0
        %v2050 = vsel %vm1111, %v2042, 0
        %v2053 = vsel %vm1111, %v2043, 0
        %v2056 = vsel %vm1111, %v2044, 0
        %v2059 = vsel %vm1692, %v2045, 0
        %2061 = vmatpush.bf16.msra.mxu0 0
        %2062 = vmatpush.bf16.msra.mxu0 0
        %2063 = vmatpush.bf16.msra.mxu0 0
        %2064 = vmatpush.bf16.msra.mxu0 0
        %2065 = vmatpush.bf16.msra.mxu0 0
        %2066 = vmatpush.bf16.msra.mxu0 0
        %2067 = vmatpush.bf16.msra.mxu0 0
        %2068 = vmatpush.bf16.msra.mxu0 %v2059
        %2069 = vmatmul.bf16.gmra.mxu0 %v2047
        %v2070 = vpop.f32.mrf.mxu0
        %v2071 = vadd.f32 0.0, %v2070
        %v2072 = vpop.f32.mrf.mxu0
        %v2073 = vadd.f32 0.0, %v2072
        %2074 = vmatmul.bf16.gmra.mxu0 %v2050
        %v2075 = vpop.f32.mrf.mxu0
        %v2076 = vadd.f32 0.0, %v2075
        %v2077 = vpop.f32.mrf.mxu0
        %v2078 = vadd.f32 0.0, %v2077
        %2079 = vmatmul.bf16.gmra.mxu0 %v2053
        %v2080 = vpop.f32.mrf.mxu0
        %v2081 = vadd.f32 0.0, %v2080
        %v2082 = vpop.f32.mrf.mxu0
        %v2083 = vadd.f32 0.0, %v2082
        %2084 = vmatmul.bf16.gmra.mxu0 %v2056
        %v2085 = vpop.f32.mrf.mxu0
        %v2086 = vadd.f32 0.0, %v2085
        %v2087 = vpop.f32.mrf.mxu0
        %v2088 = vadd.f32 0.0, %v2087
        %2089 = vdwg.mxu0
        %v2090 = vadd.f32 %v1750, %v2071
        %v2091 = vadd.f32 %v1752, %v2073
        %v2092 = vadd.f32 %v1755, %v2076
        %v2093 = vadd.f32 %v1757, %v2078
        %v2094 = vadd.f32 %v1760, %v2081
        %v2095 = vadd.f32 %v1762, %v2083
        %v2096 = vadd.f32 %v1765, %v2086
        %v2097 = vadd.f32 %v1767, %v2088
        %2098 = vrot.lane.b32.xlu0 %v1105, 104
        %v2099 = vpop.permute.xlu0 %2098
        %2100 = vrot.lane.b32.xlu0 %v1106, 104
        %v2101 = vpop.permute.xlu0 %2100
        %2102 = vrot.lane.b32.xlu0 %v1105, 72
        %v2103 = vpop.permute.xlu0 %2102
        %2104 = vrot.lane.b32.xlu0 %v1106, 72
        %v2105 = vpop.permute.xlu0 %2104
        %v2107 = vsel %vm1111, %v2099, 0
        %v2110 = vsel %vm1111, %v2101, 0
        %v2113 = vsel %vm1111, %v2103, 0
        %v2116 = vsel %vm1111, %v2105, 0
        %2118 = vmatpush.bf16.xpose.msra.mxu0 0
        %2119 = vmatpush.bf16.xpose.msra.mxu0 0
        %2120 = vmatpush.bf16.xpose.msra.mxu0 0
        %2121 = vmatpush.bf16.xpose.msra.mxu0 0
        %2122 = vmatpush.bf16.xpose.msra.mxu0 0
        %2123 = vmatpush.bf16.xpose.msra.mxu0 0
        %2124 = vmatpush.bf16.xpose.msra.mxu0 %v2116
        %2125 = vmatpush.bf16.xpose.msra.mxu0 %v2113
        %2126 = vmatmul.bf16.gmra.mxu0 %v2107
        %v2127 = vpop.f32.mrf.mxu0
        %v2128 = vadd.f32 0.0, %v2127
        %v2129 = vpop.f32.mrf.mxu0
        %v2130 = vadd.f32 0.0, %v2129
        %2131 = vmatmul.bf16.gmra.mxu0 %v2110
        %v2132 = vpop.f32.mrf.mxu0
        %v2133 = vadd.f32 0.0, %v2132
        %v2134 = vpop.f32.mrf.mxu0
        %v2135 = vadd.f32 0.0, %v2134
        %2136 = vdwg.mxu0
        %2137 = vrot.lane.b32.xlu0 %v1151, 104
        %v2138 = vpop.permute.xlu0 %2137
        %2139 = vrot.lane.b32.xlu0 %v1152, 104
        %v2140 = vpop.permute.xlu0 %2139
        %2141 = vrot.lane.b32.xlu0 %v1151, 72
        %v2142 = vpop.permute.xlu0 %2141
        %2143 = vrot.lane.b32.xlu0 %v1152, 72
        %v2144 = vpop.permute.xlu0 %2143
        %v2146 = vsel %vm1111, %v2138, 0
        %v2149 = vsel %vm1111, %v2140, 0
        %v2152 = vsel %vm1111, %v2142, 0
        %v2155 = vsel %vm1111, %v2144, 0
        %2157 = vmatpush.bf16.xpose.msra.mxu0 0
        %2158 = vmatpush.bf16.xpose.msra.mxu0 0
        %2159 = vmatpush.bf16.xpose.msra.mxu0 0
        %2160 = vmatpush.bf16.xpose.msra.mxu0 0
        %2161 = vmatpush.bf16.xpose.msra.mxu0 0
        %2162 = vmatpush.bf16.xpose.msra.mxu0 0
        %2163 = vmatpush.bf16.xpose.msra.mxu0 %v2155
        %2164 = vmatpush.bf16.xpose.msra.mxu0 %v2152
        %2165 = vmatmul.bf16.gmra.mxu0 %v2146
        %v2166 = vpop.f32.mrf.mxu0
        %v2167 = vadd.f32 0.0, %v2166
        %v2168 = vpop.f32.mrf.mxu0
        %v2169 = vadd.f32 0.0, %v2168
        %2170 = vmatmul.bf16.gmra.mxu0 %v2149
        %v2171 = vpop.f32.mrf.mxu0
        %v2172 = vadd.f32 0.0, %v2171
        %v2173 = vpop.f32.mrf.mxu0
        %v2174 = vadd.f32 0.0, %v2173
        %2175 = vdwg.mxu0
        %v2176 = vmul.f32 %v2128, 0.35355338
        %v2177 = vmul.f32 %v2130, 0.35355338
        %v2178 = vmul.f32 %v2133, 0.35355338
        %v2179 = vmul.f32 %v2135, 0.35355338
        %v2180 = vmul.f32 %v2167, 0.35355338
        %v2181 = vmul.f32 %v2169, 0.35355338
        %v2182 = vmul.f32 %v2172, 0.35355338
        %v2183 = vmul.f32 %v2174, 0.35355338
        %v2184 = vadd.f32 %v2176, %v1196
        %v2185 = vadd.f32 %v2177, %v1196
        %v2186 = vadd.f32 %v2178, %v1196
        %v2187 = vadd.f32 %v2179, %v1196
        %v2188 = vadd.f32 %v2180, %v1197
        %v2189 = vadd.f32 %v2181, %v1197
        %v2190 = vadd.f32 %v2182, %v1197
        %v2191 = vadd.f32 %v2183, %v1197
        %v2192 = vsel %vm971, %v2184, -inf
        %2193 = vmax.xlane.f32.xlu0 %v2192
        %v2194 = vpop.xlane.xlu0 %2193
        %v2195 = vsel %vm971, %v2185, -inf
        %2196 = vmax.xlane.f32.xlu0 %v2195
        %v2197 = vpop.xlane.xlu0 %2196
        %v2198 = vsel %vm971, %v2186, -inf
        %2199 = vmax.xlane.f32.xlu0 %v2198
        %v2200 = vpop.xlane.xlu0 %2199
        %v2201 = vsel %vm971, %v2187, -inf
        %2202 = vmax.xlane.f32.xlu0 %v2201
        %v2203 = vpop.xlane.xlu0 %2202
        %v2204 = vsel %vm971, %v2188, -inf
        %2205 = vmax.xlane.f32.xlu0 %v2204
        %v2206 = vpop.xlane.xlu0 %2205
        %v2207 = vsel %vm971, %v2189, -inf
        %2208 = vmax.xlane.f32.xlu0 %v2207
        %v2209 = vpop.xlane.xlu0 %2208
        %v2210 = vsel %vm971, %v2190, -inf
        %2211 = vmax.xlane.f32.xlu0 %v2210
        %v2212 = vpop.xlane.xlu0 %2211
        %v2213 = vsel %vm971, %v2191, -inf
        %2214 = vmax.xlane.f32.xlu0 %v2213
        %v2215 = vpop.xlane.xlu0 %2214
        %v2216 = vsub.f32 %v2184, %v2194
        %v2217 = vsub.f32 %v2185, %v2197
        %v2218 = vsub.f32 %v2186, %v2200
        %v2219 = vsub.f32 %v2187, %v2203
        %v2220 = vsub.f32 %v2188, %v2206
        %v2221 = vsub.f32 %v2189, %v2209
        %v2222 = vsub.f32 %v2190, %v2212
        %v2223 = vsub.f32 %v2191, %v2215
        %v2224 = vmul.f32 %v2216, 1.442695
        %v2225 = vpow.pop %v2224
        %v2226 = vmul.f32 %v2217, 1.442695
        %v2227 = vpow.pop %v2226
        %v2228 = vmul.f32 %v2218, 1.442695
        %v2229 = vpow.pop %v2228
        %v2230 = vmul.f32 %v2219, 1.442695
        %v2231 = vpow.pop %v2230
        %v2232 = vmul.f32 %v2220, 1.442695
        %v2233 = vpow.pop %v2232
        %v2234 = vmul.f32 %v2221, 1.442695
        %v2235 = vpow.pop %v2234
        %v2236 = vmul.f32 %v2222, 1.442695
        %v2237 = vpow.pop %v2236
        %v2238 = vmul.f32 %v2223, 1.442695
        %v2239 = vpow.pop %v2238
        %v2240 = vsel %vm971, %v2225, 0.0
        %2241 = vadd.xlane.f32.xlu0 %v2240
        %v2242 = vpop.xlane.xlu0 %2241
        %v2243 = vsel %vm971, %v2227, 0.0
        %2244 = vadd.xlane.f32.xlu0 %v2243
        %v2245 = vpop.xlane.xlu0 %2244
        %v2246 = vsel %vm971, %v2229, 0.0
        %2247 = vadd.xlane.f32.xlu0 %v2246
        %v2248 = vpop.xlane.xlu0 %2247
        %v2249 = vsel %vm971, %v2231, 0.0
        %2250 = vadd.xlane.f32.xlu0 %v2249
        %v2251 = vpop.xlane.xlu0 %2250
        %v2252 = vsel %vm971, %v2233, 0.0
        %2253 = vadd.xlane.f32.xlu0 %v2252
        %v2254 = vpop.xlane.xlu0 %2253
        %v2255 = vsel %vm971, %v2235, 0.0
        %2256 = vadd.xlane.f32.xlu0 %v2255
        %v2257 = vpop.xlane.xlu0 %2256
        %v2258 = vsel %vm971, %v2237, 0.0
        %2259 = vadd.xlane.f32.xlu0 %v2258
        %v2260 = vpop.xlane.xlu0 %2259
        %v2261 = vsel %vm971, %v2239, 0.0
        %2262 = vadd.xlane.f32.xlu0 %v2261
        %v2263 = vpop.xlane.xlu0 %2262
        %v2264 = vrcp.pop %v2242
        %v2265 = vrcp.pop %v2245
        %v2266 = vrcp.pop %v2248
        %v2267 = vrcp.pop %v2251
        %v2268 = vrcp.pop %v2254
        %v2269 = vrcp.pop %v2257
        %v2270 = vrcp.pop %v2260
        %v2271 = vrcp.pop %v2263
        %v2272 = vmul.f32 %v2225, %v2264
        %v2273 = vmul.f32 %v2227, %v2265
        %v2274 = vmul.f32 %v2229, %v2266
        %v2275 = vmul.f32 %v2231, %v2267
        %v2276 = vmul.f32 %v2233, %v2268
        %v2277 = vmul.f32 %v2235, %v2269
        %v2278 = vmul.f32 %v2237, %v2270
        %v2279 = vmul.f32 %v2239, %v2271
        %v2280 = vpack.c.bf16 %v2272, %v2272
        %v2281 = vpack.c.bf16 %v2273, %v2273
        %v2282 = vpack.c.bf16 %v2274, %v2274
        %v2283 = vpack.c.bf16 %v2275, %v2275
        %v2284 = vpack.c.bf16 %v2276, %v2276
        %v2285 = vpack.c.bf16 %v2277, %v2277
        %v2286 = vpack.c.bf16 %v2278, %v2278
        %v2287 = vpack.c.bf16 %v2279, %v2279
        %v2292 = vunpack.c.l.b16 %v2280
        %v2293 = vunpack.c.l.b16 %v2281
        %v2294 = vunpack.c.l.b16 %v2282
        %v2295 = vunpack.c.l.b16 %v2283
        %v2296 = vpack.c.b16 %v2293, %v2292
        %v2297 = vpack.c.b16 %v2295, %v2294
        %2298 = vrot.lane.b32.xlu0 %v1322, 104
        %v2299 = vpop.permute.xlu0 %2298
        %2300 = vrot.lane.b32.xlu0 %v1323, 104
        %v2301 = vpop.permute.xlu0 %2300
        %v2305 = vsel %vm971, %v2296, 0
        %v2308 = vsel %vm971, %v2297, 0
        %2310 = vmatpush.bf16.msra.mxu0 0
        %2311 = vmatpush.bf16.msra.mxu0 0
        %2312 = vmatpush.bf16.msra.mxu0 0
        %2313 = vmatpush.bf16.msra.mxu0 0
        %2314 = vmatpush.bf16.msra.mxu0 0
        %2315 = vmatpush.bf16.msra.mxu0 0
        %2316 = vmatpush.bf16.msra.mxu0 %v2301
        %2317 = vmatpush.bf16.msra.mxu0 %v2299
        %2318 = vmatmul.bf16.gmra.mxu0 %v2305
        %v2319 = vpop.f32.mrf.mxu0
        %v2320 = vadd.f32 0.0, %v2319
        %v2321 = vpop.f32.mrf.mxu0
        %v2322 = vadd.f32 0.0, %v2321
        %2323 = vmatmul.bf16.gmra.mxu0 %v2308
        %v2324 = vpop.f32.mrf.mxu0
        %v2325 = vadd.f32 0.0, %v2324
        %v2326 = vpop.f32.mrf.mxu0
        %v2327 = vadd.f32 0.0, %v2326
        %2328 = vdwg.mxu0
        %v2333 = vunpack.c.l.b16 %v2284
        %v2334 = vunpack.c.l.b16 %v2285
        %v2335 = vunpack.c.l.b16 %v2286
        %v2336 = vunpack.c.l.b16 %v2287
        %v2337 = vpack.c.b16 %v2334, %v2333
        %v2338 = vpack.c.b16 %v2336, %v2335
        %2339 = vrot.lane.b32.xlu0 %v1369, 104
        %v2340 = vpop.permute.xlu0 %2339
        %2341 = vrot.lane.b32.xlu0 %v1370, 104
        %v2342 = vpop.permute.xlu0 %2341
        %v2346 = vsel %vm971, %v2337, 0
        %v2349 = vsel %vm971, %v2338, 0
        %2351 = vmatpush.bf16.msra.mxu0 0
        %2352 = vmatpush.bf16.msra.mxu0 0
        %2353 = vmatpush.bf16.msra.mxu0 0
        %2354 = vmatpush.bf16.msra.mxu0 0
        %2355 = vmatpush.bf16.msra.mxu0 0
        %2356 = vmatpush.bf16.msra.mxu0 0
        %2357 = vmatpush.bf16.msra.mxu0 %v2342
        %2358 = vmatpush.bf16.msra.mxu0 %v2340
        %2359 = vmatmul.bf16.gmra.mxu0 %v2346
        %v2360 = vpop.f32.mrf.mxu0
        %v2361 = vadd.f32 0.0, %v2360
        %v2362 = vpop.f32.mrf.mxu0
        %v2363 = vadd.f32 0.0, %v2362
        %2364 = vmatmul.bf16.gmra.mxu0 %v2349
        %v2365 = vpop.f32.mrf.mxu0
        %v2366 = vadd.f32 0.0, %v2365
        %v2367 = vpop.f32.mrf.mxu0
        %v2368 = vadd.f32 0.0, %v2367
        %2369 = vdwg.mxu0
        %v2370 = vpack.c.bf16 %v2322, %v2320
        %v2371 = vpack.c.bf16 %v2327, %v2325
        %v2372 = vpack.c.bf16 %v2363, %v2361
        %v2373 = vpack.c.bf16 %v2368, %v2366
        %v2374 = vld [vmem:[%s871 + $0xc] sm:$0xf]
        %v2376 = vsel %vm1111, %v2370, 0
        %v2379 = vsel %vm1111, %v2371, 0
        %v2382 = vsel %vm1111, %v2372, 0
        %v2385 = vsel %vm1111, %v2373, 0
        %v2388 = vsel %vm1692, %v2374, 0
        %2390 = vmatpush.bf16.msra.mxu0 0
        %2391 = vmatpush.bf16.msra.mxu0 0
        %2392 = vmatpush.bf16.msra.mxu0 0
        %2393 = vmatpush.bf16.msra.mxu0 0
        %2394 = vmatpush.bf16.msra.mxu0 0
        %2395 = vmatpush.bf16.msra.mxu0 0
        %2396 = vmatpush.bf16.msra.mxu0 0
        %2397 = vmatpush.bf16.msra.mxu0 %v2388
        %2398 = vmatmul.bf16.gmra.mxu0 %v2376
        %v2399 = vpop.f32.mrf.mxu0
        %v2400 = vadd.f32 0.0, %v2399
        %v2401 = vpop.f32.mrf.mxu0
        %v2402 = vadd.f32 0.0, %v2401
        %2403 = vmatmul.bf16.gmra.mxu0 %v2379
        %v2404 = vpop.f32.mrf.mxu0
        %v2405 = vadd.f32 0.0, %v2404
        %v2406 = vpop.f32.mrf.mxu0
        %v2407 = vadd.f32 0.0, %v2406
        %2408 = vmatmul.bf16.gmra.mxu0 %v2382
        %v2409 = vpop.f32.mrf.mxu0
        %v2410 = vadd.f32 0.0, %v2409
        %v2411 = vpop.f32.mrf.mxu0
        %v2412 = vadd.f32 0.0, %v2411
        %2413 = vmatmul.bf16.gmra.mxu0 %v2385
        %v2414 = vpop.f32.mrf.mxu0
        %v2415 = vadd.f32 0.0, %v2414
        %v2416 = vpop.f32.mrf.mxu0
        %v2417 = vadd.f32 0.0, %v2416
        %2418 = vdwg.mxu0
        %v2419 = vadd.f32 %v2090, %v2400
        %v2420 = vadd.f32 %v2091, %v2402
        %v2421 = vadd.f32 %v2092, %v2405
        %v2422 = vadd.f32 %v2093, %v2407
        %v2423 = vadd.f32 %v2094, %v2410
        %v2424 = vadd.f32 %v2095, %v2412
        %v2425 = vadd.f32 %v2096, %v2415
        %v2426 = vadd.f32 %v2097, %v2417
        %v2427 = vld [vmem:[%s874] sm:$0x1]
        %v2429 = vperm.slane %v2427, 0
        %v2431 = vadd.f32 %v2419, %v2429
        %v2432 = vadd.f32 %v2420, %v2429
        %v2433 = vadd.f32 %v2421, %v2429
        %v2434 = vadd.f32 %v2422, %v2429
        %v2435 = vadd.f32 %v2423, %v2429
        %v2436 = vadd.f32 %v2424, %v2429
        %v2437 = vadd.f32 %v2425, %v2429
        %v2438 = vadd.f32 %v2426, %v2429
        %v2439 = vadd.f32 %v927, %v2431
        %v2440 = vadd.f32 %v928, %v2432
        %v2441 = vadd.f32 %v929, %v2433
        %v2442 = vadd.f32 %v930, %v2434
        %v2443 = vadd.f32 %v931, %v2435
        %v2444 = vadd.f32 %v932, %v2436
        %v2445 = vadd.f32 %v933, %v2437
        %v2446 = vadd.f32 %v934, %v2438
        %v2447 = vld [vmem:[%s877] sm:$0x1]
        %v2448 = vld [vmem:[%s880] sm:$0x1]
        %v2449 = vsel %vm971, %v2439, 0.0
        %2450 = vadd.xlane.f32.xlu0 %v2449
        %v2451 = vpop.xlane.xlu0 %2450
        %v2452 = vsel %vm971, %v2440, 0.0
        %2453 = vadd.xlane.f32.xlu0 %v2452
        %v2454 = vpop.xlane.xlu0 %2453
        %v2455 = vsel %vm971, %v2441, 0.0
        %2456 = vadd.xlane.f32.xlu0 %v2455
        %v2457 = vpop.xlane.xlu0 %2456
        %v2458 = vsel %vm971, %v2442, 0.0
        %2459 = vadd.xlane.f32.xlu0 %v2458
        %v2460 = vpop.xlane.xlu0 %2459
        %v2461 = vsel %vm971, %v2443, 0.0
        %2462 = vadd.xlane.f32.xlu0 %v2461
        %v2463 = vpop.xlane.xlu0 %2462
        %v2464 = vsel %vm971, %v2444, 0.0
        %2465 = vadd.xlane.f32.xlu0 %v2464
        %v2466 = vpop.xlane.xlu0 %2465
        %v2467 = vsel %vm971, %v2445, 0.0
        %2468 = vadd.xlane.f32.xlu0 %v2467
        %v2469 = vpop.xlane.xlu0 %2468
        %v2470 = vsel %vm971, %v2446, 0.0
        %2471 = vadd.xlane.f32.xlu0 %v2470
        %v2472 = vpop.xlane.xlu0 %2471
        %v2473 = vrcp.pop 32.0
        %v2474 = vmul.f32 32.0, %v2473
        %v2475 = vsub.f32 1.0, %v2474
        %v2476 = vmul.f32 %v2473, %v2475
        %v2477 = vadd.f32 %v2473, %v2476
        %vm2478 = vweird.f32 %v2473
        %v2479 = vsel %vm2478, %v2473, %v2477
        %v2480 = vmul.f32 %v2451, %v2479
        %v2481 = vmul.f32 %v2454, %v2479
        %v2482 = vmul.f32 %v2457, %v2479
        %v2483 = vmul.f32 %v2460, %v2479
        %v2484 = vmul.f32 %v2463, %v2479
        %v2485 = vmul.f32 %v2466, %v2479
        %v2486 = vmul.f32 %v2469, %v2479
        %v2487 = vmul.f32 %v2472, %v2479
        %v2488 = vsub.f32 %v2439, %v2480
        %v2489 = vsub.f32 %v2440, %v2481
        %v2490 = vsub.f32 %v2441, %v2482
        %v2491 = vsub.f32 %v2442, %v2483
        %v2492 = vsub.f32 %v2443, %v2484
        %v2493 = vsub.f32 %v2444, %v2485
        %v2494 = vsub.f32 %v2445, %v2486
        %v2495 = vsub.f32 %v2446, %v2487
        %v2496 = vmul.f32 %v2488, %v2488
        %v2497 = vmul.f32 %v2489, %v2489
        %v2498 = vmul.f32 %v2490, %v2490
        %v2499 = vmul.f32 %v2491, %v2491
        %v2500 = vmul.f32 %v2492, %v2492
        %v2501 = vmul.f32 %v2493, %v2493
        %v2502 = vmul.f32 %v2494, %v2494
        %v2503 = vmul.f32 %v2495, %v2495
        %v2504 = vsel %vm971, %v2496, 0.0
        %2505 = vadd.xlane.f32.xlu0 %v2504
        %v2506 = vpop.xlane.xlu0 %2505
        %v2507 = vsel %vm971, %v2497, 0.0
        %2508 = vadd.xlane.f32.xlu0 %v2507
        %v2509 = vpop.xlane.xlu0 %2508
        %v2510 = vsel %vm971, %v2498, 0.0
        %2511 = vadd.xlane.f32.xlu0 %v2510
        %v2512 = vpop.xlane.xlu0 %2511
        %v2513 = vsel %vm971, %v2499, 0.0
        %2514 = vadd.xlane.f32.xlu0 %v2513
        %v2515 = vpop.xlane.xlu0 %2514
        %v2516 = vsel %vm971, %v2500, 0.0
        %2517 = vadd.xlane.f32.xlu0 %v2516
        %v2518 = vpop.xlane.xlu0 %2517
        %v2519 = vsel %vm971, %v2501, 0.0
        %2520 = vadd.xlane.f32.xlu0 %v2519
        %v2521 = vpop.xlane.xlu0 %2520
        %v2522 = vsel %vm971, %v2502, 0.0
        %2523 = vadd.xlane.f32.xlu0 %v2522
        %v2524 = vpop.xlane.xlu0 %2523
        %v2525 = vsel %vm971, %v2503, 0.0
        %2526 = vadd.xlane.f32.xlu0 %v2525
        %v2527 = vpop.xlane.xlu0 %2526
        %v2528 = vmul.f32 %v2506, %v2479
        %v2529 = vmul.f32 %v2509, %v2479
        %v2530 = vmul.f32 %v2512, %v2479
        %v2531 = vmul.f32 %v2515, %v2479
        %v2532 = vmul.f32 %v2518, %v2479
        %v2533 = vmul.f32 %v2521, %v2479
        %v2534 = vmul.f32 %v2524, %v2479
        %v2535 = vmul.f32 %v2527, %v2479
        %v2536 = vadd.f32 %v2528, 1e-05
        %v2537 = vadd.f32 %v2529, 1e-05
        %v2538 = vadd.f32 %v2530, 1e-05
        %v2539 = vadd.f32 %v2531, 1e-05
        %v2540 = vadd.f32 %v2532, 1e-05
        %v2541 = vadd.f32 %v2533, 1e-05
        %v2542 = vadd.f32 %v2534, 1e-05
        %v2543 = vadd.f32 %v2535, 1e-05
        %v2544 = vrsqrt.pop %v2536
        %v2545 = vmul.f32 %v2544, %v2536
        %v2546 = vmul.f32 %v2545, %v2544
        %v2547 = vmul.f32 0.5, %v2546
        %v2548 = vsub.f32 1.5, %v2547
        %v2549 = vmul.f32 %v2544, %v2548
        %vm2550 = vweird.f32 %v2536
        %vm2551 = vweird.f32 %v2544
        %vm2552 = vmor %vm2550, %vm2551
        %v2553 = vsel %vm2552, %v2544, %v2549
        %v2554 = vrsqrt.pop %v2537
        %v2555 = vmul.f32 %v2554, %v2537
        %v2556 = vmul.f32 %v2555, %v2554
        %v2557 = vmul.f32 0.5, %v2556
        %v2558 = vsub.f32 1.5, %v2557
        %v2559 = vmul.f32 %v2554, %v2558
        %vm2560 = vweird.f32 %v2537
        %vm2561 = vweird.f32 %v2554
        %vm2562 = vmor %vm2560, %vm2561
        %v2563 = vsel %vm2562, %v2554, %v2559
        %v2564 = vrsqrt.pop %v2538
        %v2565 = vmul.f32 %v2564, %v2538
        %v2566 = vmul.f32 %v2565, %v2564
        %v2567 = vmul.f32 0.5, %v2566
        %v2568 = vsub.f32 1.5, %v2567
        %v2569 = vmul.f32 %v2564, %v2568
        %vm2570 = vweird.f32 %v2538
        %vm2571 = vweird.f32 %v2564
        %vm2572 = vmor %vm2570, %vm2571
        %v2573 = vsel %vm2572, %v2564, %v2569
        %v2574 = vrsqrt.pop %v2539
        %v2575 = vmul.f32 %v2574, %v2539
        %v2576 = vmul.f32 %v2575, %v2574
        %v2577 = vmul.f32 0.5, %v2576
        %v2578 = vsub.f32 1.5, %v2577
        %v2579 = vmul.f32 %v2574, %v2578
        %vm2580 = vweird.f32 %v2539
        %vm2581 = vweird.f32 %v2574
        %vm2582 = vmor %vm2580, %vm2581
        %v2583 = vsel %vm2582, %v2574, %v2579
        %v2584 = vrsqrt.pop %v2540
        %v2585 = vmul.f32 %v2584, %v2540
        %v2586 = vmul.f32 %v2585, %v2584
        %v2587 = vmul.f32 0.5, %v2586
        %v2588 = vsub.f32 1.5, %v2587
        %v2589 = vmul.f32 %v2584, %v2588
        %vm2590 = vweird.f32 %v2540
        %vm2591 = vweird.f32 %v2584
        %vm2592 = vmor %vm2590, %vm2591
        %v2593 = vsel %vm2592, %v2584, %v2589
        %v2594 = vrsqrt.pop %v2541
        %v2595 = vmul.f32 %v2594, %v2541
        %v2596 = vmul.f32 %v2595, %v2594
        %v2597 = vmul.f32 0.5, %v2596
        %v2598 = vsub.f32 1.5, %v2597
        %v2599 = vmul.f32 %v2594, %v2598
        %vm2600 = vweird.f32 %v2541
        %vm2601 = vweird.f32 %v2594
        %vm2602 = vmor %vm2600, %vm2601
        %v2603 = vsel %vm2602, %v2594, %v2599
        %v2604 = vrsqrt.pop %v2542
        %v2605 = vmul.f32 %v2604, %v2542
        %v2606 = vmul.f32 %v2605, %v2604
        %v2607 = vmul.f32 0.5, %v2606
        %v2608 = vsub.f32 1.5, %v2607
        %v2609 = vmul.f32 %v2604, %v2608
        %vm2610 = vweird.f32 %v2542
        %vm2611 = vweird.f32 %v2604
        %vm2612 = vmor %vm2610, %vm2611
        %v2613 = vsel %vm2612, %v2604, %v2609
        %v2614 = vrsqrt.pop %v2543
        %v2615 = vmul.f32 %v2614, %v2543
        %v2616 = vmul.f32 %v2615, %v2614
        %v2617 = vmul.f32 0.5, %v2616
        %v2618 = vsub.f32 1.5, %v2617
        %v2619 = vmul.f32 %v2614, %v2618
        %vm2620 = vweird.f32 %v2543
        %vm2621 = vweird.f32 %v2614
        %vm2622 = vmor %vm2620, %vm2621
        %v2623 = vsel %vm2622, %v2614, %v2619
        %v2624 = vmul.f32 %v2488, %v2553
        %v2625 = vmul.f32 %v2489, %v2563
        %v2626 = vmul.f32 %v2490, %v2573
        %v2627 = vmul.f32 %v2491, %v2583
        %v2628 = vmul.f32 %v2492, %v2593
        %v2629 = vmul.f32 %v2493, %v2603
        %v2630 = vmul.f32 %v2494, %v2613
        %v2631 = vmul.f32 %v2495, %v2623
        %v2633 = vperm.slane %v2447, 0
        %v2635 = vmul.f32 %v2624, %v2633
        %v2636 = vmul.f32 %v2625, %v2633
        %v2637 = vmul.f32 %v2626, %v2633
        %v2638 = vmul.f32 %v2627, %v2633
        %v2639 = vmul.f32 %v2628, %v2633
        %v2640 = vmul.f32 %v2629, %v2633
        %v2641 = vmul.f32 %v2630, %v2633
        %v2642 = vmul.f32 %v2631, %v2633
        %v2644 = vperm.slane %v2448, 0
        %v2646 = vadd.f32 %v2635, %v2644
        %v2647 = vadd.f32 %v2636, %v2644
        %v2648 = vadd.f32 %v2637, %v2644
        %v2649 = vadd.f32 %v2638, %v2644
        %v2650 = vadd.f32 %v2639, %v2644
        %v2651 = vadd.f32 %v2640, %v2644
        %v2652 = vadd.f32 %v2641, %v2644
        %v2653 = vadd.f32 %v2642, %v2644
        %v2654 = vpack.c.bf16 %v2647, %v2646
        %v2655 = vpack.c.bf16 %v2649, %v2648
        %v2656 = vpack.c.bf16 %v2651, %v2650
        %v2657 = vpack.c.bf16 %v2653, %v2652
        %v2658 = vld [vmem:[%s885] sm:$0xf]
        %v2659 = vld [vmem:[%s885 + $0x4] sm:$0xf]
        %v2660 = vld [vmem:[%s885 + $0x8] sm:$0xf]
        %v2661 = vld [vmem:[%s885 + $0xc] sm:$0xf]
        %v2662 = vld [vmem:[%s888] sm:$0x1]
        %v2664 = vperm.slane %v2662, 0
        %v2670 = vunpack.c.l.b16 %v2658
        %v2671 = vunpack.c.l.b16 %v2659
        %v2672 = vunpack.c.l.b16 %v2660
        %v2673 = vunpack.c.l.b16 %v2661
        %v2674 = vpack.c.b16 %v2671, %v2670
        %v2675 = vpack.c.b16 %v2673, %v2672
        %v2679 = vsel %vm971, %v2654, 0
        %v2682 = vsel %vm971, %v2655, 0
        %v2685 = vsel %vm971, %v2656, 0
        %v2688 = vsel %vm971, %v2657, 0
        %2690 = vmatpush.bf16.msra.mxu0 0
        %2691 = vmatpush.bf16.msra.mxu0 0
        %2692 = vmatpush.bf16.msra.mxu0 0
        %2693 = vmatpush.bf16.msra.mxu0 0
        %2694 = vmatpush.bf16.msra.mxu0 0
        %2695 = vmatpush.bf16.msra.mxu0 0
        %2696 = vmatpush.bf16.msra.mxu0 %v2675
        %2697 = vmatpush.bf16.msra.mxu0 %v2674
        %2698 = vmatmul.bf16.gmra.mxu0 %v2679
        %v2699 = vpop.f32.mrf.mxu0
        %v2700 = vadd.f32 %v2664, %v2699
        %v2701 = vpop.f32.mrf.mxu0
        %v2702 = vadd.f32 %v2664, %v2701
        %2703 = vmatmul.bf16.gmra.mxu0 %v2682
        %v2704 = vpop.f32.mrf.mxu0
        %v2705 = vadd.f32 %v2664, %v2704
        %v2706 = vpop.f32.mrf.mxu0
        %v2707 = vadd.f32 %v2664, %v2706
        %2708 = vmatmul.bf16.gmra.mxu0 %v2685
        %v2709 = vpop.f32.mrf.mxu0
        %v2710 = vadd.f32 %v2664, %v2709
        %v2711 = vpop.f32.mrf.mxu0
        %v2712 = vadd.f32 %v2664, %v2711
        %2713 = vmatmul.bf16.gmra.mxu0 %v2688
        %v2714 = vpop.f32.mrf.mxu0
        %v2715 = vadd.f32 %v2664, %v2714
        %v2716 = vpop.f32.mrf.mxu0
        %v2717 = vadd.f32 %v2664, %v2716
        %2718 = vdwg.mxu0
        %v2719 = vmax.f32 %v2700, 0.0
        %v2720 = vmax.f32 %v2702, 0.0
        %v2721 = vmax.f32 %v2705, 0.0
        %v2722 = vmax.f32 %v2707, 0.0
        %v2723 = vmax.f32 %v2710, 0.0
        %v2724 = vmax.f32 %v2712, 0.0
        %v2725 = vmax.f32 %v2715, 0.0
        %v2726 = vmax.f32 %v2717, 0.0
        %v2727 = vpack.c.bf16 %v2720, %v2719
        %v2728 = vpack.c.bf16 %v2722, %v2721
        %v2729 = vpack.c.bf16 %v2724, %v2723
        %v2730 = vpack.c.bf16 %v2726, %v2725
        %v2731 = vld [vmem:[%s893] sm:$0xf]
        %v2732 = vld [vmem:[%s893 + $0x4] sm:$0xf]
        %v2733 = vld [vmem:[%s893 + $0x8] sm:$0xf]
        %v2734 = vld [vmem:[%s893 + $0xc] sm:$0xf]
        %v2735 = vld [vmem:[%s893 + $0x10] sm:$0xf]
        %v2736 = vld [vmem:[%s893 + $0x14] sm:$0xf]
        %v2737 = vld [vmem:[%s893 + $0x18] sm:$0xf]
        %v2738 = vld [vmem:[%s893 + $0x1c] sm:$0xf]
        %v2739 = vld [vmem:[%s896] sm:$0x1]
        %v2741 = vperm.slane %v2739, 0
        %v2751 = vunpack.c.l.b16 %v2731
        %v2752 = vunpack.c.l.b16 %v2732
        %v2753 = vunpack.c.l.b16 %v2733
        %v2754 = vunpack.c.l.b16 %v2734
        %v2755 = vunpack.c.l.b16 %v2735
        %v2756 = vunpack.c.l.b16 %v2736
        %v2757 = vunpack.c.l.b16 %v2737
        %v2758 = vunpack.c.l.b16 %v2738
        %v2759 = vpack.c.b16 %v2752, %v2751
        %v2760 = vpack.c.b16 %v2754, %v2753
        %v2761 = vpack.c.b16 %v2756, %v2755
        %v2762 = vpack.c.b16 %v2758, %v2757
        %vm2767 = vcmask 523264
        %v2769 = vsel %vm2767, %v2727, 0
        %v2772 = vsel %vm2767, %v2728, 0
        %v2775 = vsel %vm2767, %v2729, 0
        %v2778 = vsel %vm2767, %v2730, 0
        %2780 = vmatpush.bf16.msra.mxu0 0
        %2781 = vmatpush.bf16.msra.mxu0 0
        %2782 = vmatpush.bf16.msra.mxu0 0
        %2783 = vmatpush.bf16.msra.mxu0 0
        %2784 = vmatpush.bf16.msra.mxu0 %v2762
        %2785 = vmatpush.bf16.msra.mxu0 %v2761
        %2786 = vmatpush.bf16.msra.mxu0 %v2760
        %2787 = vmatpush.bf16.msra.mxu0 %v2759
        %2788 = vmatmul.bf16.gmra.mxu0 %v2769
        %v2789 = vpop.f32.mrf.mxu0
        %v2790 = vadd.f32 %v2741, %v2789
        %v2791 = vpop.f32.mrf.mxu0
        %v2792 = vadd.f32 %v2741, %v2791
        %2793 = vmatmul.bf16.gmra.mxu0 %v2772
        %v2794 = vpop.f32.mrf.mxu0
        %v2795 = vadd.f32 %v2741, %v2794
        %v2796 = vpop.f32.mrf.mxu0
        %v2797 = vadd.f32 %v2741, %v2796
        %2798 = vmatmul.bf16.gmra.mxu0 %v2775
        %v2799 = vpop.f32.mrf.mxu0
        %v2800 = vadd.f32 %v2741, %v2799
        %v2801 = vpop.f32.mrf.mxu0
        %v2802 = vadd.f32 %v2741, %v2801
        %2803 = vmatmul.bf16.gmra.mxu0 %v2778
        %v2804 = vpop.f32.mrf.mxu0
        %v2805 = vadd.f32 %v2741, %v2804
        %v2806 = vpop.f32.mrf.mxu0
        %v2807 = vadd.f32 %v2741, %v2806
        %2808 = vdwg.mxu0
        %v2809 = vadd.f32 %v2646, %v2790
        %v2810 = vadd.f32 %v2647, %v2792
        %v2811 = vadd.f32 %v2648, %v2795
        %v2812 = vadd.f32 %v2649, %v2797
        %v2813 = vadd.f32 %v2650, %v2800
        %v2814 = vadd.f32 %v2651, %v2802
        %v2815 = vadd.f32 %v2652, %v2805
        %v2816 = vadd.f32 %v2653, %v2807
        %v2817 = vld [vmem:[%s899] sm:$0x1]
        %v2818 = vld [vmem:[%s902] sm:$0x1]
        %v2819 = vsel %vm971, %v2809, 0.0
        %2820 = vadd.xlane.f32.xlu0 %v2819
        %v2821 = vpop.xlane.xlu0 %2820
        %v2822 = vsel %vm971, %v2810, 0.0
        %2823 = vadd.xlane.f32.xlu0 %v2822
        %v2824 = vpop.xlane.xlu0 %2823
        %v2825 = vsel %vm971, %v2811, 0.0
        %2826 = vadd.xlane.f32.xlu0 %v2825
        %v2827 = vpop.xlane.xlu0 %2826
        %v2828 = vsel %vm971, %v2812, 0.0
        %2829 = vadd.xlane.f32.xlu0 %v2828
        %v2830 = vpop.xlane.xlu0 %2829
        %v2831 = vsel %vm971, %v2813, 0.0
        %2832 = vadd.xlane.f32.xlu0 %v2831
        %v2833 = vpop.xlane.xlu0 %2832
        %v2834 = vsel %vm971, %v2814, 0.0
        %2835 = vadd.xlane.f32.xlu0 %v2834
        %v2836 = vpop.xlane.xlu0 %2835
        %v2837 = vsel %vm971, %v2815, 0.0
        %2838 = vadd.xlane.f32.xlu0 %v2837
        %v2839 = vpop.xlane.xlu0 %2838
        %v2840 = vsel %vm971, %v2816, 0.0
        %2841 = vadd.xlane.f32.xlu0 %v2840
        %v2842 = vpop.xlane.xlu0 %2841
        %v2843 = vmul.f32 %v2821, %v2479
        %v2844 = vmul.f32 %v2824, %v2479
        %v2845 = vmul.f32 %v2827, %v2479
        %v2846 = vmul.f32 %v2830, %v2479
        %v2847 = vmul.f32 %v2833, %v2479
        %v2848 = vmul.f32 %v2836, %v2479
        %v2849 = vmul.f32 %v2839, %v2479
        %v2850 = vmul.f32 %v2842, %v2479
        %v2851 = vsub.f32 %v2809, %v2843
        %v2852 = vsub.f32 %v2810, %v2844
        %v2853 = vsub.f32 %v2811, %v2845
        %v2854 = vsub.f32 %v2812, %v2846
        %v2855 = vsub.f32 %v2813, %v2847
        %v2856 = vsub.f32 %v2814, %v2848
        %v2857 = vsub.f32 %v2815, %v2849
        %v2858 = vsub.f32 %v2816, %v2850
        %v2859 = vmul.f32 %v2851, %v2851
        %v2860 = vmul.f32 %v2852, %v2852
        %v2861 = vmul.f32 %v2853, %v2853
        %v2862 = vmul.f32 %v2854, %v2854
        %v2863 = vmul.f32 %v2855, %v2855
        %v2864 = vmul.f32 %v2856, %v2856
        %v2865 = vmul.f32 %v2857, %v2857
        %v2866 = vmul.f32 %v2858, %v2858
        %v2867 = vsel %vm971, %v2859, 0.0
        %2868 = vadd.xlane.f32.xlu0 %v2867
        %v2869 = vpop.xlane.xlu0 %2868
        %v2870 = vsel %vm971, %v2860, 0.0
        %2871 = vadd.xlane.f32.xlu0 %v2870
        %v2872 = vpop.xlane.xlu0 %2871
        %v2873 = vsel %vm971, %v2861, 0.0
        %2874 = vadd.xlane.f32.xlu0 %v2873
        %v2875 = vpop.xlane.xlu0 %2874
        %v2876 = vsel %vm971, %v2862, 0.0
        %2877 = vadd.xlane.f32.xlu0 %v2876
        %v2878 = vpop.xlane.xlu0 %2877
        %v2879 = vsel %vm971, %v2863, 0.0
        %2880 = vadd.xlane.f32.xlu0 %v2879
        %v2881 = vpop.xlane.xlu0 %2880
        %v2882 = vsel %vm971, %v2864, 0.0
        %2883 = vadd.xlane.f32.xlu0 %v2882
        %v2884 = vpop.xlane.xlu0 %2883
        %v2885 = vsel %vm971, %v2865, 0.0
        %2886 = vadd.xlane.f32.xlu0 %v2885
        %v2887 = vpop.xlane.xlu0 %2886
        %v2888 = vsel %vm971, %v2866, 0.0
        %2889 = vadd.xlane.f32.xlu0 %v2888
        %v2890 = vpop.xlane.xlu0 %2889
        %v2891 = vmul.f32 %v2869, %v2479
        %v2892 = vmul.f32 %v2872, %v2479
        %v2893 = vmul.f32 %v2875, %v2479
        %v2894 = vmul.f32 %v2878, %v2479
        %v2895 = vmul.f32 %v2881, %v2479
        %v2896 = vmul.f32 %v2884, %v2479
        %v2897 = vmul.f32 %v2887, %v2479
        %v2898 = vmul.f32 %v2890, %v2479
        %v2899 = vadd.f32 %v2891, 1e-05
        %v2900 = vadd.f32 %v2892, 1e-05
        %v2901 = vadd.f32 %v2893, 1e-05
        %v2902 = vadd.f32 %v2894, 1e-05
        %v2903 = vadd.f32 %v2895, 1e-05
        %v2904 = vadd.f32 %v2896, 1e-05
        %v2905 = vadd.f32 %v2897, 1e-05
        %v2906 = vadd.f32 %v2898, 1e-05
        %v2907 = vrsqrt.pop %v2899
        %v2908 = vmul.f32 %v2907, %v2899
        %v2909 = vmul.f32 %v2908, %v2907
        %v2910 = vmul.f32 0.5, %v2909
        %v2911 = vsub.f32 1.5, %v2910
        %v2912 = vmul.f32 %v2907, %v2911
        %vm2913 = vweird.f32 %v2899
        %vm2914 = vweird.f32 %v2907
        %vm2915 = vmor %vm2913, %vm2914
        %v2916 = vsel %vm2915, %v2907, %v2912
        %v2917 = vrsqrt.pop %v2900
        %v2918 = vmul.f32 %v2917, %v2900
        %v2919 = vmul.f32 %v2918, %v2917
        %v2920 = vmul.f32 0.5, %v2919
        %v2921 = vsub.f32 1.5, %v2920
        %v2922 = vmul.f32 %v2917, %v2921
        %vm2923 = vweird.f32 %v2900
        %vm2924 = vweird.f32 %v2917
        %vm2925 = vmor %vm2923, %vm2924
        %v2926 = vsel %vm2925, %v2917, %v2922
        %v2927 = vrsqrt.pop %v2901
        %v2928 = vmul.f32 %v2927, %v2901
        %v2929 = vmul.f32 %v2928, %v2927
        %v2930 = vmul.f32 0.5, %v2929
        %v2931 = vsub.f32 1.5, %v2930
        %v2932 = vmul.f32 %v2927, %v2931
        %vm2933 = vweird.f32 %v2901
        %vm2934 = vweird.f32 %v2927
        %vm2935 = vmor %vm2933, %vm2934
        %v2936 = vsel %vm2935, %v2927, %v2932
        %v2937 = vrsqrt.pop %v2902
        %v2938 = vmul.f32 %v2937, %v2902
        %v2939 = vmul.f32 %v2938, %v2937
        %v2940 = vmul.f32 0.5, %v2939
        %v2941 = vsub.f32 1.5, %v2940
        %v2942 = vmul.f32 %v2937, %v2941
        %vm2943 = vweird.f32 %v2902
        %vm2944 = vweird.f32 %v2937
        %vm2945 = vmor %vm2943, %vm2944
        %v2946 = vsel %vm2945, %v2937, %v2942
        %v2947 = vrsqrt.pop %v2903
        %v2948 = vmul.f32 %v2947, %v2903
        %v2949 = vmul.f32 %v2948, %v2947
        %v2950 = vmul.f32 0.5, %v2949
        %v2951 = vsub.f32 1.5, %v2950
        %v2952 = vmul.f32 %v2947, %v2951
        %vm2953 = vweird.f32 %v2903
        %vm2954 = vweird.f32 %v2947
        %vm2955 = vmor %vm2953, %vm2954
        %v2956 = vsel %vm2955, %v2947, %v2952
        %v2957 = vrsqrt.pop %v2904
        %v2958 = vmul.f32 %v2957, %v2904
        %v2959 = vmul.f32 %v2958, %v2957
        %v2960 = vmul.f32 0.5, %v2959
        %v2961 = vsub.f32 1.5, %v2960
        %v2962 = vmul.f32 %v2957, %v2961
        %vm2963 = vweird.f32 %v2904
        %vm2964 = vweird.f32 %v2957
        %vm2965 = vmor %vm2963, %vm2964
        %v2966 = vsel %vm2965, %v2957, %v2962
        %v2967 = vrsqrt.pop %v2905
        %v2968 = vmul.f32 %v2967, %v2905
        %v2969 = vmul.f32 %v2968, %v2967
        %v2970 = vmul.f32 0.5, %v2969
        %v2971 = vsub.f32 1.5, %v2970
        %v2972 = vmul.f32 %v2967, %v2971
        %vm2973 = vweird.f32 %v2905
        %vm2974 = vweird.f32 %v2967
        %vm2975 = vmor %vm2973, %vm2974
        %v2976 = vsel %vm2975, %v2967, %v2972
        %v2977 = vrsqrt.pop %v2906
        %v2978 = vmul.f32 %v2977, %v2906
        %v2979 = vmul.f32 %v2978, %v2977
        %v2980 = vmul.f32 0.5, %v2979
        %v2981 = vsub.f32 1.5, %v2980
        %v2982 = vmul.f32 %v2977, %v2981
        %vm2983 = vweird.f32 %v2906
        %vm2984 = vweird.f32 %v2977
        %vm2985 = vmor %vm2983, %vm2984
        %v2986 = vsel %vm2985, %v2977, %v2982
        %v2987 = vmul.f32 %v2851, %v2916
        %v2988 = vmul.f32 %v2852, %v2926
        %v2989 = vmul.f32 %v2853, %v2936
        %v2990 = vmul.f32 %v2854, %v2946
        %v2991 = vmul.f32 %v2855, %v2956
        %v2992 = vmul.f32 %v2856, %v2966
        %v2993 = vmul.f32 %v2857, %v2976
        %v2994 = vmul.f32 %v2858, %v2986
        %v2996 = vperm.slane %v2817, 0
        %v2998 = vmul.f32 %v2987, %v2996
        %v2999 = vmul.f32 %v2988, %v2996
        %v3000 = vmul.f32 %v2989, %v2996
        %v3001 = vmul.f32 %v2990, %v2996
        %v3002 = vmul.f32 %v2991, %v2996
        %v3003 = vmul.f32 %v2992, %v2996
        %v3004 = vmul.f32 %v2993, %v2996
        %v3005 = vmul.f32 %v2994, %v2996
        %v3007 = vperm.slane %v2818, 0
        %v3009 = vadd.f32 %v2998, %v3007
        %v3010 = vadd.f32 %v2999, %v3007
        %v3011 = vadd.f32 %v3000, %v3007
        %v3012 = vadd.f32 %v3001, %v3007
        %v3013 = vadd.f32 %v3002, %v3007
        %v3014 = vadd.f32 %v3003, %v3007
        %v3015 = vadd.f32 %v3004, %v3007
        %v3016 = vadd.f32 %v3005, %v3007
        %3017 = vst.msk [vmem:[#allocation2] sm:$0xff] %vm971, %v3009
        %3018 = vst.msk [vmem:[#allocation2 + $0x8] sm:$0xff] %vm971, %v3010
        %3019 = vst.msk [vmem:[#allocation2 + $0x10] sm:$0xff] %vm971, %v3011
        %3020 = vst.msk [vmem:[#allocation2 + $0x18] sm:$0xff] %vm971, %v3012
        %3021 = vst.msk [vmem:[#allocation2 + $0x20] sm:$0xff] %vm971, %v3013
        %3022 = vst.msk [vmem:[#allocation2 + $0x28] sm:$0xff] %vm971, %v3014
        %3023 = vst.msk [vmem:[#allocation2 + $0x30] sm:$0xff] %vm971, %v3015
        %3024 = vst.msk [vmem:[#allocation2 + $0x38] sm:$0xff] %vm971, %v3016
        %p3025 = scmp.eq.s32.totalorder %s35, 1
        // Predicated region
        $region117: #{transvg_forward.3} parent=111 // pred_check
          %p3026 = pneg %p3025
        $region118: #{transvg_forward.3} parent=111 // pred_check_branch
          %3028 = sbr.rel (%p3026) target = $region120
        $region119: #{transvg_forward.3} parent=111 // pred_region
          %v3029 = vpack.c.bf16 %v3009, %v3009
          %v3030 = vpack.c.bf16 %v3013, %v3013
          %v3031 = vld [vmem:[%s17] sm:$0xf]
          %v3032 = vld [vmem:[%s17 + $0x4] sm:$0xf]
          %v3033 = vld [vmem:[%s17 + $0x8] sm:$0xf]
          %v3034 = vld [vmem:[%s17 + $0xc] sm:$0xf]
          %v3035 = vld [vmem:[%s18] sm:$0x1]
          %v3037 = vperm.slane %v3035, 0
          %v3041 = vunpack.c.l.b16 %v3029
          %v3042 = vunpack.c.l.b16 %v3030
          %v3043 = vrot.slane %v3042, 7
          %vm3044 = vcmask 1041409
          %v3045 = vsel %vm3044, %v3043, %v3041
          %v3046 = vpack.c.b16 %v3045, %v3045
          %v3051 = vunpack.c.l.b16 %v3031
          %v3052 = vunpack.c.l.b16 %v3032
          %v3053 = vunpack.c.l.b16 %v3033
          %v3054 = vunpack.c.l.b16 %v3034
          %v3055 = vpack.c.b16 %v3052, %v3051
          %v3056 = vpack.c.b16 %v3054, %v3053
          %v3060 = vsel %vm971, %v3046, 0
          %3062 = vmatpush.bf16.msra.mxu0 0
          %3063 = vmatpush.bf16.msra.mxu0 0
          %3064 = vmatpush.bf16.msra.mxu0 0
          %3065 = vmatpush.bf16.msra.mxu0 0
          %3066 = vmatpush.bf16.msra.mxu0 0
          %3067 = vmatpush.bf16.msra.mxu0 0
          %3068 = vmatpush.bf16.msra.mxu0 %v3056
          %3069 = vmatpush.bf16.msra.mxu0 %v3055
          %3070 = vmatmul.bf16.gmra.mxu0 %v3060
          %v3071 = vpop.f32.mrf.mxu0
          %v3072 = vadd.f32 %v3037, %v3071
          %v3073 = vpop.f32.mrf.mxu0
          %3074 = vdwg.mxu0
          %v3075 = vmax.f32 %v3072, 0.0
          %v3076 = vpack.c.bf16 %v3075, %v3075
          %v3077 = vld [vmem:[%s19] sm:$0xf]
          %v3078 = vld [vmem:[%s19 + $0x4] sm:$0xf]
          %v3079 = vld [vmem:[%s19 + $0x8] sm:$0xf]
          %v3080 = vld [vmem:[%s19 + $0xc] sm:$0xf]
          %v3081 = vld [vmem:[%s20] sm:$0x1]
          %v3083 = vperm.slane %v3081, 0
          %v3089 = vunpack.c.l.b16 %v3077
          %v3090 = vunpack.c.l.b16 %v3078
          %v3091 = vunpack.c.l.b16 %v3079
          %v3092 = vunpack.c.l.b16 %v3080
          %v3093 = vpack.c.b16 %v3090, %v3089
          %v3094 = vpack.c.b16 %v3092, %v3091
          %v3098 = vsel %vm971, %v3076, 0
          %3100 = vmatpush.bf16.msra.mxu0 0
          %3101 = vmatpush.bf16.msra.mxu0 0
          %3102 = vmatpush.bf16.msra.mxu0 0
          %3103 = vmatpush.bf16.msra.mxu0 0
          %3104 = vmatpush.bf16.msra.mxu0 0
          %3105 = vmatpush.bf16.msra.mxu0 0
          %3106 = vmatpush.bf16.msra.mxu0 %v3094
          %3107 = vmatpush.bf16.msra.mxu0 %v3093
          %3108 = vmatmul.bf16.gmra.mxu0 %v3098
          %v3109 = vpop.f32.mrf.mxu0
          %v3110 = vadd.f32 %v3083, %v3109
          %v3111 = vpop.f32.mrf.mxu0
          %3112 = vdwg.mxu0
          %v3113 = vmax.f32 %v3110, 0.0
          %v3114 = vpack.c.bf16 %v3113, %v3113
          %v3115 = vld [vmem:[%s21] sm:$0xf]
          %v3116 = vld [vmem:[%s21 + $0x4] sm:$0xf]
          %v3117 = vld [vmem:[%s21 + $0x8] sm:$0xf]
          %v3118 = vld [vmem:[%s21 + $0xc] sm:$0xf]
          %v3119 = vld [vmem:[%s22] sm:$0x1]
          %v3121 = vperm.slane %v3119, 0
          %v3127 = vunpack.c.l.b16 %v3115
          %v3128 = vunpack.c.l.b16 %v3116
          %v3129 = vunpack.c.l.b16 %v3117
          %v3130 = vunpack.c.l.b16 %v3118
          %v3131 = vpack.c.b16 %v3128, %v3127
          %v3132 = vpack.c.b16 %v3130, %v3129
          %v3136 = vsel %vm971, %v3114, 0
          %3138 = vmatpush.bf16.msra.mxu0 0
          %3139 = vmatpush.bf16.msra.mxu0 0
          %3140 = vmatpush.bf16.msra.mxu0 0
          %3141 = vmatpush.bf16.msra.mxu0 0
          %3142 = vmatpush.bf16.msra.mxu0 0
          %3143 = vmatpush.bf16.msra.mxu0 0
          %3144 = vmatpush.bf16.msra.mxu0 %v3132
          %3145 = vmatpush.bf16.msra.mxu0 %v3131
          %3146 = vmatmul.bf16.gmra.mxu0 %v3136
          %v3147 = vpop.f32.mrf.mxu0
          %v3148 = vadd.f32 %v3121, %v3147
          %v3149 = vpop.f32.mrf.mxu0
          %3150 = vdwg.mxu0
          %v3151 = vsub.f32 0.0, %v3148
          %v3152 = vmul.f32 %v3151, 1.442695
          %v3153 = vpow.pop %v3152
          %v3154 = vadd.f32 %v3153, 1.0
          %v3155 = vrcp.pop %v3154
          %v3156 = vmul.f32 %v3154, %v3155
          %v3157 = vsub.f32 1.0, %v3156
          %v3158 = vmul.f32 %v3155, %v3157
          %v3159 = vadd.f32 %v3155, %v3158
          %vm3160 = vweird.f32 %v3154
          %vm3161 = vweird.f32 %v3155
          %vm3162 = vmor %vm3160, %vm3161
          %v3163 = vsel %vm3162, %v3155, %v3159
          %v3164 = vand.u32 2147483647, %v3154
          %vm3165 = vcmp.eq.f32.partialorder %v3164, 8.507059e+37
          %v3166 = vand.u32 %v3154, 2147483648
          %v3167 = vor.u32 1.1754944e-38, %v3166
          %v3168 = vsel %vm3165, %v3167, %v3163
          %v3169 = vmul.f32 1.0, %v3168
          %vm3170 = vcmask 25600
          %3171 = vst.msk [vmem:[#allocation3] sm:$0x3] %vm3170, %v3169
        $region120: #{transvg_forward.3} parent=111 // pred_fallthru
          _
        // Predicated region
        $region121: #{transvg_forward.3} parent=111 // pred_check
          %p3172 = pneg %p601
        $region122: #{transvg_forward.3} parent=111 // pred_check_branch
          %3174 = sbr.rel (%p3172) target = $region124
        $region123: #{transvg_forward.3} parent=111 // pred_region
          %3176 = vsyncadd [#allocation4], 0
          %s3178 = sshll.u32 [#allocation3], 4
          %s3179 = int_to_ptr.vmem [resolvable:$true] %s3178
          %s3180 = sshll.u32 %s23, 4
          %s3181 = int_to_ptr.hbm [resolvable:$true] %s3180
          %3183 = dma.vmem_to_hbm [thread:$0]  %s3179, 32, %s3181, [#allocation4]
        $region124: #{transvg_forward.3} parent=111 // pred_fallthru
          _
        // Predicated region
        $region125: #{transvg_forward.3} parent=111 // pred_check
          %p3184 = pneg %p601
        $region126: #{transvg_forward.3} parent=111 // pred_check_branch
          %3186 = sbr.rel (%p3184) target = $region128
        $region127: #{transvg_forward.3} parent=111 // pred_region
          %3188 = dma.done [#allocation4], 32
        $region128: #{transvg_forward.3} parent=111 // pred_fallthru
          _
      $region112: #{transvg_forward.3} parent=5 // pred_fallthru
        _
      %p3189 = scmp.le.s32.totalorder 2, %s30
      // Predicated region
      $region129: #{transvg_forward.3} parent=5 // pred_check
        %p3190 = pneg %p3189
      $region130: #{transvg_forward.3} parent=5 // pred_check_branch
        %3192 = sbr.rel (%p3190) target = $region132
      $region131: #{transvg_forward.3} parent=5 // pred_region
        %s3193 = ssub.s32 %s30, 2
      $region132: #{transvg_forward.3} parent=5 // pred_fallthru
        _
    $region6: #{transvg_forward.3} parent=1 // loop_footer
      %s34 = sadd.s32 1, %s30
    $region7: #{transvg_forward.3} parent=1 // loop_footer_branch
      %29 = sbr.rel target = $region3
    $region8: #{transvg_forward.3} parent=1 // loop_exit
      _
    %3194 = vsyncpa [#allocation4], 1
    %s3195 = scalar_lea.sflag [#allocation4], 1
    %3196 = vsyncpa %s3195, 1

</llo_original>
